<compile_context>
chip_gen: v7x
topology: tpu7x:2x2x1
jax: 0.10.0
libtpu: 0.0.40
codegen_flags: <defaults>
</compile_context>

<pallas_src>
import jax
import jax.numpy as jnp
from jax.experimental import pallas as pl
from jax.experimental.pallas import tpu as pltpu

LAYER_DIMS = [784, 512, 256, 128, 64, 10]
OUT_PAD = 128          # lane-padded final output width (true logits are [:10])
TM = 256               # batch tile (multiple of 8 sublanes / 2x128 MXU rows)


def _mlp_kernel(x_ref,
                w1_ref, b1_ref,
                w2_ref, b2_ref,
                w3_ref, b3_ref,
                w4_ref, b4_ref,
                w5_ref, b5_ref,
                o_ref):
    """Fused 5-layer MLP forward on one (TM, 784) batch tile.

    Weights are bf16 (resident in VMEM across grid steps), biases are f32.
    Matmuls run bf16 x bf16 -> f32 on the MXU; bias + ReLU stay in f32.
    """
    def layer(h_f32_or_bf16, w_ref, b_ref, relu):
        h_bf16 = h_f32_or_bf16.astype(jnp.bfloat16)
        acc = jnp.dot(h_bf16, w_ref[...], preferred_element_type=jnp.float32)
        acc = acc + b_ref[...]
        if relu:
            acc = jnp.maximum(acc, 0.0)
        return acc

    h = x_ref[...]                       # (TM, 784) bf16
    h = layer(h, w1_ref, b1_ref, relu=True)    # (TM, 512) f32
    h = layer(h, w2_ref, b2_ref, relu=True)    # (TM, 256) f32
    h = layer(h, w3_ref, b3_ref, relu=True)    # (TM, 128) f32
    h = layer(h, w4_ref, b4_ref, relu=True)    # (TM, 64)  f32
    h = layer(h, w5_ref, b5_ref, relu=False)   # (TM, 128) f32 (lane-padded logits)

    o_ref[...] = h.astype(o_ref.dtype)


def classification_forward(x_nchw, params):
    """x_nchw: (B, 1, 28, 28) float32 -> (B, 10) float32 logits."""
    B = x_nchw.shape[0]
    x = x_nchw.reshape(-1, 784)                       # x.view(-1, 784)

    # Pad batch to a multiple of TM so every tile is full / unmasked.
    n_tiles = pl.cdiv(B, TM)
    B_pad = n_tiles * TM
    if B_pad != B:
        x = jnp.pad(x, ((0, B_pad - B), (0, 0)))
    x = x.astype(jnp.bfloat16)                        # halve input DMA bytes

    # Pack params: weights -> bf16 (in, out); biases -> f32 (1, out).
    # Last layer is lane-padded from 10 -> OUT_PAD columns with zeros.
    flat_params = []
    for li, (w, b) in enumerate(params):
        w = w.astype(jnp.float32)
        b = b.astype(jnp.float32).reshape(1, -1)
        if li == len(params) - 1:
            w = jnp.pad(w, ((0, 0), (0, OUT_PAD - w.shape[1])))
            b = jnp.pad(b, ((0, 0), (0, OUT_PAD - b.shape[1])))
        flat_params.append(w.astype(jnp.bfloat16))
        flat_params.append(b)

    # BlockSpecs: batch-tiled input/output; full-array resident weights/biases.
    in_specs = [pl.BlockSpec((TM, 784), lambda i: (i, 0))]
    for p in flat_params:
        in_specs.append(pl.BlockSpec(p.shape, lambda i: (0, 0)))
    out_spec = pl.BlockSpec((TM, OUT_PAD), lambda i: (i, 0))

    out = pl.pallas_call(
        _mlp_kernel,
        out_shape=jax.ShapeDtypeStruct((B_pad, OUT_PAD), jnp.float32),
        grid=(n_tiles,),
        in_specs=in_specs,
        out_specs=out_spec,
        compiler_params=pltpu.CompilerParams(
            dimension_semantics=("parallel",),      # megacore on v7x
            vmem_limit_bytes=32 * 1024 * 1024,      # resident weights + 2x tiles
        ),
    )(x, *flat_params)

    return out[:B, :10]


def init_params(key):
    """Deterministic init matching nn.Linear shapes (W stored as (in, out))."""
    params = []
    for i in range(len(LAYER_DIMS) - 1):
        fan_in, fan_out = LAYER_DIMS[i], LAYER_DIMS[i + 1]
        key, kw, kb = jax.random.split(key, 3)
        bound = 1.0 / jnp.sqrt(fan_in)
        w = jax.random.uniform(kw, (fan_in, fan_out), jnp.float32, -bound, bound)
        b = jax.random.uniform(kb, (fan_out,), jnp.float32, -bound, bound)
        params.append((w, b))
    return params


def reference_forward(x_nchw, params):
    """Pure-JAX f32 reference for correctness checking."""
    h = x_nchw.reshape(-1, 784)
    for i, (w, b) in enumerate(params):
        h = h @ w + b
        if i < len(params) - 1:
            h = jnp.maximum(h, 0.0)
    return h


if __name__ == "__main__":
    key = jax.random.PRNGKey(0)
    key, kx = jax.random.split(key)

    # MNIST-like input: batch=2, NCHW (2, 1, 28, 28)
    x = jax.random.normal(kx, (2, 1, 28, 28), dtype=jnp.float32)
    params = init_params(key)

    logits = classification_forward(x, params)
    logits = jax.block_until_ready(logits)

    ref = reference_forward(x, params)
    assert logits.shape == (2, 10), logits.shape
    # bf16 matmul operands with f32 accumulation -> loosened tolerance vs f32 ref.
    assert jnp.allclose(logits, ref, atol=2e-2, rtol=2e-2), "mismatch vs reference"

    print("KERNEL_OK")
</pallas_src>

<mosaic_0001>
module attributes {stable_mosaic.version = 11 : i64} {
  func.func @_mlp_kernel(%arg0: i32, %arg1: memref<256x784xbf16, #tpu.memory_space<vmem>>, %arg2: memref<784x512xbf16, #tpu.memory_space<vmem>>, %arg3: memref<1x512xf32, #tpu.memory_space<vmem>>, %arg4: memref<512x256xbf16, #tpu.memory_space<vmem>>, %arg5: memref<1x256xf32, #tpu.memory_space<vmem>>, %arg6: memref<256x128xbf16, #tpu.memory_space<vmem>>, %arg7: memref<1x128xf32, #tpu.memory_space<vmem>>, %arg8: memref<128x64xbf16, #tpu.memory_space<vmem>>, %arg9: memref<1x64xf32, #tpu.memory_space<vmem>>, %arg10: memref<64x128xbf16, #tpu.memory_space<vmem>>, %arg11: memref<1x128xf32, #tpu.memory_space<vmem>>, %arg12: memref<256x128xf32, #tpu.memory_space<vmem>>) attributes {dimension_semantics = [#tpu.dimension_semantics<parallel>], iteration_bounds = array<i64: 1>, scalar_prefetch = 0 : i64, scratch_operands = 0 : i64, tpu.core_type = #tpu.core_type<tc>, window_params = [{transform_indices = @transform_0, window_bounds = array<i64: 256, 784>}, {pipeline_mode = #tpu.pipeline_mode<synchronous>, transform_indices = @transform_1, window_bounds = array<i64: 784, 512>}, {pipeline_mode = #tpu.pipeline_mode<synchronous>, transform_indices = @transform_2, window_bounds = array<i64: 1, 512>}, {pipeline_mode = #tpu.pipeline_mode<synchronous>, transform_indices = @transform_3, window_bounds = array<i64: 512, 256>}, {pipeline_mode = #tpu.pipeline_mode<synchronous>, transform_indices = @transform_4, window_bounds = array<i64: 1, 256>}, {pipeline_mode = #tpu.pipeline_mode<synchronous>, transform_indices = @transform_5, window_bounds = array<i64: 256, 128>}, {pipeline_mode = #tpu.pipeline_mode<synchronous>, transform_indices = @transform_6, window_bounds = array<i64: 1, 128>}, {pipeline_mode = #tpu.pipeline_mode<synchronous>, transform_indices = @transform_7, window_bounds = array<i64: 128, 64>}, {pipeline_mode = #tpu.pipeline_mode<synchronous>, transform_indices = @transform_8, window_bounds = array<i64: 1, 64>}, {pipeline_mode = #tpu.pipeline_mode<synchronous>, transform_indices = @transform_9, window_bounds = array<i64: 64, 128>}, {pipeline_mode = #tpu.pipeline_mode<synchronous>, transform_indices = @transform_10, window_bounds = array<i64: 1, 128>}, {transform_indices = @transform_11, window_bounds = array<i64: 256, 128>}]} {
    %c0 = arith.constant 0 : index
    %c0_0 = arith.constant 0 : index
    %0 = vector.load %arg1[%c0, %c0_0] : memref<256x784xbf16, #tpu.memory_space<vmem>>, vector<256x784xbf16>
    %c0_1 = arith.constant 0 : index
    %c0_2 = arith.constant 0 : index
    %1 = vector.load %arg2[%c0_1, %c0_2] : memref<784x512xbf16, #tpu.memory_space<vmem>>, vector<784x512xbf16>
    %cst = arith.constant dense<0.000000e+00> : vector<256x512xf32>
    %2 = tpu.matmul %0, %1, %cst {dimension_numbers = #tpu.dot_dimension_numbers<[1], [0], [0], [1], [0, 0, 1, 1], [], []>} : vector<256x784xbf16>, vector<784x512xbf16>, vector<256x512xf32> -> vector<256x512xf32>
    %c0_3 = arith.constant 0 : index
    %c0_4 = arith.constant 0 : index
    %3 = vector.load %arg3[%c0_3, %c0_4] : memref<1x512xf32, #tpu.memory_space<vmem>>, vector<1x512xf32>
    %4 = vector.broadcast %3 : vector<1x512xf32> to vector<256x512xf32>
    %5 = arith.addf %2, %4 : vector<256x512xf32>
    %cst_5 = arith.constant 0.000000e+00 : f32
    %6 = vector.broadcast %cst_5 : f32 to vector<256x512xf32>
    %7 = arith.maximumf %5, %6 : vector<256x512xf32>
    %8 = arith.truncf %7 : vector<256x512xf32> to vector<256x512xbf16>
    %c0_6 = arith.constant 0 : index
    %c0_7 = arith.constant 0 : index
    %9 = vector.load %arg4[%c0_6, %c0_7] : memref<512x256xbf16, #tpu.memory_space<vmem>>, vector<512x256xbf16>
    %cst_8 = arith.constant dense<0.000000e+00> : vector<256x256xf32>
    %10 = tpu.matmul %8, %9, %cst_8 {dimension_numbers = #tpu.dot_dimension_numbers<[1], [0], [0], [1], [0, 0, 1, 1], [], []>} : vector<256x512xbf16>, vector<512x256xbf16>, vector<256x256xf32> -> vector<256x256xf32>
    %c0_9 = arith.constant 0 : index
    %c0_10 = arith.constant 0 : index
    %11 = vector.load %arg5[%c0_9, %c0_10] : memref<1x256xf32, #tpu.memory_space<vmem>>, vector<1x256xf32>
    %12 = vector.broadcast %11 : vector<1x256xf32> to vector<256x256xf32>
    %13 = arith.addf %10, %12 : vector<256x256xf32>
    %cst_11 = arith.constant 0.000000e+00 : f32
    %14 = vector.broadcast %cst_11 : f32 to vector<256x256xf32>
    %15 = arith.maximumf %13, %14 : vector<256x256xf32>
    %16 = arith.truncf %15 : vector<256x256xf32> to vector<256x256xbf16>
    %c0_12 = arith.constant 0 : index
    %c0_13 = arith.constant 0 : index
    %17 = vector.load %arg6[%c0_12, %c0_13] : memref<256x128xbf16, #tpu.memory_space<vmem>>, vector<256x128xbf16>
    %cst_14 = arith.constant dense<0.000000e+00> : vector<256x128xf32>
    %18 = tpu.matmul %16, %17, %cst_14 {dimension_numbers = #tpu.dot_dimension_numbers<[1], [0], [0], [1], [0, 0, 1, 1], [], []>} : vector<256x256xbf16>, vector<256x128xbf16>, vector<256x128xf32> -> vector<256x128xf32>
    %c0_15 = arith.constant 0 : index
    %c0_16 = arith.constant 0 : index
    %19 = vector.load %arg7[%c0_15, %c0_16] : memref<1x128xf32, #tpu.memory_space<vmem>>, vector<1x128xf32>
    %20 = vector.broadcast %19 : vector<1x128xf32> to vector<256x128xf32>
    %21 = arith.addf %18, %20 : vector<256x128xf32>
    %cst_17 = arith.constant 0.000000e+00 : f32
    %22 = vector.broadcast %cst_17 : f32 to vector<256x128xf32>
    %23 = arith.maximumf %21, %22 : vector<256x128xf32>
    %24 = arith.truncf %23 : vector<256x128xf32> to vector<256x128xbf16>
    %c0_18 = arith.constant 0 : index
    %c0_19 = arith.constant 0 : index
    %25 = vector.load %arg8[%c0_18, %c0_19] : memref<128x64xbf16, #tpu.memory_space<vmem>>, vector<128x64xbf16>
    %cst_20 = arith.constant dense<0.000000e+00> : vector<256x64xf32>
    %26 = tpu.matmul %24, %25, %cst_20 {dimension_numbers = #tpu.dot_dimension_numbers<[1], [0], [0], [1], [0, 0, 1, 1], [], []>} : vector<256x128xbf16>, vector<128x64xbf16>, vector<256x64xf32> -> vector<256x64xf32>
    %c0_21 = arith.constant 0 : index
    %c0_22 = arith.constant 0 : index
    %27 = vector.load %arg9[%c0_21, %c0_22] : memref<1x64xf32, #tpu.memory_space<vmem>>, vector<1x64xf32>
    %28 = vector.broadcast %27 : vector<1x64xf32> to vector<256x64xf32>
    %29 = arith.addf %26, %28 : vector<256x64xf32>
    %cst_23 = arith.constant 0.000000e+00 : f32
    %30 = vector.broadcast %cst_23 : f32 to vector<256x64xf32>
    %31 = arith.maximumf %29, %30 : vector<256x64xf32>
    %32 = arith.truncf %31 : vector<256x64xf32> to vector<256x64xbf16>
    %c0_24 = arith.constant 0 : index
    %c0_25 = arith.constant 0 : index
    %33 = vector.load %arg10[%c0_24, %c0_25] : memref<64x128xbf16, #tpu.memory_space<vmem>>, vector<64x128xbf16>
    %cst_26 = arith.constant dense<0.000000e+00> : vector<256x128xf32>
    %34 = tpu.matmul %32, %33, %cst_26 {dimension_numbers = #tpu.dot_dimension_numbers<[1], [0], [0], [1], [0, 0, 1, 1], [], []>} : vector<256x64xbf16>, vector<64x128xbf16>, vector<256x128xf32> -> vector<256x128xf32>
    %c0_27 = arith.constant 0 : index
    %c0_28 = arith.constant 0 : index
    %35 = vector.load %arg11[%c0_27, %c0_28] : memref<1x128xf32, #tpu.memory_space<vmem>>, vector<1x128xf32>
    %36 = vector.broadcast %35 : vector<1x128xf32> to vector<256x128xf32>
    %37 = arith.addf %34, %36 : vector<256x128xf32>
    %c0_29 = arith.constant 0 : index
    %c0_30 = arith.constant 0 : index
    %38 = vector.load %arg12[%c0_29, %c0_30] : memref<256x128xf32, #tpu.memory_space<vmem>>, vector<256x128xf32>
    tpu.vector_store %arg12[%c0_29, %c0_30], %37 {strides = array<i32>} : memref<256x128xf32, #tpu.memory_space<vmem>>, vector<256x128xf32>,
    return
  }
  func.func @transform_0(%arg0: i32) -> (i32, i32) {
    %c0_i32 = arith.constant 0 : i32
    %c0_i32_0 = arith.constant 0 : i32
    return %arg0, %c0_i32 : i32, i32
  }
  func.func @transform_1(%arg0: i32) -> (i32, i32) {
    %c0_i32 = arith.constant 0 : i32
    %c0_i32_0 = arith.constant 0 : i32
    %c0_i32_1 = arith.constant 0 : i32
    return %c0_i32, %c0_i32_0 : i32, i32
  }
  func.func @transform_2(%arg0: i32) -> (i32, i32) {
    %c0_i32 = arith.constant 0 : i32
    %c0_i32_0 = arith.constant 0 : i32
    %c0_i32_1 = arith.constant 0 : i32
    return %c0_i32, %c0_i32_0 : i32, i32
  }
  func.func @transform_3(%arg0: i32) -> (i32, i32) {
    %c0_i32 = arith.constant 0 : i32
    %c0_i32_0 = arith.constant 0 : i32
    %c0_i32_1 = arith.constant 0 : i32
    return %c0_i32, %c0_i32_0 : i32, i32
  }
  func.func @transform_4(%arg0: i32) -> (i32, i32) {
    %c0_i32 = arith.constant 0 : i32
    %c0_i32_0 = arith.constant 0 : i32
    %c0_i32_1 = arith.constant 0 : i32
    return %c0_i32, %c0_i32_0 : i32, i32
  }
  func.func @transform_5(%arg0: i32) -> (i32, i32) {
    %c0_i32 = arith.constant 0 : i32
    %c0_i32_0 = arith.constant 0 : i32
    %c0_i32_1 = arith.constant 0 : i32
    return %c0_i32, %c0_i32_0 : i32, i32
  }
  func.func @transform_6(%arg0: i32) -> (i32, i32) {
    %c0_i32 = arith.constant 0 : i32
    %c0_i32_0 = arith.constant 0 : i32
    %c0_i32_1 = arith.constant 0 : i32
    return %c0_i32, %c0_i32_0 : i32, i32
  }
  func.func @transform_7(%arg0: i32) -> (i32, i32) {
    %c0_i32 = arith.constant 0 : i32
    %c0_i32_0 = arith.constant 0 : i32
    %c0_i32_1 = arith.constant 0 : i32
    return %c0_i32, %c0_i32_0 : i32, i32
  }
  func.func @transform_8(%arg0: i32) -> (i32, i32) {
    %c0_i32 = arith.constant 0 : i32
    %c0_i32_0 = arith.constant 0 : i32
    %c0_i32_1 = arith.constant 0 : i32
    return %c0_i32, %c0_i32_0 : i32, i32
  }
  func.func @transform_9(%arg0: i32) -> (i32, i32) {
    %c0_i32 = arith.constant 0 : i32
    %c0_i32_0 = arith.constant 0 : i32
    %c0_i32_1 = arith.constant 0 : i32
    return %c0_i32, %c0_i32_0 : i32, i32
  }
  func.func @transform_10(%arg0: i32) -> (i32, i32) {
    %c0_i32 = arith.constant 0 : i32
    %c0_i32_0 = arith.constant 0 : i32
    %c0_i32_1 = arith.constant 0 : i32
    return %c0_i32, %c0_i32_0 : i32, i32
  }
  func.func @transform_11(%arg0: i32) -> (i32, i32) {
    %c0_i32 = arith.constant 0 : i32
    %c0_i32_0 = arith.constant 0 : i32
    return %arg0, %c0_i32 : i32, i32
  }
}

</mosaic_0001>

<llo_original>
// kernel: tpu_custom_call.1
$region0: #{tpu_custom_call.1}
  #allocation0 [shape = 'u32[]', space=smem, size = 0x4, offset = 0x4, fixed_abs, tag = 'smem constant byte address 0x4 - core index']
  #allocation1 [shape = 'u32[144,128]{1,0:T(1,128)}', space=vmem, size = 0x12000, scoped, tag = 'internal scratch']
  %s0 = inlined_call_operand.vmem [shape: bf16[256,784], index: 0, kind: input, shape index: {}]
  %s1 = inlined_call_operand.vmem [shape: bf16[784,512], index: 1, kind: input, shape index: {}]
  %s2 = inlined_call_operand.vmem [shape: f32[1,512], index: 2, kind: input, shape index: {}]
  %s3 = inlined_call_operand.hbm [shape: bf16[512,256], index: 3, kind: input, shape index: {}]
  %s4 = inlined_call_operand.vmem [shape: f32[1,256], index: 4, kind: input, shape index: {}]
  %s5 = inlined_call_operand.vmem [shape: bf16[256,128], index: 5, kind: input, shape index: {}]
  %s6 = inlined_call_operand.vmem [shape: f32[1,128], index: 6, kind: input, shape index: {}]
  %s7 = inlined_call_operand.vmem [shape: bf16[128,64], index: 7, kind: input, shape index: {}]
  %s8 = inlined_call_operand.vmem [shape: f32[1,64], index: 8, kind: input, shape index: {}]
  %s9 = inlined_call_operand.vmem [shape: bf16[64,128], index: 9, kind: input, shape index: {}]
  %s10 = inlined_call_operand.vmem [shape: f32[1,128], index: 10, kind: input, shape index: {}]
  %s11 = inlined_call_operand.hbm [shape: f32[256,128], index: 11, kind: output, shape index: {}]
  %s12 = sld [smem:[#allocation0]]
  $region58: #{tpu_custom_call.1} parent=0
    _
  %s14 = ssub.s32 1, %s12
  %s15 = scalar_select 0, %s14, %s12
  $region1: #{tpu_custom_call.1} parent=0
    #allocation2 [shape = 'u8[262144]{0}', space=vmem, size = 0x40000, scoped, tag = 'input window, operand 3, single buffered']
    #allocation3 [shape = 's32[1]{0}', space=sflag, size = 0x4, scoped, tag = 'scoped memory for tpu_custom_call.1']
    #allocation4 [shape = 's32[1]{0}', space=sflag, size = 0x4, scoped, tag = 'scoped memory for tpu_custom_call.1']
    #allocation5 [shape = 'u8[131072]{0}', space=vmem, size = 0x20000, scoped, tag = 'output window, operand 0, single buffered']
    %16 = vsyncpa [#allocation3], 0
    %17 = vsyncpa [#allocation4], 0
    // Predicated region
    $region2: #{tpu_custom_call.1} parent=1 // pred_check
      _
    $region3: #{tpu_custom_call.1} parent=1 // pred_check_branch
      %19 = sbr.rel (0) target = $region5
    $region4: #{tpu_custom_call.1} parent=1 // pred_region
      _
    $region5: #{tpu_custom_call.1} parent=1 // pred_fallthru
      _
    // Predicated region
    $region6: #{tpu_custom_call.1} parent=1 // pred_check
      _
    $region7: #{tpu_custom_call.1} parent=1 // pred_check_branch
      %21 = sbr.rel (0) target = $region9
    $region8: #{tpu_custom_call.1} parent=1 // pred_region
      _
    $region9: #{tpu_custom_call.1} parent=1 // pred_fallthru
      _
    // Predicated region
    $region10: #{tpu_custom_call.1} parent=1 // pred_check
      _
    $region11: #{tpu_custom_call.1} parent=1 // pred_check_branch
      %23 = sbr.rel (0) target = $region13
    $region12: #{tpu_custom_call.1} parent=1 // pred_region
      _
    $region13: #{tpu_custom_call.1} parent=1 // pred_fallthru
      _
    // Predicated region
    $region14: #{tpu_custom_call.1} parent=1 // pred_check
      _
    $region15: #{tpu_custom_call.1} parent=1 // pred_check_branch
      %25 = sbr.rel (0) target = $region17
    $region16: #{tpu_custom_call.1} parent=1 // pred_region
      %s27 = ssub.s32 8192, 8192
      %28 = vsyncadd [#allocation3], %s27
      %s29 = sshll.u32 [#allocation2], 4
      %s30 = int_to_ptr.vmem [resolvable:$true] %s29
      %35 = dma.hbm_to_vmem [thread:$0]  %s3, 8192, %s30, [#allocation3], 128, 128, 8
    $region17: #{tpu_custom_call.1} parent=1 // pred_fallthru
      _
    // Predicated region
    $region18: #{tpu_custom_call.1} parent=1 // pred_check
      _
    $region19: #{tpu_custom_call.1} parent=1 // pred_check_branch
      %37 = sbr.rel (0) target = $region21
    $region20: #{tpu_custom_call.1} parent=1 // pred_region
      _
    $region21: #{tpu_custom_call.1} parent=1 // pred_fallthru
      _
    // Predicated region
    $region22: #{tpu_custom_call.1} parent=1 // pred_check
      _
    $region23: #{tpu_custom_call.1} parent=1 // pred_check_branch
      %39 = sbr.rel (0) target = $region25
    $region24: #{tpu_custom_call.1} parent=1 // pred_region
      _
    $region25: #{tpu_custom_call.1} parent=1 // pred_fallthru
      _
    // Predicated region
    $region26: #{tpu_custom_call.1} parent=1 // pred_check
      _
    $region27: #{tpu_custom_call.1} parent=1 // pred_check_branch
      %41 = sbr.rel (0) target = $region29
    $region28: #{tpu_custom_call.1} parent=1 // pred_region
      _
    $region29: #{tpu_custom_call.1} parent=1 // pred_fallthru
      _
    // Predicated region
    $region30: #{tpu_custom_call.1} parent=1 // pred_check
      _
    $region31: #{tpu_custom_call.1} parent=1 // pred_check_branch
      %43 = sbr.rel (0) target = $region33
    $region32: #{tpu_custom_call.1} parent=1 // pred_region
      _
    $region33: #{tpu_custom_call.1} parent=1 // pred_fallthru
      _
    // Predicated region
    $region34: #{tpu_custom_call.1} parent=1 // pred_check
      _
    $region35: #{tpu_custom_call.1} parent=1 // pred_check_branch
      %45 = sbr.rel (0) target = $region37
    $region36: #{tpu_custom_call.1} parent=1 // pred_region
      _
    $region37: #{tpu_custom_call.1} parent=1 // pred_fallthru
      _
    // Predicated region
    $region38: #{tpu_custom_call.1} parent=1 // pred_check
      _
    $region39: #{tpu_custom_call.1} parent=1 // pred_check_branch
      %47 = sbr.rel (0) target = $region41
    $region40: #{tpu_custom_call.1} parent=1 // pred_region
      _
    $region41: #{tpu_custom_call.1} parent=1 // pred_fallthru
      _
    // Predicated region
    $region42: #{tpu_custom_call.1} parent=1 // pred_check
      _
    $region43: #{tpu_custom_call.1} parent=1 // pred_check_branch
      %49 = sbr.rel (0) target = $region45
    $region44: #{tpu_custom_call.1} parent=1 // pred_region
      _
    $region45: #{tpu_custom_call.1} parent=1 // pred_fallthru
      _
    // Predicated region
    $region46: #{tpu_custom_call.1} parent=1 // pred_check
      _
    $region47: #{tpu_custom_call.1} parent=1 // pred_check_branch
      %51 = sbr.rel (0) target = $region49
    $region48: #{tpu_custom_call.1} parent=1 // pred_region
      %52 = dma.done [#allocation3], 8192
    $region49: #{tpu_custom_call.1} parent=1 // pred_fallthru
      _
    %v54 = vld [vmem:[%s0] sm:$0xff]
    %v55 = vld [vmem:[%s0 + $0x8] sm:$0xff]
    %v56 = vld [vmem:[%s0 + $0x10] sm:$0xff]
    %v57 = vld [vmem:[%s0 + $0x18] sm:$0xf]
    %v58 = vld [vmem:[%s0 + $0x1c] sm:$0xff]
    %v59 = vld [vmem:[%s0 + $0x24] sm:$0xff]
    %v60 = vld [vmem:[%s0 + $0x2c] sm:$0xff]
    %v61 = vld [vmem:[%s0 + $0x34] sm:$0xf]
    %v62 = vld [vmem:[%s0 + $0x38] sm:$0xff]
    %v63 = vld [vmem:[%s0 + $0x40] sm:$0xff]
    %v64 = vld [vmem:[%s0 + $0x48] sm:$0xff]
    %v65 = vld [vmem:[%s0 + $0x50] sm:$0xf]
    %v66 = vld [vmem:[%s0 + $0x54] sm:$0xff]
    %v67 = vld [vmem:[%s0 + $0x5c] sm:$0xff]
    %v68 = vld [vmem:[%s0 + $0x64] sm:$0xff]
    %v69 = vld [vmem:[%s0 + $0x6c] sm:$0xf]
    %v70 = vld [vmem:[%s0 + $0x70] sm:$0xff]
    %v71 = vld [vmem:[%s0 + $0x78] sm:$0xff]
    %v72 = vld [vmem:[%s0 + $0x80] sm:$0xff]
    %v73 = vld [vmem:[%s0 + $0x88] sm:$0xf]
    %v74 = vld [vmem:[%s0 + $0x8c] sm:$0xff]
    %v75 = vld [vmem:[%s0 + $0x94] sm:$0xff]
    %v76 = vld [vmem:[%s0 + $0x9c] sm:$0xff]
    %v77 = vld [vmem:[%s0 + $0xa4] sm:$0xf]
    %v78 = vld [vmem:[%s0 + $0xa8] sm:$0xff]
    %v79 = vld [vmem:[%s0 + $0xb0] sm:$0xff]
    %v80 = vld [vmem:[%s0 + $0xb8] sm:$0xff]
    %v81 = vld [vmem:[%s0 + $0xc0] sm:$0xf]
    %v82 = vld [vmem:[%s0 + $0xc4] sm:$0xff]
    %v83 = vld [vmem:[%s0 + $0xcc] sm:$0xff]
    %v84 = vld [vmem:[%s0 + $0xd4] sm:$0xff]
    %v85 = vld [vmem:[%s0 + $0xdc] sm:$0xf]
    %v86 = vld [vmem:[%s0 + $0xe0] sm:$0xff]
    %v87 = vld [vmem:[%s0 + $0xe8] sm:$0xff]
    %v88 = vld [vmem:[%s0 + $0xf0] sm:$0xff]
    %v89 = vld [vmem:[%s0 + $0xf8] sm:$0xf]
    %v90 = vld [vmem:[%s0 + $0xfc] sm:$0xff]
    %v91 = vld [vmem:[%s0 + $0x104] sm:$0xff]
    %v92 = vld [vmem:[%s0 + $0x10c] sm:$0xff]
    %v93 = vld [vmem:[%s0 + $0x114] sm:$0xf]
    %v94 = vld [vmem:[%s0 + $0x118] sm:$0xff]
    %v95 = vld [vmem:[%s0 + $0x120] sm:$0xff]
    %v96 = vld [vmem:[%s0 + $0x128] sm:$0xff]
    %v97 = vld [vmem:[%s0 + $0x130] sm:$0xf]
    %v98 = vld [vmem:[%s0 + $0x134] sm:$0xff]
    %v99 = vld [vmem:[%s0 + $0x13c] sm:$0xff]
    %v100 = vld [vmem:[%s0 + $0x144] sm:$0xff]
    %v101 = vld [vmem:[%s0 + $0x14c] sm:$0xf]
    %v102 = vld [vmem:[%s0 + $0x150] sm:$0xff]
    %v103 = vld [vmem:[%s0 + $0x158] sm:$0xff]
    %v104 = vld [vmem:[%s0 + $0x160] sm:$0xff]
    %v105 = vld [vmem:[%s0 + $0x168] sm:$0xf]
    %v106 = vld [vmem:[%s0 + $0x16c] sm:$0xff]
    %v107 = vld [vmem:[%s0 + $0x174] sm:$0xff]
    %v108 = vld [vmem:[%s0 + $0x17c] sm:$0xff]
    %v109 = vld [vmem:[%s0 + $0x184] sm:$0xf]
    %v110 = vld [vmem:[%s0 + $0x188] sm:$0xff]
    %v111 = vld [vmem:[%s0 + $0x190] sm:$0xff]
    %v112 = vld [vmem:[%s0 + $0x198] sm:$0xff]
    %v113 = vld [vmem:[%s0 + $0x1a0] sm:$0xf]
    %v114 = vld [vmem:[%s0 + $0x1a4] sm:$0xff]
    %v115 = vld [vmem:[%s0 + $0x1ac] sm:$0xff]
    %v116 = vld [vmem:[%s0 + $0x1b4] sm:$0xff]
    %v117 = vld [vmem:[%s0 + $0x1bc] sm:$0xf]
    %v118 = vld [vmem:[%s0 + $0x1c0] sm:$0xff]
    %v119 = vld [vmem:[%s0 + $0x1c8] sm:$0xff]
    %v120 = vld [vmem:[%s0 + $0x1d0] sm:$0xff]
    %v121 = vld [vmem:[%s0 + $0x1d8] sm:$0xf]
    %v122 = vld [vmem:[%s0 + $0x1dc] sm:$0xff]
    %v123 = vld [vmem:[%s0 + $0x1e4] sm:$0xff]
    %v124 = vld [vmem:[%s0 + $0x1ec] sm:$0xff]
    %v125 = vld [vmem:[%s0 + $0x1f4] sm:$0xf]
    %v126 = vld [vmem:[%s0 + $0x1f8] sm:$0xff]
    %v127 = vld [vmem:[%s0 + $0x200] sm:$0xff]
    %v128 = vld [vmem:[%s0 + $0x208] sm:$0xff]
    %v129 = vld [vmem:[%s0 + $0x210] sm:$0xf]
    %v130 = vld [vmem:[%s0 + $0x214] sm:$0xff]
    %v131 = vld [vmem:[%s0 + $0x21c] sm:$0xff]
    %v132 = vld [vmem:[%s0 + $0x224] sm:$0xff]
    %v133 = vld [vmem:[%s0 + $0x22c] sm:$0xf]
    %v134 = vld [vmem:[%s0 + $0x230] sm:$0xff]
    %v135 = vld [vmem:[%s0 + $0x238] sm:$0xff]
    %v136 = vld [vmem:[%s0 + $0x240] sm:$0xff]
    %v137 = vld [vmem:[%s0 + $0x248] sm:$0xf]
    %v138 = vld [vmem:[%s0 + $0x24c] sm:$0xff]
    %v139 = vld [vmem:[%s0 + $0x254] sm:$0xff]
    %v140 = vld [vmem:[%s0 + $0x25c] sm:$0xff]
    %v141 = vld [vmem:[%s0 + $0x264] sm:$0xf]
    %v142 = vld [vmem:[%s0 + $0x268] sm:$0xff]
    %v143 = vld [vmem:[%s0 + $0x270] sm:$0xff]
    %v144 = vld [vmem:[%s0 + $0x278] sm:$0xff]
    %v145 = vld [vmem:[%s0 + $0x280] sm:$0xf]
    %v146 = vld [vmem:[%s0 + $0x284] sm:$0xff]
    %v147 = vld [vmem:[%s0 + $0x28c] sm:$0xff]
    %v148 = vld [vmem:[%s0 + $0x294] sm:$0xff]
    %v149 = vld [vmem:[%s0 + $0x29c] sm:$0xf]
    %v150 = vld [vmem:[%s0 + $0x2a0] sm:$0xff]
    %v151 = vld [vmem:[%s0 + $0x2a8] sm:$0xff]
    %v152 = vld [vmem:[%s0 + $0x2b0] sm:$0xff]
    %v153 = vld [vmem:[%s0 + $0x2b8] sm:$0xf]
    %v154 = vld [vmem:[%s0 + $0x2bc] sm:$0xff]
    %v155 = vld [vmem:[%s0 + $0x2c4] sm:$0xff]
    %v156 = vld [vmem:[%s0 + $0x2cc] sm:$0xff]
    %v157 = vld [vmem:[%s0 + $0x2d4] sm:$0xf]
    %v158 = vld [vmem:[%s0 + $0x2d8] sm:$0xff]
    %v159 = vld [vmem:[%s0 + $0x2e0] sm:$0xff]
    %v160 = vld [vmem:[%s0 + $0x2e8] sm:$0xff]
    %v161 = vld [vmem:[%s0 + $0x2f0] sm:$0xf]
    %v162 = vld [vmem:[%s0 + $0x2f4] sm:$0xff]
    %v163 = vld [vmem:[%s0 + $0x2fc] sm:$0xff]
    %v164 = vld [vmem:[%s0 + $0x304] sm:$0xff]
    %v165 = vld [vmem:[%s0 + $0x30c] sm:$0xf]
    %v166 = vld [vmem:[%s0 + $0x310] sm:$0xff]
    %v167 = vld [vmem:[%s0 + $0x318] sm:$0xff]
    %v168 = vld [vmem:[%s0 + $0x320] sm:$0xff]
    %v169 = vld [vmem:[%s0 + $0x328] sm:$0xf]
    %v170 = vld [vmem:[%s0 + $0x32c] sm:$0xff]
    %v171 = vld [vmem:[%s0 + $0x334] sm:$0xff]
    %v172 = vld [vmem:[%s0 + $0x33c] sm:$0xff]
    %v173 = vld [vmem:[%s0 + $0x344] sm:$0xf]
    %v174 = vld [vmem:[%s0 + $0x348] sm:$0xff]
    %v175 = vld [vmem:[%s0 + $0x350] sm:$0xff]
    %v176 = vld [vmem:[%s0 + $0x358] sm:$0xff]
    %v177 = vld [vmem:[%s0 + $0x360] sm:$0xf]
    %v178 = vld [vmem:[%s0 + $0x364] sm:$0xff]
    %v179 = vld [vmem:[%s0 + $0x36c] sm:$0xff]
    %v180 = vld [vmem:[%s0 + $0x374] sm:$0xff]
    %v181 = vld [vmem:[%s0 + $0x37c] sm:$0xf]
    %v182 = vld [vmem:[%s1] sm:$0xff]
    %v183 = vld [vmem:[%s1 + $0x8] sm:$0xff]
    %v184 = vld [vmem:[%s1 + $0x10] sm:$0xff]
    %v185 = vld [vmem:[%s1 + $0x18] sm:$0xff]
    %v186 = vld [vmem:[%s1 + $0x20] sm:$0xff]
    %v187 = vld [vmem:[%s1 + $0x28] sm:$0xff]
    %v188 = vld [vmem:[%s1 + $0x30] sm:$0xff]
    %v189 = vld [vmem:[%s1 + $0x38] sm:$0xff]
    %v190 = vld [vmem:[%s1 + $0x40] sm:$0xff]
    %v191 = vld [vmem:[%s1 + $0x48] sm:$0xff]
    %v192 = vld [vmem:[%s1 + $0x50] sm:$0xff]
    %v193 = vld [vmem:[%s1 + $0x58] sm:$0xff]
    %v194 = vld [vmem:[%s1 + $0x60] sm:$0xff]
    %v195 = vld [vmem:[%s1 + $0x68] sm:$0xff]
    %v196 = vld [vmem:[%s1 + $0x70] sm:$0xff]
    %v197 = vld [vmem:[%s1 + $0x78] sm:$0xff]
    %v198 = vld [vmem:[%s1 + $0x80] sm:$0xff]
    %v199 = vld [vmem:[%s1 + $0x88] sm:$0xff]
    %v200 = vld [vmem:[%s1 + $0x90] sm:$0xff]
    %v201 = vld [vmem:[%s1 + $0x98] sm:$0xff]
    %v202 = vld [vmem:[%s1 + $0xa0] sm:$0xff]
    %v203 = vld [vmem:[%s1 + $0xa8] sm:$0xff]
    %v204 = vld [vmem:[%s1 + $0xb0] sm:$0xff]
    %v205 = vld [vmem:[%s1 + $0xb8] sm:$0xff]
    %v206 = vld [vmem:[%s1 + $0xc0] sm:$0xff]
    %v207 = vld [vmem:[%s1 + $0xc8] sm:$0xff]
    %v208 = vld [vmem:[%s1 + $0xd0] sm:$0xff]
    %v209 = vld [vmem:[%s1 + $0xd8] sm:$0xff]
    %v210 = vld [vmem:[%s1 + $0xe0] sm:$0xff]
    %v211 = vld [vmem:[%s1 + $0xe8] sm:$0xff]
    %v212 = vld [vmem:[%s1 + $0xf0] sm:$0xff]
    %v213 = vld [vmem:[%s1 + $0xf8] sm:$0xff]
    %v214 = vld [vmem:[%s1 + $0x100] sm:$0xff]
    %v215 = vld [vmem:[%s1 + $0x108] sm:$0xff]
    %v216 = vld [vmem:[%s1 + $0x110] sm:$0xff]
    %v217 = vld [vmem:[%s1 + $0x118] sm:$0xff]
    %v218 = vld [vmem:[%s1 + $0x120] sm:$0xff]
    %v219 = vld [vmem:[%s1 + $0x128] sm:$0xff]
    %v220 = vld [vmem:[%s1 + $0x130] sm:$0xff]
    %v221 = vld [vmem:[%s1 + $0x138] sm:$0xff]
    %v222 = vld [vmem:[%s1 + $0x140] sm:$0xff]
    %v223 = vld [vmem:[%s1 + $0x148] sm:$0xff]
    %v224 = vld [vmem:[%s1 + $0x150] sm:$0xff]
    %v225 = vld [vmem:[%s1 + $0x158] sm:$0xff]
    %v226 = vld [vmem:[%s1 + $0x160] sm:$0xff]
    %v227 = vld [vmem:[%s1 + $0x168] sm:$0xff]
    %v228 = vld [vmem:[%s1 + $0x170] sm:$0xff]
    %v229 = vld [vmem:[%s1 + $0x178] sm:$0xff]
    %v230 = vld [vmem:[%s1 + $0x180] sm:$0xff]
    %v231 = vld [vmem:[%s1 + $0x188] sm:$0xff]
    %v232 = vld [vmem:[%s1 + $0x190] sm:$0xff]
    %v233 = vld [vmem:[%s1 + $0x198] sm:$0xff]
    %v234 = vld [vmem:[%s1 + $0x1a0] sm:$0xff]
    %v235 = vld [vmem:[%s1 + $0x1a8] sm:$0xff]
    %v236 = vld [vmem:[%s1 + $0x1b0] sm:$0xff]
    %v237 = vld [vmem:[%s1 + $0x1b8] sm:$0xff]
    %v238 = vld [vmem:[%s1 + $0x1c0] sm:$0xff]
    %v239 = vld [vmem:[%s1 + $0x1c8] sm:$0xff]
    %v240 = vld [vmem:[%s1 + $0x1d0] sm:$0xff]
    %v241 = vld [vmem:[%s1 + $0x1d8] sm:$0xff]
    %v242 = vld [vmem:[%s1 + $0x1e0] sm:$0xff]
    %v243 = vld [vmem:[%s1 + $0x1e8] sm:$0xff]
    %v244 = vld [vmem:[%s1 + $0x1f0] sm:$0xff]
    %v245 = vld [vmem:[%s1 + $0x1f8] sm:$0xff]
    %v246 = vld [vmem:[%s1 + $0x200] sm:$0xff]
    %v247 = vld [vmem:[%s1 + $0x208] sm:$0xff]
    %v248 = vld [vmem:[%s1 + $0x210] sm:$0xff]
    %v249 = vld [vmem:[%s1 + $0x218] sm:$0xff]
    %v250 = vld [vmem:[%s1 + $0x220] sm:$0xff]
    %v251 = vld [vmem:[%s1 + $0x228] sm:$0xff]
    %v252 = vld [vmem:[%s1 + $0x230] sm:$0xff]
    %v253 = vld [vmem:[%s1 + $0x238] sm:$0xff]
    %v254 = vld [vmem:[%s1 + $0x240] sm:$0xff]
    %v255 = vld [vmem:[%s1 + $0x248] sm:$0xff]
    %v256 = vld [vmem:[%s1 + $0x250] sm:$0xff]
    %v257 = vld [vmem:[%s1 + $0x258] sm:$0xff]
    %v258 = vld [vmem:[%s1 + $0x260] sm:$0xff]
    %v259 = vld [vmem:[%s1 + $0x268] sm:$0xff]
    %v260 = vld [vmem:[%s1 + $0x270] sm:$0xff]
    %v261 = vld [vmem:[%s1 + $0x278] sm:$0xff]
    %v262 = vld [vmem:[%s1 + $0x280] sm:$0xff]
    %v263 = vld [vmem:[%s1 + $0x288] sm:$0xff]
    %v264 = vld [vmem:[%s1 + $0x290] sm:$0xff]
    %v265 = vld [vmem:[%s1 + $0x298] sm:$0xff]
    %v266 = vld [vmem:[%s1 + $0x2a0] sm:$0xff]
    %v267 = vld [vmem:[%s1 + $0x2a8] sm:$0xff]
    %v268 = vld [vmem:[%s1 + $0x2b0] sm:$0xff]
    %v269 = vld [vmem:[%s1 + $0x2b8] sm:$0xff]
    %v270 = vld [vmem:[%s1 + $0x2c0] sm:$0xff]
    %v271 = vld [vmem:[%s1 + $0x2c8] sm:$0xff]
    %v272 = vld [vmem:[%s1 + $0x2d0] sm:$0xff]
    %v273 = vld [vmem:[%s1 + $0x2d8] sm:$0xff]
    %v274 = vld [vmem:[%s1 + $0x2e0] sm:$0xff]
    %v275 = vld [vmem:[%s1 + $0x2e8] sm:$0xff]
    %v276 = vld [vmem:[%s1 + $0x2f0] sm:$0xff]
    %v277 = vld [vmem:[%s1 + $0x2f8] sm:$0xff]
    %v278 = vld [vmem:[%s1 + $0x300] sm:$0xff]
    %v279 = vld [vmem:[%s1 + $0x308] sm:$0xff]
    %v280 = vld [vmem:[%s1 + $0x310] sm:$0xff]
    %v281 = vld [vmem:[%s1 + $0x318] sm:$0xff]
    %v282 = vld [vmem:[%s1 + $0x320] sm:$0xff]
    %v283 = vld [vmem:[%s1 + $0x328] sm:$0xff]
    %v284 = vld [vmem:[%s1 + $0x330] sm:$0xff]
    %v285 = vld [vmem:[%s1 + $0x338] sm:$0xff]
    %v286 = vld [vmem:[%s1 + $0x340] sm:$0xff]
    %v287 = vld [vmem:[%s1 + $0x348] sm:$0xff]
    %v288 = vld [vmem:[%s1 + $0x350] sm:$0xff]
    %v289 = vld [vmem:[%s1 + $0x358] sm:$0xff]
    %v290 = vld [vmem:[%s1 + $0x360] sm:$0xff]
    %v291 = vld [vmem:[%s1 + $0x368] sm:$0xff]
    %v292 = vld [vmem:[%s1 + $0x370] sm:$0xff]
    %v293 = vld [vmem:[%s1 + $0x378] sm:$0xff]
    %v294 = vld [vmem:[%s1 + $0x380] sm:$0xff]
    %v295 = vld [vmem:[%s1 + $0x388] sm:$0xff]
    %v296 = vld [vmem:[%s1 + $0x390] sm:$0xff]
    %v297 = vld [vmem:[%s1 + $0x398] sm:$0xff]
    %v298 = vld [vmem:[%s1 + $0x3a0] sm:$0xff]
    %v299 = vld [vmem:[%s1 + $0x3a8] sm:$0xff]
    %v300 = vld [vmem:[%s1 + $0x3b0] sm:$0xff]
    %v301 = vld [vmem:[%s1 + $0x3b8] sm:$0xff]
    %v302 = vld [vmem:[%s1 + $0x3c0] sm:$0xff]
    %v303 = vld [vmem:[%s1 + $0x3c8] sm:$0xff]
    %v304 = vld [vmem:[%s1 + $0x3d0] sm:$0xff]
    %v305 = vld [vmem:[%s1 + $0x3d8] sm:$0xff]
    %v306 = vld [vmem:[%s1 + $0x3e0] sm:$0xff]
    %v307 = vld [vmem:[%s1 + $0x3e8] sm:$0xff]
    %v308 = vld [vmem:[%s1 + $0x3f0] sm:$0xff]
    %v309 = vld [vmem:[%s1 + $0x3f8] sm:$0xff]
    %v310 = vld [vmem:[%s1 + $0x400] sm:$0xff]
    %v311 = vld [vmem:[%s1 + $0x408] sm:$0xff]
    %v312 = vld [vmem:[%s1 + $0x410] sm:$0xff]
    %v313 = vld [vmem:[%s1 + $0x418] sm:$0xff]
    %v314 = vld [vmem:[%s1 + $0x420] sm:$0xff]
    %v315 = vld [vmem:[%s1 + $0x428] sm:$0xff]
    %v316 = vld [vmem:[%s1 + $0x430] sm:$0xff]
    %v317 = vld [vmem:[%s1 + $0x438] sm:$0xff]
    %v318 = vld [vmem:[%s1 + $0x440] sm:$0xff]
    %v319 = vld [vmem:[%s1 + $0x448] sm:$0xff]
    %v320 = vld [vmem:[%s1 + $0x450] sm:$0xff]
    %v321 = vld [vmem:[%s1 + $0x458] sm:$0xff]
    %v322 = vld [vmem:[%s1 + $0x460] sm:$0xff]
    %v323 = vld [vmem:[%s1 + $0x468] sm:$0xff]
    %v324 = vld [vmem:[%s1 + $0x470] sm:$0xff]
    %v325 = vld [vmem:[%s1 + $0x478] sm:$0xff]
    %v326 = vld [vmem:[%s1 + $0x480] sm:$0xff]
    %v327 = vld [vmem:[%s1 + $0x488] sm:$0xff]
    %v328 = vld [vmem:[%s1 + $0x490] sm:$0xff]
    %v329 = vld [vmem:[%s1 + $0x498] sm:$0xff]
    %v330 = vld [vmem:[%s1 + $0x4a0] sm:$0xff]
    %v331 = vld [vmem:[%s1 + $0x4a8] sm:$0xff]
    %v332 = vld [vmem:[%s1 + $0x4b0] sm:$0xff]
    %v333 = vld [vmem:[%s1 + $0x4b8] sm:$0xff]
    %v334 = vld [vmem:[%s1 + $0x4c0] sm:$0xff]
    %v335 = vld [vmem:[%s1 + $0x4c8] sm:$0xff]
    %v336 = vld [vmem:[%s1 + $0x4d0] sm:$0xff]
    %v337 = vld [vmem:[%s1 + $0x4d8] sm:$0xff]
    %v338 = vld [vmem:[%s1 + $0x4e0] sm:$0xff]
    %v339 = vld [vmem:[%s1 + $0x4e8] sm:$0xff]
    %v340 = vld [vmem:[%s1 + $0x4f0] sm:$0xff]
    %v341 = vld [vmem:[%s1 + $0x4f8] sm:$0xff]
    %v342 = vld [vmem:[%s1 + $0x500] sm:$0xff]
    %v343 = vld [vmem:[%s1 + $0x508] sm:$0xff]
    %v344 = vld [vmem:[%s1 + $0x510] sm:$0xff]
    %v345 = vld [vmem:[%s1 + $0x518] sm:$0xff]
    %v346 = vld [vmem:[%s1 + $0x520] sm:$0xff]
    %v347 = vld [vmem:[%s1 + $0x528] sm:$0xff]
    %v348 = vld [vmem:[%s1 + $0x530] sm:$0xff]
    %v349 = vld [vmem:[%s1 + $0x538] sm:$0xff]
    %v350 = vld [vmem:[%s1 + $0x540] sm:$0xff]
    %v351 = vld [vmem:[%s1 + $0x548] sm:$0xff]
    %v352 = vld [vmem:[%s1 + $0x550] sm:$0xff]
    %v353 = vld [vmem:[%s1 + $0x558] sm:$0xff]
    %v354 = vld [vmem:[%s1 + $0x560] sm:$0xff]
    %v355 = vld [vmem:[%s1 + $0x568] sm:$0xff]
    %v356 = vld [vmem:[%s1 + $0x570] sm:$0xff]
    %v357 = vld [vmem:[%s1 + $0x578] sm:$0xff]
    %v358 = vld [vmem:[%s1 + $0x580] sm:$0xff]
    %v359 = vld [vmem:[%s1 + $0x588] sm:$0xff]
    %v360 = vld [vmem:[%s1 + $0x590] sm:$0xff]
    %v361 = vld [vmem:[%s1 + $0x598] sm:$0xff]
    %v362 = vld [vmem:[%s1 + $0x5a0] sm:$0xff]
    %v363 = vld [vmem:[%s1 + $0x5a8] sm:$0xff]
    %v364 = vld [vmem:[%s1 + $0x5b0] sm:$0xff]
    %v365 = vld [vmem:[%s1 + $0x5b8] sm:$0xff]
    %v366 = vld [vmem:[%s1 + $0x5c0] sm:$0xff]
    %v367 = vld [vmem:[%s1 + $0x5c8] sm:$0xff]
    %v368 = vld [vmem:[%s1 + $0x5d0] sm:$0xff]
    %v369 = vld [vmem:[%s1 + $0x5d8] sm:$0xff]
    %v370 = vld [vmem:[%s1 + $0x5e0] sm:$0xff]
    %v371 = vld [vmem:[%s1 + $0x5e8] sm:$0xff]
    %v372 = vld [vmem:[%s1 + $0x5f0] sm:$0xff]
    %v373 = vld [vmem:[%s1 + $0x5f8] sm:$0xff]
    %v374 = vld [vmem:[%s1 + $0x600] sm:$0xff]
    %v375 = vld [vmem:[%s1 + $0x608] sm:$0xff]
    %v376 = vld [vmem:[%s1 + $0x610] sm:$0xff]
    %v377 = vld [vmem:[%s1 + $0x618] sm:$0xff]
    %v378 = vld [vmem:[%s2] sm:$0xf]
    %v380 = vlaneseq
    %v381 = vshrl.u32 %v380, 7
    %v382 = vsub.s32 0, %v381
    %v383 = vrot.slane %v378, %v382
    %v384 = vlaneseq
    %v385 = vshrl.u32 %v384, 7
    %v386 = vsub.s32 1, %v385
    %v387 = vrot.slane %v378, %v386
    %v388 = vlaneseq
    %v389 = vshrl.u32 %v388, 7
    %v390 = vsub.s32 2, %v389
    %v391 = vrot.slane %v378, %v390
    %v392 = vlaneseq
    %v393 = vshrl.u32 %v392, 7
    %v394 = vsub.s32 3, %v393
    %v395 = vrot.slane %v378, %v394
    %v528 = vunpack.c.l.b16 %v54
    %v529 = vunpack.c.h.b16 %v54
    %v530 = vunpack.c.l.b16 %v55
    %v531 = vunpack.c.h.b16 %v55
    %v532 = vunpack.c.l.b16 %v56
    %v533 = vunpack.c.h.b16 %v56
    %v534 = vunpack.c.l.b16 %v57
    %v535 = vunpack.c.l.b16 %v58
    %v536 = vunpack.c.h.b16 %v58
    %v537 = vunpack.c.l.b16 %v59
    %v538 = vunpack.c.h.b16 %v59
    %v539 = vunpack.c.l.b16 %v60
    %v540 = vunpack.c.h.b16 %v60
    %v541 = vunpack.c.l.b16 %v61
    %v542 = vunpack.c.l.b16 %v62
    %v543 = vunpack.c.h.b16 %v62
    %v544 = vunpack.c.l.b16 %v63
    %v545 = vunpack.c.h.b16 %v63
    %v546 = vunpack.c.l.b16 %v64
    %v547 = vunpack.c.h.b16 %v64
    %v548 = vunpack.c.l.b16 %v65
    %v549 = vunpack.c.l.b16 %v66
    %v550 = vunpack.c.h.b16 %v66
    %v551 = vunpack.c.l.b16 %v67
    %v552 = vunpack.c.h.b16 %v67
    %v553 = vunpack.c.l.b16 %v68
    %v554 = vunpack.c.h.b16 %v68
    %v555 = vunpack.c.l.b16 %v69
    %v556 = vunpack.c.l.b16 %v70
    %v557 = vunpack.c.h.b16 %v70
    %v558 = vunpack.c.l.b16 %v71
    %v559 = vunpack.c.h.b16 %v71
    %v560 = vunpack.c.l.b16 %v72
    %v561 = vunpack.c.h.b16 %v72
    %v562 = vunpack.c.l.b16 %v73
    %v563 = vunpack.c.l.b16 %v74
    %v564 = vunpack.c.h.b16 %v74
    %v565 = vunpack.c.l.b16 %v75
    %v566 = vunpack.c.h.b16 %v75
    %v567 = vunpack.c.l.b16 %v76
    %v568 = vunpack.c.h.b16 %v76
    %v569 = vunpack.c.l.b16 %v77
    %v570 = vunpack.c.l.b16 %v78
    %v571 = vunpack.c.h.b16 %v78
    %v572 = vunpack.c.l.b16 %v79
    %v573 = vunpack.c.h.b16 %v79
    %v574 = vunpack.c.l.b16 %v80
    %v575 = vunpack.c.h.b16 %v80
    %v576 = vunpack.c.l.b16 %v81
    %v577 = vunpack.c.l.b16 %v82
    %v578 = vunpack.c.h.b16 %v82
    %v579 = vunpack.c.l.b16 %v83
    %v580 = vunpack.c.h.b16 %v83
    %v581 = vunpack.c.l.b16 %v84
    %v582 = vunpack.c.h.b16 %v84
    %v583 = vunpack.c.l.b16 %v85
    %v584 = vunpack.c.l.b16 %v86
    %v585 = vunpack.c.h.b16 %v86
    %v586 = vunpack.c.l.b16 %v87
    %v587 = vunpack.c.h.b16 %v87
    %v588 = vunpack.c.l.b16 %v88
    %v589 = vunpack.c.h.b16 %v88
    %v590 = vunpack.c.l.b16 %v89
    %v591 = vunpack.c.l.b16 %v90
    %v592 = vunpack.c.h.b16 %v90
    %v593 = vunpack.c.l.b16 %v91
    %v594 = vunpack.c.h.b16 %v91
    %v595 = vunpack.c.l.b16 %v92
    %v596 = vunpack.c.h.b16 %v92
    %v597 = vunpack.c.l.b16 %v93
    %v598 = vunpack.c.l.b16 %v94
    %v599 = vunpack.c.h.b16 %v94
    %v600 = vunpack.c.l.b16 %v95
    %v601 = vunpack.c.h.b16 %v95
    %v602 = vunpack.c.l.b16 %v96
    %v603 = vunpack.c.h.b16 %v96
    %v604 = vunpack.c.l.b16 %v97
    %v605 = vunpack.c.l.b16 %v98
    %v606 = vunpack.c.h.b16 %v98
    %v607 = vunpack.c.l.b16 %v99
    %v608 = vunpack.c.h.b16 %v99
    %v609 = vunpack.c.l.b16 %v100
    %v610 = vunpack.c.h.b16 %v100
    %v611 = vunpack.c.l.b16 %v101
    %v612 = vunpack.c.l.b16 %v102
    %v613 = vunpack.c.h.b16 %v102
    %v614 = vunpack.c.l.b16 %v103
    %v615 = vunpack.c.h.b16 %v103
    %v616 = vunpack.c.l.b16 %v104
    %v617 = vunpack.c.h.b16 %v104
    %v618 = vunpack.c.l.b16 %v105
    %v619 = vunpack.c.l.b16 %v106
    %v620 = vunpack.c.h.b16 %v106
    %v621 = vunpack.c.l.b16 %v107
    %v622 = vunpack.c.h.b16 %v107
    %v623 = vunpack.c.l.b16 %v108
    %v624 = vunpack.c.h.b16 %v108
    %v625 = vunpack.c.l.b16 %v109
    %v626 = vunpack.c.l.b16 %v110
    %v627 = vunpack.c.h.b16 %v110
    %v628 = vunpack.c.l.b16 %v111
    %v629 = vunpack.c.h.b16 %v111
    %v630 = vunpack.c.l.b16 %v112
    %v631 = vunpack.c.h.b16 %v112
    %v632 = vunpack.c.l.b16 %v113
    %v633 = vunpack.c.l.b16 %v114
    %v634 = vunpack.c.h.b16 %v114
    %v635 = vunpack.c.l.b16 %v115
    %v636 = vunpack.c.h.b16 %v115
    %v637 = vunpack.c.l.b16 %v116
    %v638 = vunpack.c.h.b16 %v116
    %v639 = vunpack.c.l.b16 %v117
    %v640 = vunpack.c.l.b16 %v118
    %v641 = vunpack.c.h.b16 %v118
    %v642 = vunpack.c.l.b16 %v119
    %v643 = vunpack.c.h.b16 %v119
    %v644 = vunpack.c.l.b16 %v120
    %v645 = vunpack.c.h.b16 %v120
    %v646 = vunpack.c.l.b16 %v121
    %v647 = vunpack.c.l.b16 %v122
    %v648 = vunpack.c.h.b16 %v122
    %v649 = vunpack.c.l.b16 %v123
    %v650 = vunpack.c.h.b16 %v123
    %v651 = vunpack.c.l.b16 %v124
    %v652 = vunpack.c.h.b16 %v124
    %v653 = vunpack.c.l.b16 %v125
    %v654 = vunpack.c.l.b16 %v126
    %v655 = vunpack.c.h.b16 %v126
    %v656 = vunpack.c.l.b16 %v127
    %v657 = vunpack.c.h.b16 %v127
    %v658 = vunpack.c.l.b16 %v128
    %v659 = vunpack.c.h.b16 %v128
    %v660 = vunpack.c.l.b16 %v129
    %v661 = vunpack.c.l.b16 %v130
    %v662 = vunpack.c.h.b16 %v130
    %v663 = vunpack.c.l.b16 %v131
    %v664 = vunpack.c.h.b16 %v131
    %v665 = vunpack.c.l.b16 %v132
    %v666 = vunpack.c.h.b16 %v132
    %v667 = vunpack.c.l.b16 %v133
    %v668 = vunpack.c.l.b16 %v134
    %v669 = vunpack.c.h.b16 %v134
    %v670 = vunpack.c.l.b16 %v135
    %v671 = vunpack.c.h.b16 %v135
    %v672 = vunpack.c.l.b16 %v136
    %v673 = vunpack.c.h.b16 %v136
    %v674 = vunpack.c.l.b16 %v137
    %v675 = vunpack.c.l.b16 %v138
    %v676 = vunpack.c.h.b16 %v138
    %v677 = vunpack.c.l.b16 %v139
    %v678 = vunpack.c.h.b16 %v139
    %v679 = vunpack.c.l.b16 %v140
    %v680 = vunpack.c.h.b16 %v140
    %v681 = vunpack.c.l.b16 %v141
    %v682 = vunpack.c.l.b16 %v142
    %v683 = vunpack.c.h.b16 %v142
    %v684 = vunpack.c.l.b16 %v143
    %v685 = vunpack.c.h.b16 %v143
    %v686 = vunpack.c.l.b16 %v144
    %v687 = vunpack.c.h.b16 %v144
    %v688 = vunpack.c.l.b16 %v145
    %v689 = vunpack.c.l.b16 %v146
    %v690 = vunpack.c.h.b16 %v146
    %v691 = vunpack.c.l.b16 %v147
    %v692 = vunpack.c.h.b16 %v147
    %v693 = vunpack.c.l.b16 %v148
    %v694 = vunpack.c.h.b16 %v148
    %v695 = vunpack.c.l.b16 %v149
    %v696 = vunpack.c.l.b16 %v150
    %v697 = vunpack.c.h.b16 %v150
    %v698 = vunpack.c.l.b16 %v151
    %v699 = vunpack.c.h.b16 %v151
    %v700 = vunpack.c.l.b16 %v152
    %v701 = vunpack.c.h.b16 %v152
    %v702 = vunpack.c.l.b16 %v153
    %v703 = vunpack.c.l.b16 %v154
    %v704 = vunpack.c.h.b16 %v154
    %v705 = vunpack.c.l.b16 %v155
    %v706 = vunpack.c.h.b16 %v155
    %v707 = vunpack.c.l.b16 %v156
    %v708 = vunpack.c.h.b16 %v156
    %v709 = vunpack.c.l.b16 %v157
    %v710 = vunpack.c.l.b16 %v158
    %v711 = vunpack.c.h.b16 %v158
    %v712 = vunpack.c.l.b16 %v159
    %v713 = vunpack.c.h.b16 %v159
    %v714 = vunpack.c.l.b16 %v160
    %v715 = vunpack.c.h.b16 %v160
    %v716 = vunpack.c.l.b16 %v161
    %v717 = vunpack.c.l.b16 %v162
    %v718 = vunpack.c.h.b16 %v162
    %v719 = vunpack.c.l.b16 %v163
    %v720 = vunpack.c.h.b16 %v163
    %v721 = vunpack.c.l.b16 %v164
    %v722 = vunpack.c.h.b16 %v164
    %v723 = vunpack.c.l.b16 %v165
    %v724 = vunpack.c.l.b16 %v166
    %v725 = vunpack.c.h.b16 %v166
    %v726 = vunpack.c.l.b16 %v167
    %v727 = vunpack.c.h.b16 %v167
    %v728 = vunpack.c.l.b16 %v168
    %v729 = vunpack.c.h.b16 %v168
    %v730 = vunpack.c.l.b16 %v169
    %v731 = vunpack.c.l.b16 %v170
    %v732 = vunpack.c.h.b16 %v170
    %v733 = vunpack.c.l.b16 %v171
    %v734 = vunpack.c.h.b16 %v171
    %v735 = vunpack.c.l.b16 %v172
    %v736 = vunpack.c.h.b16 %v172
    %v737 = vunpack.c.l.b16 %v173
    %v738 = vunpack.c.l.b16 %v174
    %v739 = vunpack.c.h.b16 %v174
    %v740 = vunpack.c.l.b16 %v175
    %v741 = vunpack.c.h.b16 %v175
    %v742 = vunpack.c.l.b16 %v176
    %v743 = vunpack.c.h.b16 %v176
    %v744 = vunpack.c.l.b16 %v177
    %v745 = vunpack.c.l.b16 %v178
    %v746 = vunpack.c.h.b16 %v178
    %v747 = vunpack.c.l.b16 %v179
    %v748 = vunpack.c.h.b16 %v179
    %v749 = vunpack.c.l.b16 %v180
    %v750 = vunpack.c.h.b16 %v180
    %v751 = vunpack.c.l.b16 %v181
    %v752 = vpack.c.b16 %v535, %v528
    %v753 = vpack.c.b16 %v536, %v529
    %v754 = vpack.c.b16 %v537, %v530
    %v755 = vpack.c.b16 %v538, %v531
    %v756 = vpack.c.b16 %v539, %v532
    %v757 = vpack.c.b16 %v540, %v533
    %v758 = vpack.c.b16 %v541, %v534
    %v759 = vpack.c.b16 %v549, %v542
    %v760 = vpack.c.b16 %v550, %v543
    %v761 = vpack.c.b16 %v551, %v544
    %v762 = vpack.c.b16 %v552, %v545
    %v763 = vpack.c.b16 %v553, %v546
    %v764 = vpack.c.b16 %v554, %v547
    %v765 = vpack.c.b16 %v555, %v548
    %v766 = vpack.c.b16 %v563, %v556
    %v767 = vpack.c.b16 %v564, %v557
    %v768 = vpack.c.b16 %v565, %v558
    %v769 = vpack.c.b16 %v566, %v559
    %v770 = vpack.c.b16 %v567, %v560
    %v771 = vpack.c.b16 %v568, %v561
    %v772 = vpack.c.b16 %v569, %v562
    %v773 = vpack.c.b16 %v577, %v570
    %v774 = vpack.c.b16 %v578, %v571
    %v775 = vpack.c.b16 %v579, %v572
    %v776 = vpack.c.b16 %v580, %v573
    %v777 = vpack.c.b16 %v581, %v574
    %v778 = vpack.c.b16 %v582, %v575
    %v779 = vpack.c.b16 %v583, %v576
    %v780 = vpack.c.b16 %v591, %v584
    %v781 = vpack.c.b16 %v592, %v585
    %v782 = vpack.c.b16 %v593, %v586
    %v783 = vpack.c.b16 %v594, %v587
    %v784 = vpack.c.b16 %v595, %v588
    %v785 = vpack.c.b16 %v596, %v589
    %v786 = vpack.c.b16 %v597, %v590
    %v787 = vpack.c.b16 %v605, %v598
    %v788 = vpack.c.b16 %v606, %v599
    %v789 = vpack.c.b16 %v607, %v600
    %v790 = vpack.c.b16 %v608, %v601
    %v791 = vpack.c.b16 %v609, %v602
    %v792 = vpack.c.b16 %v610, %v603
    %v793 = vpack.c.b16 %v611, %v604
    %v794 = vpack.c.b16 %v619, %v612
    %v795 = vpack.c.b16 %v620, %v613
    %v796 = vpack.c.b16 %v621, %v614
    %v797 = vpack.c.b16 %v622, %v615
    %v798 = vpack.c.b16 %v623, %v616
    %v799 = vpack.c.b16 %v624, %v617
    %v800 = vpack.c.b16 %v625, %v618
    %v801 = vpack.c.b16 %v633, %v626
    %v802 = vpack.c.b16 %v634, %v627
    %v803 = vpack.c.b16 %v635, %v628
    %v804 = vpack.c.b16 %v636, %v629
    %v805 = vpack.c.b16 %v637, %v630
    %v806 = vpack.c.b16 %v638, %v631
    %v807 = vpack.c.b16 %v639, %v632
    %v808 = vpack.c.b16 %v647, %v640
    %v809 = vpack.c.b16 %v648, %v641
    %v810 = vpack.c.b16 %v649, %v642
    %v811 = vpack.c.b16 %v650, %v643
    %v812 = vpack.c.b16 %v651, %v644
    %v813 = vpack.c.b16 %v652, %v645
    %v814 = vpack.c.b16 %v653, %v646
    %v815 = vpack.c.b16 %v661, %v654
    %v816 = vpack.c.b16 %v662, %v655
    %v817 = vpack.c.b16 %v663, %v656
    %v818 = vpack.c.b16 %v664, %v657
    %v819 = vpack.c.b16 %v665, %v658
    %v820 = vpack.c.b16 %v666, %v659
    %v821 = vpack.c.b16 %v667, %v660
    %v822 = vpack.c.b16 %v675, %v668
    %v823 = vpack.c.b16 %v676, %v669
    %v824 = vpack.c.b16 %v677, %v670
    %v825 = vpack.c.b16 %v678, %v671
    %v826 = vpack.c.b16 %v679, %v672
    %v827 = vpack.c.b16 %v680, %v673
    %v828 = vpack.c.b16 %v681, %v674
    %v829 = vpack.c.b16 %v689, %v682
    %v830 = vpack.c.b16 %v690, %v683
    %v831 = vpack.c.b16 %v691, %v684
    %v832 = vpack.c.b16 %v692, %v685
    %v833 = vpack.c.b16 %v693, %v686
    %v834 = vpack.c.b16 %v694, %v687
    %v835 = vpack.c.b16 %v695, %v688
    %v836 = vpack.c.b16 %v703, %v696
    %v837 = vpack.c.b16 %v704, %v697
    %v838 = vpack.c.b16 %v705, %v698
    %v839 = vpack.c.b16 %v706, %v699
    %v840 = vpack.c.b16 %v707, %v700
    %v841 = vpack.c.b16 %v708, %v701
    %v842 = vpack.c.b16 %v709, %v702
    %v843 = vpack.c.b16 %v717, %v710
    %v844 = vpack.c.b16 %v718, %v711
    %v845 = vpack.c.b16 %v719, %v712
    %v846 = vpack.c.b16 %v720, %v713
    %v847 = vpack.c.b16 %v721, %v714
    %v848 = vpack.c.b16 %v722, %v715
    %v849 = vpack.c.b16 %v723, %v716
    %v850 = vpack.c.b16 %v731, %v724
    %v851 = vpack.c.b16 %v732, %v725
    %v852 = vpack.c.b16 %v733, %v726
    %v853 = vpack.c.b16 %v734, %v727
    %v854 = vpack.c.b16 %v735, %v728
    %v855 = vpack.c.b16 %v736, %v729
    %v856 = vpack.c.b16 %v737, %v730
    %v857 = vpack.c.b16 %v745, %v738
    %v858 = vpack.c.b16 %v746, %v739
    %v859 = vpack.c.b16 %v747, %v740
    %v860 = vpack.c.b16 %v748, %v741
    %v861 = vpack.c.b16 %v749, %v742
    %v862 = vpack.c.b16 %v750, %v743
    %v863 = vpack.c.b16 %v751, %v744
    %v1156 = vunpack.c.l.b16 %v182
    %v1157 = vunpack.c.h.b16 %v182
    %v1158 = vunpack.c.l.b16 %v183
    %v1159 = vunpack.c.h.b16 %v183
    %v1160 = vunpack.c.l.b16 %v184
    %v1161 = vunpack.c.h.b16 %v184
    %v1162 = vunpack.c.l.b16 %v185
    %v1163 = vunpack.c.h.b16 %v185
    %v1164 = vunpack.c.l.b16 %v186
    %v1165 = vunpack.c.h.b16 %v186
    %v1166 = vunpack.c.l.b16 %v187
    %v1167 = vunpack.c.h.b16 %v187
    %v1168 = vunpack.c.l.b16 %v188
    %v1169 = vunpack.c.h.b16 %v188
    %v1170 = vunpack.c.l.b16 %v189
    %v1171 = vunpack.c.h.b16 %v189
    %v1172 = vunpack.c.l.b16 %v190
    %v1173 = vunpack.c.h.b16 %v190
    %v1174 = vunpack.c.l.b16 %v191
    %v1175 = vunpack.c.h.b16 %v191
    %v1176 = vunpack.c.l.b16 %v192
    %v1177 = vunpack.c.h.b16 %v192
    %v1178 = vunpack.c.l.b16 %v193
    %v1179 = vunpack.c.h.b16 %v193
    %v1180 = vunpack.c.l.b16 %v194
    %v1181 = vunpack.c.h.b16 %v194
    %v1182 = vunpack.c.l.b16 %v195
    %v1183 = vunpack.c.h.b16 %v195
    %v1184 = vunpack.c.l.b16 %v196
    %v1185 = vunpack.c.h.b16 %v196
    %v1186 = vunpack.c.l.b16 %v197
    %v1187 = vunpack.c.h.b16 %v197
    %v1188 = vunpack.c.l.b16 %v198
    %v1189 = vunpack.c.h.b16 %v198
    %v1190 = vunpack.c.l.b16 %v199
    %v1191 = vunpack.c.h.b16 %v199
    %v1192 = vunpack.c.l.b16 %v200
    %v1193 = vunpack.c.h.b16 %v200
    %v1194 = vunpack.c.l.b16 %v201
    %v1195 = vunpack.c.h.b16 %v201
    %v1196 = vunpack.c.l.b16 %v202
    %v1197 = vunpack.c.h.b16 %v202
    %v1198 = vunpack.c.l.b16 %v203
    %v1199 = vunpack.c.h.b16 %v203
    %v1200 = vunpack.c.l.b16 %v204
    %v1201 = vunpack.c.h.b16 %v204
    %v1202 = vunpack.c.l.b16 %v205
    %v1203 = vunpack.c.h.b16 %v205
    %v1204 = vunpack.c.l.b16 %v206
    %v1205 = vunpack.c.h.b16 %v206
    %v1206 = vunpack.c.l.b16 %v207
    %v1207 = vunpack.c.h.b16 %v207
    %v1208 = vunpack.c.l.b16 %v208
    %v1209 = vunpack.c.h.b16 %v208
    %v1210 = vunpack.c.l.b16 %v209
    %v1211 = vunpack.c.h.b16 %v209
    %v1212 = vunpack.c.l.b16 %v210
    %v1213 = vunpack.c.h.b16 %v210
    %v1214 = vunpack.c.l.b16 %v211
    %v1215 = vunpack.c.h.b16 %v211
    %v1216 = vunpack.c.l.b16 %v212
    %v1217 = vunpack.c.h.b16 %v212
    %v1218 = vunpack.c.l.b16 %v213
    %v1219 = vunpack.c.h.b16 %v213
    %v1220 = vunpack.c.l.b16 %v214
    %v1221 = vunpack.c.h.b16 %v214
    %v1222 = vunpack.c.l.b16 %v215
    %v1223 = vunpack.c.h.b16 %v215
    %v1224 = vunpack.c.l.b16 %v216
    %v1225 = vunpack.c.h.b16 %v216
    %v1226 = vunpack.c.l.b16 %v217
    %v1227 = vunpack.c.h.b16 %v217
    %v1228 = vunpack.c.l.b16 %v218
    %v1229 = vunpack.c.h.b16 %v218
    %v1230 = vunpack.c.l.b16 %v219
    %v1231 = vunpack.c.h.b16 %v219
    %v1232 = vunpack.c.l.b16 %v220
    %v1233 = vunpack.c.h.b16 %v220
    %v1234 = vunpack.c.l.b16 %v221
    %v1235 = vunpack.c.h.b16 %v221
    %v1236 = vunpack.c.l.b16 %v222
    %v1237 = vunpack.c.h.b16 %v222
    %v1238 = vunpack.c.l.b16 %v223
    %v1239 = vunpack.c.h.b16 %v223
    %v1240 = vunpack.c.l.b16 %v224
    %v1241 = vunpack.c.h.b16 %v224
    %v1242 = vunpack.c.l.b16 %v225
    %v1243 = vunpack.c.h.b16 %v225
    %v1244 = vunpack.c.l.b16 %v226
    %v1245 = vunpack.c.h.b16 %v226
    %v1246 = vunpack.c.l.b16 %v227
    %v1247 = vunpack.c.h.b16 %v227
    %v1248 = vunpack.c.l.b16 %v228
    %v1249 = vunpack.c.h.b16 %v228
    %v1250 = vunpack.c.l.b16 %v229
    %v1251 = vunpack.c.h.b16 %v229
    %v1252 = vunpack.c.l.b16 %v230
    %v1253 = vunpack.c.h.b16 %v230
    %v1254 = vunpack.c.l.b16 %v231
    %v1255 = vunpack.c.h.b16 %v231
    %v1256 = vunpack.c.l.b16 %v232
    %v1257 = vunpack.c.h.b16 %v232
    %v1258 = vunpack.c.l.b16 %v233
    %v1259 = vunpack.c.h.b16 %v233
    %v1260 = vunpack.c.l.b16 %v234
    %v1261 = vunpack.c.h.b16 %v234
    %v1262 = vunpack.c.l.b16 %v235
    %v1263 = vunpack.c.h.b16 %v235
    %v1264 = vunpack.c.l.b16 %v236
    %v1265 = vunpack.c.h.b16 %v236
    %v1266 = vunpack.c.l.b16 %v237
    %v1267 = vunpack.c.h.b16 %v237
    %v1268 = vunpack.c.l.b16 %v238
    %v1269 = vunpack.c.h.b16 %v238
    %v1270 = vunpack.c.l.b16 %v239
    %v1271 = vunpack.c.h.b16 %v239
    %v1272 = vunpack.c.l.b16 %v240
    %v1273 = vunpack.c.h.b16 %v240
    %v1274 = vunpack.c.l.b16 %v241
    %v1275 = vunpack.c.h.b16 %v241
    %v1276 = vunpack.c.l.b16 %v242
    %v1277 = vunpack.c.h.b16 %v242
    %v1278 = vunpack.c.l.b16 %v243
    %v1279 = vunpack.c.h.b16 %v243
    %v1280 = vunpack.c.l.b16 %v244
    %v1281 = vunpack.c.h.b16 %v244
    %v1282 = vunpack.c.l.b16 %v245
    %v1283 = vunpack.c.h.b16 %v245
    %v1284 = vunpack.c.l.b16 %v246
    %v1285 = vunpack.c.h.b16 %v246
    %v1286 = vunpack.c.l.b16 %v247
    %v1287 = vunpack.c.h.b16 %v247
    %v1288 = vunpack.c.l.b16 %v248
    %v1289 = vunpack.c.h.b16 %v248
    %v1290 = vunpack.c.l.b16 %v249
    %v1291 = vunpack.c.h.b16 %v249
    %v1292 = vunpack.c.l.b16 %v250
    %v1293 = vunpack.c.h.b16 %v250
    %v1294 = vunpack.c.l.b16 %v251
    %v1295 = vunpack.c.h.b16 %v251
    %v1296 = vunpack.c.l.b16 %v252
    %v1297 = vunpack.c.h.b16 %v252
    %v1298 = vunpack.c.l.b16 %v253
    %v1299 = vunpack.c.h.b16 %v253
    %v1300 = vunpack.c.l.b16 %v254
    %v1301 = vunpack.c.h.b16 %v254
    %v1302 = vunpack.c.l.b16 %v255
    %v1303 = vunpack.c.h.b16 %v255
    %v1304 = vunpack.c.l.b16 %v256
    %v1305 = vunpack.c.h.b16 %v256
    %v1306 = vunpack.c.l.b16 %v257
    %v1307 = vunpack.c.h.b16 %v257
    %v1308 = vunpack.c.l.b16 %v258
    %v1309 = vunpack.c.h.b16 %v258
    %v1310 = vunpack.c.l.b16 %v259
    %v1311 = vunpack.c.h.b16 %v259
    %v1312 = vunpack.c.l.b16 %v260
    %v1313 = vunpack.c.h.b16 %v260
    %v1314 = vunpack.c.l.b16 %v261
    %v1315 = vunpack.c.h.b16 %v261
    %v1316 = vunpack.c.l.b16 %v262
    %v1317 = vunpack.c.h.b16 %v262
    %v1318 = vunpack.c.l.b16 %v263
    %v1319 = vunpack.c.h.b16 %v263
    %v1320 = vunpack.c.l.b16 %v264
    %v1321 = vunpack.c.h.b16 %v264
    %v1322 = vunpack.c.l.b16 %v265
    %v1323 = vunpack.c.h.b16 %v265
    %v1324 = vunpack.c.l.b16 %v266
    %v1325 = vunpack.c.h.b16 %v266
    %v1326 = vunpack.c.l.b16 %v267
    %v1327 = vunpack.c.h.b16 %v267
    %v1328 = vunpack.c.l.b16 %v268
    %v1329 = vunpack.c.h.b16 %v268
    %v1330 = vunpack.c.l.b16 %v269
    %v1331 = vunpack.c.h.b16 %v269
    %v1332 = vunpack.c.l.b16 %v270
    %v1333 = vunpack.c.h.b16 %v270
    %v1334 = vunpack.c.l.b16 %v271
    %v1335 = vunpack.c.h.b16 %v271
    %v1336 = vunpack.c.l.b16 %v272
    %v1337 = vunpack.c.h.b16 %v272
    %v1338 = vunpack.c.l.b16 %v273
    %v1339 = vunpack.c.h.b16 %v273
    %v1340 = vunpack.c.l.b16 %v274
    %v1341 = vunpack.c.h.b16 %v274
    %v1342 = vunpack.c.l.b16 %v275
    %v1343 = vunpack.c.h.b16 %v275
    %v1344 = vunpack.c.l.b16 %v276
    %v1345 = vunpack.c.h.b16 %v276
    %v1346 = vunpack.c.l.b16 %v277
    %v1347 = vunpack.c.h.b16 %v277
    %v1348 = vunpack.c.l.b16 %v278
    %v1349 = vunpack.c.h.b16 %v278
    %v1350 = vunpack.c.l.b16 %v279
    %v1351 = vunpack.c.h.b16 %v279
    %v1352 = vunpack.c.l.b16 %v280
    %v1353 = vunpack.c.h.b16 %v280
    %v1354 = vunpack.c.l.b16 %v281
    %v1355 = vunpack.c.h.b16 %v281
    %v1356 = vunpack.c.l.b16 %v282
    %v1357 = vunpack.c.h.b16 %v282
    %v1358 = vunpack.c.l.b16 %v283
    %v1359 = vunpack.c.h.b16 %v283
    %v1360 = vunpack.c.l.b16 %v284
    %v1361 = vunpack.c.h.b16 %v284
    %v1362 = vunpack.c.l.b16 %v285
    %v1363 = vunpack.c.h.b16 %v285
    %v1364 = vunpack.c.l.b16 %v286
    %v1365 = vunpack.c.h.b16 %v286
    %v1366 = vunpack.c.l.b16 %v287
    %v1367 = vunpack.c.h.b16 %v287
    %v1368 = vunpack.c.l.b16 %v288
    %v1369 = vunpack.c.h.b16 %v288
    %v1370 = vunpack.c.l.b16 %v289
    %v1371 = vunpack.c.h.b16 %v289
    %v1372 = vunpack.c.l.b16 %v290
    %v1373 = vunpack.c.h.b16 %v290
    %v1374 = vunpack.c.l.b16 %v291
    %v1375 = vunpack.c.h.b16 %v291
    %v1376 = vunpack.c.l.b16 %v292
    %v1377 = vunpack.c.h.b16 %v292
    %v1378 = vunpack.c.l.b16 %v293
    %v1379 = vunpack.c.h.b16 %v293
    %v1380 = vunpack.c.l.b16 %v294
    %v1381 = vunpack.c.h.b16 %v294
    %v1382 = vunpack.c.l.b16 %v295
    %v1383 = vunpack.c.h.b16 %v295
    %v1384 = vunpack.c.l.b16 %v296
    %v1385 = vunpack.c.h.b16 %v296
    %v1386 = vunpack.c.l.b16 %v297
    %v1387 = vunpack.c.h.b16 %v297
    %v1388 = vunpack.c.l.b16 %v298
    %v1389 = vunpack.c.h.b16 %v298
    %v1390 = vunpack.c.l.b16 %v299
    %v1391 = vunpack.c.h.b16 %v299
    %v1392 = vunpack.c.l.b16 %v300
    %v1393 = vunpack.c.h.b16 %v300
    %v1394 = vunpack.c.l.b16 %v301
    %v1395 = vunpack.c.h.b16 %v301
    %v1396 = vunpack.c.l.b16 %v302
    %v1397 = vunpack.c.h.b16 %v302
    %v1398 = vunpack.c.l.b16 %v303
    %v1399 = vunpack.c.h.b16 %v303
    %v1400 = vunpack.c.l.b16 %v304
    %v1401 = vunpack.c.h.b16 %v304
    %v1402 = vunpack.c.l.b16 %v305
    %v1403 = vunpack.c.h.b16 %v305
    %v1404 = vunpack.c.l.b16 %v306
    %v1405 = vunpack.c.h.b16 %v306
    %v1406 = vunpack.c.l.b16 %v307
    %v1407 = vunpack.c.h.b16 %v307
    %v1408 = vunpack.c.l.b16 %v308
    %v1409 = vunpack.c.h.b16 %v308
    %v1410 = vunpack.c.l.b16 %v309
    %v1411 = vunpack.c.h.b16 %v309
    %v1412 = vunpack.c.l.b16 %v310
    %v1413 = vunpack.c.h.b16 %v310
    %v1414 = vunpack.c.l.b16 %v311
    %v1415 = vunpack.c.h.b16 %v311
    %v1416 = vunpack.c.l.b16 %v312
    %v1417 = vunpack.c.h.b16 %v312
    %v1418 = vunpack.c.l.b16 %v313
    %v1419 = vunpack.c.h.b16 %v313
    %v1420 = vunpack.c.l.b16 %v314
    %v1421 = vunpack.c.h.b16 %v314
    %v1422 = vunpack.c.l.b16 %v315
    %v1423 = vunpack.c.h.b16 %v315
    %v1424 = vunpack.c.l.b16 %v316
    %v1425 = vunpack.c.h.b16 %v316
    %v1426 = vunpack.c.l.b16 %v317
    %v1427 = vunpack.c.h.b16 %v317
    %v1428 = vunpack.c.l.b16 %v318
    %v1429 = vunpack.c.h.b16 %v318
    %v1430 = vunpack.c.l.b16 %v319
    %v1431 = vunpack.c.h.b16 %v319
    %v1432 = vunpack.c.l.b16 %v320
    %v1433 = vunpack.c.h.b16 %v320
    %v1434 = vunpack.c.l.b16 %v321
    %v1435 = vunpack.c.h.b16 %v321
    %v1436 = vunpack.c.l.b16 %v322
    %v1437 = vunpack.c.h.b16 %v322
    %v1438 = vunpack.c.l.b16 %v323
    %v1439 = vunpack.c.h.b16 %v323
    %v1440 = vunpack.c.l.b16 %v324
    %v1441 = vunpack.c.h.b16 %v324
    %v1442 = vunpack.c.l.b16 %v325
    %v1443 = vunpack.c.h.b16 %v325
    %v1444 = vunpack.c.l.b16 %v326
    %v1445 = vunpack.c.h.b16 %v326
    %v1446 = vunpack.c.l.b16 %v327
    %v1447 = vunpack.c.h.b16 %v327
    %v1448 = vunpack.c.l.b16 %v328
    %v1449 = vunpack.c.h.b16 %v328
    %v1450 = vunpack.c.l.b16 %v329
    %v1451 = vunpack.c.h.b16 %v329
    %v1452 = vunpack.c.l.b16 %v330
    %v1453 = vunpack.c.h.b16 %v330
    %v1454 = vunpack.c.l.b16 %v331
    %v1455 = vunpack.c.h.b16 %v331
    %v1456 = vunpack.c.l.b16 %v332
    %v1457 = vunpack.c.h.b16 %v332
    %v1458 = vunpack.c.l.b16 %v333
    %v1459 = vunpack.c.h.b16 %v333
    %v1460 = vunpack.c.l.b16 %v334
    %v1461 = vunpack.c.h.b16 %v334
    %v1462 = vunpack.c.l.b16 %v335
    %v1463 = vunpack.c.h.b16 %v335
    %v1464 = vunpack.c.l.b16 %v336
    %v1465 = vunpack.c.h.b16 %v336
    %v1466 = vunpack.c.l.b16 %v337
    %v1467 = vunpack.c.h.b16 %v337
    %v1468 = vunpack.c.l.b16 %v338
    %v1469 = vunpack.c.h.b16 %v338
    %v1470 = vunpack.c.l.b16 %v339
    %v1471 = vunpack.c.h.b16 %v339
    %v1472 = vunpack.c.l.b16 %v340
    %v1473 = vunpack.c.h.b16 %v340
    %v1474 = vunpack.c.l.b16 %v341
    %v1475 = vunpack.c.h.b16 %v341
    %v1476 = vunpack.c.l.b16 %v342
    %v1477 = vunpack.c.h.b16 %v342
    %v1478 = vunpack.c.l.b16 %v343
    %v1479 = vunpack.c.h.b16 %v343
    %v1480 = vunpack.c.l.b16 %v344
    %v1481 = vunpack.c.h.b16 %v344
    %v1482 = vunpack.c.l.b16 %v345
    %v1483 = vunpack.c.h.b16 %v345
    %v1484 = vunpack.c.l.b16 %v346
    %v1485 = vunpack.c.h.b16 %v346
    %v1486 = vunpack.c.l.b16 %v347
    %v1487 = vunpack.c.h.b16 %v347
    %v1488 = vunpack.c.l.b16 %v348
    %v1489 = vunpack.c.h.b16 %v348
    %v1490 = vunpack.c.l.b16 %v349
    %v1491 = vunpack.c.h.b16 %v349
    %v1492 = vunpack.c.l.b16 %v350
    %v1493 = vunpack.c.h.b16 %v350
    %v1494 = vunpack.c.l.b16 %v351
    %v1495 = vunpack.c.h.b16 %v351
    %v1496 = vunpack.c.l.b16 %v352
    %v1497 = vunpack.c.h.b16 %v352
    %v1498 = vunpack.c.l.b16 %v353
    %v1499 = vunpack.c.h.b16 %v353
    %v1500 = vunpack.c.l.b16 %v354
    %v1501 = vunpack.c.h.b16 %v354
    %v1502 = vunpack.c.l.b16 %v355
    %v1503 = vunpack.c.h.b16 %v355
    %v1504 = vunpack.c.l.b16 %v356
    %v1505 = vunpack.c.h.b16 %v356
    %v1506 = vunpack.c.l.b16 %v357
    %v1507 = vunpack.c.h.b16 %v357
    %v1508 = vunpack.c.l.b16 %v358
    %v1509 = vunpack.c.h.b16 %v358
    %v1510 = vunpack.c.l.b16 %v359
    %v1511 = vunpack.c.h.b16 %v359
    %v1512 = vunpack.c.l.b16 %v360
    %v1513 = vunpack.c.h.b16 %v360
    %v1514 = vunpack.c.l.b16 %v361
    %v1515 = vunpack.c.h.b16 %v361
    %v1516 = vunpack.c.l.b16 %v362
    %v1517 = vunpack.c.h.b16 %v362
    %v1518 = vunpack.c.l.b16 %v363
    %v1519 = vunpack.c.h.b16 %v363
    %v1520 = vunpack.c.l.b16 %v364
    %v1521 = vunpack.c.h.b16 %v364
    %v1522 = vunpack.c.l.b16 %v365
    %v1523 = vunpack.c.h.b16 %v365
    %v1524 = vunpack.c.l.b16 %v366
    %v1525 = vunpack.c.h.b16 %v366
    %v1526 = vunpack.c.l.b16 %v367
    %v1527 = vunpack.c.h.b16 %v367
    %v1528 = vunpack.c.l.b16 %v368
    %v1529 = vunpack.c.h.b16 %v368
    %v1530 = vunpack.c.l.b16 %v369
    %v1531 = vunpack.c.h.b16 %v369
    %v1532 = vunpack.c.l.b16 %v370
    %v1533 = vunpack.c.h.b16 %v370
    %v1534 = vunpack.c.l.b16 %v371
    %v1535 = vunpack.c.h.b16 %v371
    %v1536 = vunpack.c.l.b16 %v372
    %v1537 = vunpack.c.h.b16 %v372
    %v1538 = vunpack.c.l.b16 %v373
    %v1539 = vunpack.c.h.b16 %v373
    %v1540 = vunpack.c.l.b16 %v374
    %v1541 = vunpack.c.h.b16 %v374
    %v1542 = vunpack.c.l.b16 %v375
    %v1543 = vunpack.c.h.b16 %v375
    %v1544 = vunpack.c.l.b16 %v376
    %v1545 = vunpack.c.h.b16 %v376
    %v1546 = vunpack.c.l.b16 %v377
    %v1547 = vunpack.c.h.b16 %v377
    %v1548 = vpack.c.b16 %v1160, %v1156
    %v1549 = vpack.c.b16 %v1161, %v1157
    %v1550 = vpack.c.b16 %v1162, %v1158
    %v1551 = vpack.c.b16 %v1163, %v1159
    %v1552 = vpack.c.b16 %v1168, %v1164
    %v1553 = vpack.c.b16 %v1169, %v1165
    %v1554 = vpack.c.b16 %v1170, %v1166
    %v1555 = vpack.c.b16 %v1171, %v1167
    %v1556 = vpack.c.b16 %v1176, %v1172
    %v1557 = vpack.c.b16 %v1177, %v1173
    %v1558 = vpack.c.b16 %v1178, %v1174
    %v1559 = vpack.c.b16 %v1179, %v1175
    %v1560 = vpack.c.b16 %v1184, %v1180
    %v1561 = vpack.c.b16 %v1185, %v1181
    %v1562 = vpack.c.b16 %v1186, %v1182
    %v1563 = vpack.c.b16 %v1187, %v1183
    %v1564 = vpack.c.b16 %v1192, %v1188
    %v1565 = vpack.c.b16 %v1193, %v1189
    %v1566 = vpack.c.b16 %v1194, %v1190
    %v1567 = vpack.c.b16 %v1195, %v1191
    %v1568 = vpack.c.b16 %v1200, %v1196
    %v1569 = vpack.c.b16 %v1201, %v1197
    %v1570 = vpack.c.b16 %v1202, %v1198
    %v1571 = vpack.c.b16 %v1203, %v1199
    %v1572 = vpack.c.b16 %v1208, %v1204
    %v1573 = vpack.c.b16 %v1209, %v1205
    %v1574 = vpack.c.b16 %v1210, %v1206
    %v1575 = vpack.c.b16 %v1211, %v1207
    %v1576 = vpack.c.b16 %v1216, %v1212
    %v1577 = vpack.c.b16 %v1217, %v1213
    %v1578 = vpack.c.b16 %v1218, %v1214
    %v1579 = vpack.c.b16 %v1219, %v1215
    %v1580 = vpack.c.b16 %v1224, %v1220
    %v1581 = vpack.c.b16 %v1225, %v1221
    %v1582 = vpack.c.b16 %v1226, %v1222
    %v1583 = vpack.c.b16 %v1227, %v1223
    %v1584 = vpack.c.b16 %v1232, %v1228
    %v1585 = vpack.c.b16 %v1233, %v1229
    %v1586 = vpack.c.b16 %v1234, %v1230
    %v1587 = vpack.c.b16 %v1235, %v1231
    %v1588 = vpack.c.b16 %v1240, %v1236
    %v1589 = vpack.c.b16 %v1241, %v1237
    %v1590 = vpack.c.b16 %v1242, %v1238
    %v1591 = vpack.c.b16 %v1243, %v1239
    %v1592 = vpack.c.b16 %v1248, %v1244
    %v1593 = vpack.c.b16 %v1249, %v1245
    %v1594 = vpack.c.b16 %v1250, %v1246
    %v1595 = vpack.c.b16 %v1251, %v1247
    %v1596 = vpack.c.b16 %v1256, %v1252
    %v1597 = vpack.c.b16 %v1257, %v1253
    %v1598 = vpack.c.b16 %v1258, %v1254
    %v1599 = vpack.c.b16 %v1259, %v1255
    %v1600 = vpack.c.b16 %v1264, %v1260
    %v1601 = vpack.c.b16 %v1265, %v1261
    %v1602 = vpack.c.b16 %v1266, %v1262
    %v1603 = vpack.c.b16 %v1267, %v1263
    %v1604 = vpack.c.b16 %v1272, %v1268
    %v1605 = vpack.c.b16 %v1273, %v1269
    %v1606 = vpack.c.b16 %v1274, %v1270
    %v1607 = vpack.c.b16 %v1275, %v1271
    %v1608 = vpack.c.b16 %v1280, %v1276
    %v1609 = vpack.c.b16 %v1281, %v1277
    %v1610 = vpack.c.b16 %v1282, %v1278
    %v1611 = vpack.c.b16 %v1283, %v1279
    %v1612 = vpack.c.b16 %v1288, %v1284
    %v1613 = vpack.c.b16 %v1289, %v1285
    %v1614 = vpack.c.b16 %v1290, %v1286
    %v1615 = vpack.c.b16 %v1291, %v1287
    %v1616 = vpack.c.b16 %v1296, %v1292
    %v1617 = vpack.c.b16 %v1297, %v1293
    %v1618 = vpack.c.b16 %v1298, %v1294
    %v1619 = vpack.c.b16 %v1299, %v1295
    %v1620 = vpack.c.b16 %v1304, %v1300
    %v1621 = vpack.c.b16 %v1305, %v1301
    %v1622 = vpack.c.b16 %v1306, %v1302
    %v1623 = vpack.c.b16 %v1307, %v1303
    %v1624 = vpack.c.b16 %v1312, %v1308
    %v1625 = vpack.c.b16 %v1313, %v1309
    %v1626 = vpack.c.b16 %v1314, %v1310
    %v1627 = vpack.c.b16 %v1315, %v1311
    %v1628 = vpack.c.b16 %v1320, %v1316
    %v1629 = vpack.c.b16 %v1321, %v1317
    %v1630 = vpack.c.b16 %v1322, %v1318
    %v1631 = vpack.c.b16 %v1323, %v1319
    %v1632 = vpack.c.b16 %v1328, %v1324
    %v1633 = vpack.c.b16 %v1329, %v1325
    %v1634 = vpack.c.b16 %v1330, %v1326
    %v1635 = vpack.c.b16 %v1331, %v1327
    %v1636 = vpack.c.b16 %v1336, %v1332
    %v1637 = vpack.c.b16 %v1337, %v1333
    %v1638 = vpack.c.b16 %v1338, %v1334
    %v1639 = vpack.c.b16 %v1339, %v1335
    %v1640 = vpack.c.b16 %v1344, %v1340
    %v1641 = vpack.c.b16 %v1345, %v1341
    %v1642 = vpack.c.b16 %v1346, %v1342
    %v1643 = vpack.c.b16 %v1347, %v1343
    %v1644 = vpack.c.b16 %v1352, %v1348
    %v1645 = vpack.c.b16 %v1353, %v1349
    %v1646 = vpack.c.b16 %v1354, %v1350
    %v1647 = vpack.c.b16 %v1355, %v1351
    %v1648 = vpack.c.b16 %v1360, %v1356
    %v1649 = vpack.c.b16 %v1361, %v1357
    %v1650 = vpack.c.b16 %v1362, %v1358
    %v1651 = vpack.c.b16 %v1363, %v1359
    %v1652 = vpack.c.b16 %v1368, %v1364
    %v1653 = vpack.c.b16 %v1369, %v1365
    %v1654 = vpack.c.b16 %v1370, %v1366
    %v1655 = vpack.c.b16 %v1371, %v1367
    %v1656 = vpack.c.b16 %v1376, %v1372
    %v1657 = vpack.c.b16 %v1377, %v1373
    %v1658 = vpack.c.b16 %v1378, %v1374
    %v1659 = vpack.c.b16 %v1379, %v1375
    %v1660 = vpack.c.b16 %v1384, %v1380
    %v1661 = vpack.c.b16 %v1385, %v1381
    %v1662 = vpack.c.b16 %v1386, %v1382
    %v1663 = vpack.c.b16 %v1387, %v1383
    %v1664 = vpack.c.b16 %v1392, %v1388
    %v1665 = vpack.c.b16 %v1393, %v1389
    %v1666 = vpack.c.b16 %v1394, %v1390
    %v1667 = vpack.c.b16 %v1395, %v1391
    %v1668 = vpack.c.b16 %v1400, %v1396
    %v1669 = vpack.c.b16 %v1401, %v1397
    %v1670 = vpack.c.b16 %v1402, %v1398
    %v1671 = vpack.c.b16 %v1403, %v1399
    %v1672 = vpack.c.b16 %v1408, %v1404
    %v1673 = vpack.c.b16 %v1409, %v1405
    %v1674 = vpack.c.b16 %v1410, %v1406
    %v1675 = vpack.c.b16 %v1411, %v1407
    %v1676 = vpack.c.b16 %v1416, %v1412
    %v1677 = vpack.c.b16 %v1417, %v1413
    %v1678 = vpack.c.b16 %v1418, %v1414
    %v1679 = vpack.c.b16 %v1419, %v1415
    %v1680 = vpack.c.b16 %v1424, %v1420
    %v1681 = vpack.c.b16 %v1425, %v1421
    %v1682 = vpack.c.b16 %v1426, %v1422
    %v1683 = vpack.c.b16 %v1427, %v1423
    %v1684 = vpack.c.b16 %v1432, %v1428
    %v1685 = vpack.c.b16 %v1433, %v1429
    %v1686 = vpack.c.b16 %v1434, %v1430
    %v1687 = vpack.c.b16 %v1435, %v1431
    %v1688 = vpack.c.b16 %v1440, %v1436
    %v1689 = vpack.c.b16 %v1441, %v1437
    %v1690 = vpack.c.b16 %v1442, %v1438
    %v1691 = vpack.c.b16 %v1443, %v1439
    %v1692 = vpack.c.b16 %v1448, %v1444
    %v1693 = vpack.c.b16 %v1449, %v1445
    %v1694 = vpack.c.b16 %v1450, %v1446
    %v1695 = vpack.c.b16 %v1451, %v1447
    %v1696 = vpack.c.b16 %v1456, %v1452
    %v1697 = vpack.c.b16 %v1457, %v1453
    %v1698 = vpack.c.b16 %v1458, %v1454
    %v1699 = vpack.c.b16 %v1459, %v1455
    %v1700 = vpack.c.b16 %v1464, %v1460
    %v1701 = vpack.c.b16 %v1465, %v1461
    %v1702 = vpack.c.b16 %v1466, %v1462
    %v1703 = vpack.c.b16 %v1467, %v1463
    %v1704 = vpack.c.b16 %v1472, %v1468
    %v1705 = vpack.c.b16 %v1473, %v1469
    %v1706 = vpack.c.b16 %v1474, %v1470
    %v1707 = vpack.c.b16 %v1475, %v1471
    %v1708 = vpack.c.b16 %v1480, %v1476
    %v1709 = vpack.c.b16 %v1481, %v1477
    %v1710 = vpack.c.b16 %v1482, %v1478
    %v1711 = vpack.c.b16 %v1483, %v1479
    %v1712 = vpack.c.b16 %v1488, %v1484
    %v1713 = vpack.c.b16 %v1489, %v1485
    %v1714 = vpack.c.b16 %v1490, %v1486
    %v1715 = vpack.c.b16 %v1491, %v1487
    %v1716 = vpack.c.b16 %v1496, %v1492
    %v1717 = vpack.c.b16 %v1497, %v1493
    %v1718 = vpack.c.b16 %v1498, %v1494
    %v1719 = vpack.c.b16 %v1499, %v1495
    %v1720 = vpack.c.b16 %v1504, %v1500
    %v1721 = vpack.c.b16 %v1505, %v1501
    %v1722 = vpack.c.b16 %v1506, %v1502
    %v1723 = vpack.c.b16 %v1507, %v1503
    %v1724 = vpack.c.b16 %v1512, %v1508
    %v1725 = vpack.c.b16 %v1513, %v1509
    %v1726 = vpack.c.b16 %v1514, %v1510
    %v1727 = vpack.c.b16 %v1515, %v1511
    %v1728 = vpack.c.b16 %v1520, %v1516
    %v1729 = vpack.c.b16 %v1521, %v1517
    %v1730 = vpack.c.b16 %v1522, %v1518
    %v1731 = vpack.c.b16 %v1523, %v1519
    %v1732 = vpack.c.b16 %v1528, %v1524
    %v1733 = vpack.c.b16 %v1529, %v1525
    %v1734 = vpack.c.b16 %v1530, %v1526
    %v1735 = vpack.c.b16 %v1531, %v1527
    %v1736 = vpack.c.b16 %v1536, %v1532
    %v1737 = vpack.c.b16 %v1537, %v1533
    %v1738 = vpack.c.b16 %v1538, %v1534
    %v1739 = vpack.c.b16 %v1539, %v1535
    %v1740 = vpack.c.b16 %v1544, %v1540
    %v1741 = vpack.c.b16 %v1545, %v1541
    %v1742 = vpack.c.b16 %v1546, %v1542
    %v1743 = vpack.c.b16 %v1547, %v1543
    %vm1940 = vcmask 130048
    %v1942 = vsel %vm1940, %v758, 0
    %v1945 = vsel %vm1940, %v765, 0
    %v1948 = vsel %vm1940, %v772, 0
    %v1951 = vsel %vm1940, %v779, 0
    %v1954 = vsel %vm1940, %v786, 0
    %v1957 = vsel %vm1940, %v793, 0
    %v1960 = vsel %vm1940, %v800, 0
    %v1963 = vsel %vm1940, %v807, 0
    %v1966 = vsel %vm1940, %v814, 0
    %v1969 = vsel %vm1940, %v821, 0
    %v1972 = vsel %vm1940, %v828, 0
    %v1975 = vsel %vm1940, %v835, 0
    %v1978 = vsel %vm1940, %v842, 0
    %v1981 = vsel %vm1940, %v849, 0
    %v1984 = vsel %vm1940, %v856, 0
    %v1987 = vsel %vm1940, %v863, 0
    %1989 = vmatprep.subr.bf16.mxu0 %v1549
    %1990 = vmatpush1.bf16.msra.mxu0 %v1548
    %1991 = vmatprep.subr.bf16.mxu0 %v1553
    %1992 = vmatpush1.bf16.msra.mxu0 %v1552
    %1993 = vmatprep.subr.bf16.mxu0 %v1557
    %1994 = vmatpush1.bf16.msra.mxu0 %v1556
    %1995 = vmatprep.subr.bf16.mxu0 %v1561
    %1996 = vmatpush1.bf16.msra.mxu0 %v1560
    %1997 = vmatprep.subr.bf16.mxu0 %v1565
    %1998 = vmatpush1.bf16.msra.mxu0 %v1564
    %1999 = vmatprep.subr.bf16.mxu0 %v1569
    %2000 = vmatpush1.bf16.msra.mxu0 %v1568
    %2001 = vmatprep.subr.bf16.mxu0 %v1573
    %2002 = vmatpush1.bf16.msra.mxu0 %v1572
    %2003 = vmatprep.subr.bf16.mxu0 %v1577
    %2004 = vmatpush1.bf16.msra.mxu0 %v1576
    %2005 = vmatprep.subr.bf16.mxu0 %v1581
    %2006 = vmatpush1.bf16.msra.mxu0 %v1580
    %2007 = vmatprep.subr.bf16.mxu0 %v1585
    %2008 = vmatpush1.bf16.msra.mxu0 %v1584
    %2009 = vmatprep.subr.bf16.mxu0 %v1589
    %2010 = vmatpush1.bf16.msra.mxu0 %v1588
    %2011 = vmatprep.subr.bf16.mxu0 %v1593
    %2012 = vmatpush1.bf16.msra.mxu0 %v1592
    %2013 = vmatprep.subr.bf16.mxu0 %v1597
    %2014 = vmatpush1.bf16.msra.mxu0 %v1596
    %2015 = vmatprep.subr.bf16.mxu0 %v1601
    %2016 = vmatpush1.bf16.msra.mxu0 %v1600
    %2017 = vmatprep.subr.bf16.mxu0 %v1605
    %2018 = vmatpush1.bf16.msra.mxu0 %v1604
    %2019 = vmatprep.subr.bf16.mxu0 %v1609
    %2020 = vmatpush1.bf16.msra.mxu0 %v1608
    %2021 = vmatprep.mubr.bf16.mxu0 %v753
    %2022 = vmatmul.mubr.bf16.gmra.mrb[0].mxu0 %v752
    %v2023 = vpop.f32.mrb[0].mxu0
    %v2024 = vadd.f32 %v383, %v2023
    %v2025 = vpop.f32.mrb[0].mxu0
    %v2026 = vadd.f32 %v387, %v2025
    %v2027 = vpop.f32.mrb[0].mxu0
    %v2028 = vadd.f32 %v383, %v2027
    %v2029 = vpop.f32.mrb[0].mxu0
    %v2030 = vadd.f32 %v387, %v2029
    %2031 = vmatprep.mubr.bf16.mxu0 %v760
    %2032 = vmatmul.mubr.bf16.gmra.mrb[0].mxu0 %v759
    %v2033 = vpop.f32.mrb[0].mxu0
    %v2034 = vadd.f32 %v383, %v2033
    %v2035 = vpop.f32.mrb[0].mxu0
    %v2036 = vadd.f32 %v387, %v2035
    %v2037 = vpop.f32.mrb[0].mxu0
    %v2038 = vadd.f32 %v383, %v2037
    %v2039 = vpop.f32.mrb[0].mxu0
    %v2040 = vadd.f32 %v387, %v2039
    %2041 = vmatprep.mubr.bf16.mxu0 %v767
    %2042 = vmatmul.mubr.bf16.gmra.mrb[0].mxu0 %v766
    %v2043 = vpop.f32.mrb[0].mxu0
    %v2044 = vadd.f32 %v383, %v2043
    %v2045 = vpop.f32.mrb[0].mxu0
    %v2046 = vadd.f32 %v387, %v2045
    %v2047 = vpop.f32.mrb[0].mxu0
    %v2048 = vadd.f32 %v383, %v2047
    %v2049 = vpop.f32.mrb[0].mxu0
    %v2050 = vadd.f32 %v387, %v2049
    %2051 = vmatprep.mubr.bf16.mxu0 %v774
    %2052 = vmatmul.mubr.bf16.gmra.mrb[0].mxu0 %v773
    %v2053 = vpop.f32.mrb[0].mxu0
    %v2054 = vadd.f32 %v383, %v2053
    %v2055 = vpop.f32.mrb[0].mxu0
    %v2056 = vadd.f32 %v387, %v2055
    %v2057 = vpop.f32.mrb[0].mxu0
    %v2058 = vadd.f32 %v383, %v2057
    %v2059 = vpop.f32.mrb[0].mxu0
    %v2060 = vadd.f32 %v387, %v2059
    %2061 = vmatprep.mubr.bf16.mxu0 %v781
    %2062 = vmatmul.mubr.bf16.gmra.mrb[0].mxu0 %v780
    %v2063 = vpop.f32.mrb[0].mxu0
    %v2064 = vadd.f32 %v383, %v2063
    %v2065 = vpop.f32.mrb[0].mxu0
    %v2066 = vadd.f32 %v387, %v2065
    %v2067 = vpop.f32.mrb[0].mxu0
    %v2068 = vadd.f32 %v383, %v2067
    %v2069 = vpop.f32.mrb[0].mxu0
    %v2070 = vadd.f32 %v387, %v2069
    %2071 = vmatprep.mubr.bf16.mxu0 %v788
    %2072 = vmatmul.mubr.bf16.gmra.mrb[0].mxu0 %v787
    %v2073 = vpop.f32.mrb[0].mxu0
    %v2074 = vadd.f32 %v383, %v2073
    %v2075 = vpop.f32.mrb[0].mxu0
    %v2076 = vadd.f32 %v387, %v2075
    %v2077 = vpop.f32.mrb[0].mxu0
    %v2078 = vadd.f32 %v383, %v2077
    %v2079 = vpop.f32.mrb[0].mxu0
    %v2080 = vadd.f32 %v387, %v2079
    %2081 = vmatprep.mubr.bf16.mxu0 %v795
    %2082 = vmatmul.mubr.bf16.gmra.mrb[0].mxu0 %v794
    %v2083 = vpop.f32.mrb[0].mxu0
    %v2084 = vadd.f32 %v383, %v2083
    %v2085 = vpop.f32.mrb[0].mxu0
    %v2086 = vadd.f32 %v387, %v2085
    %v2087 = vpop.f32.mrb[0].mxu0
    %v2088 = vadd.f32 %v383, %v2087
    %v2089 = vpop.f32.mrb[0].mxu0
    %v2090 = vadd.f32 %v387, %v2089
    %2091 = vmatprep.mubr.bf16.mxu0 %v802
    %2092 = vmatmul.mubr.bf16.gmra.mrb[0].mxu0 %v801
    %v2093 = vpop.f32.mrb[0].mxu0
    %v2094 = vadd.f32 %v383, %v2093
    %v2095 = vpop.f32.mrb[0].mxu0
    %v2096 = vadd.f32 %v387, %v2095
    %v2097 = vpop.f32.mrb[0].mxu0
    %v2098 = vadd.f32 %v383, %v2097
    %v2099 = vpop.f32.mrb[0].mxu0
    %v2100 = vadd.f32 %v387, %v2099
    %2101 = vmatprep.mubr.bf16.mxu0 %v809
    %2102 = vmatmul.mubr.bf16.gmra.mrb[0].mxu0 %v808
    %v2103 = vpop.f32.mrb[0].mxu0
    %v2104 = vadd.f32 %v383, %v2103
    %v2105 = vpop.f32.mrb[0].mxu0
    %v2106 = vadd.f32 %v387, %v2105
    %v2107 = vpop.f32.mrb[0].mxu0
    %v2108 = vadd.f32 %v383, %v2107
    %v2109 = vpop.f32.mrb[0].mxu0
    %v2110 = vadd.f32 %v387, %v2109
    %2111 = vmatprep.mubr.bf16.mxu0 %v816
    %2112 = vmatmul.mubr.bf16.gmra.mrb[0].mxu0 %v815
    %v2113 = vpop.f32.mrb[0].mxu0
    %v2114 = vadd.f32 %v383, %v2113
    %v2115 = vpop.f32.mrb[0].mxu0
    %v2116 = vadd.f32 %v387, %v2115
    %v2117 = vpop.f32.mrb[0].mxu0
    %v2118 = vadd.f32 %v383, %v2117
    %v2119 = vpop.f32.mrb[0].mxu0
    %v2120 = vadd.f32 %v387, %v2119
    %2121 = vmatprep.mubr.bf16.mxu0 %v823
    %2122 = vmatmul.mubr.bf16.gmra.mrb[0].mxu0 %v822
    %v2123 = vpop.f32.mrb[0].mxu0
    %v2124 = vadd.f32 %v383, %v2123
    %v2125 = vpop.f32.mrb[0].mxu0
    %v2126 = vadd.f32 %v387, %v2125
    %v2127 = vpop.f32.mrb[0].mxu0
    %v2128 = vadd.f32 %v383, %v2127
    %v2129 = vpop.f32.mrb[0].mxu0
    %v2130 = vadd.f32 %v387, %v2129
    %2131 = vmatprep.mubr.bf16.mxu0 %v830
    %2132 = vmatmul.mubr.bf16.gmra.mrb[0].mxu0 %v829
    %v2133 = vpop.f32.mrb[0].mxu0
    %v2134 = vadd.f32 %v383, %v2133
    %v2135 = vpop.f32.mrb[0].mxu0
    %v2136 = vadd.f32 %v387, %v2135
    %v2137 = vpop.f32.mrb[0].mxu0
    %v2138 = vadd.f32 %v383, %v2137
    %v2139 = vpop.f32.mrb[0].mxu0
    %v2140 = vadd.f32 %v387, %v2139
    %2141 = vmatprep.mubr.bf16.mxu0 %v837
    %2142 = vmatmul.mubr.bf16.gmra.mrb[0].mxu0 %v836
    %v2143 = vpop.f32.mrb[0].mxu0
    %v2144 = vadd.f32 %v383, %v2143
    %v2145 = vpop.f32.mrb[0].mxu0
    %v2146 = vadd.f32 %v387, %v2145
    %v2147 = vpop.f32.mrb[0].mxu0
    %v2148 = vadd.f32 %v383, %v2147
    %v2149 = vpop.f32.mrb[0].mxu0
    %v2150 = vadd.f32 %v387, %v2149
    %2151 = vmatprep.mubr.bf16.mxu0 %v844
    %2152 = vmatmul.mubr.bf16.gmra.mrb[0].mxu0 %v843
    %v2153 = vpop.f32.mrb[0].mxu0
    %v2154 = vadd.f32 %v383, %v2153
    %v2155 = vpop.f32.mrb[0].mxu0
    %v2156 = vadd.f32 %v387, %v2155
    %v2157 = vpop.f32.mrb[0].mxu0
    %v2158 = vadd.f32 %v383, %v2157
    %v2159 = vpop.f32.mrb[0].mxu0
    %v2160 = vadd.f32 %v387, %v2159
    %2161 = vmatprep.mubr.bf16.mxu0 %v851
    %2162 = vmatmul.mubr.bf16.gmra.mrb[0].mxu0 %v850
    %v2163 = vpop.f32.mrb[0].mxu0
    %v2164 = vadd.f32 %v383, %v2163
    %v2165 = vpop.f32.mrb[0].mxu0
    %v2166 = vadd.f32 %v387, %v2165
    %v2167 = vpop.f32.mrb[0].mxu0
    %v2168 = vadd.f32 %v383, %v2167
    %v2169 = vpop.f32.mrb[0].mxu0
    %v2170 = vadd.f32 %v387, %v2169
    %2171 = vmatprep.mubr.bf16.mxu0 %v858
    %2172 = vmatmul.mubr.bf16.gmra.mrb[0].mxu0 %v857
    %v2173 = vpop.f32.mrb[0].mxu0
    %v2174 = vadd.f32 %v383, %v2173
    %v2175 = vpop.f32.mrb[0].mxu0
    %v2176 = vadd.f32 %v387, %v2175
    %v2177 = vpop.f32.mrb[0].mxu0
    %v2178 = vadd.f32 %v383, %v2177
    %v2179 = vpop.f32.mrb[0].mxu0
    %v2180 = vadd.f32 %v387, %v2179
    %2181 = vdwg.mxu0
    %2182 = vmatprep.subr.bf16.mxu0 %v1613
    %2183 = vmatpush1.bf16.msra.mxu0 %v1612
    %2184 = vmatprep.subr.bf16.mxu0 %v1617
    %2185 = vmatpush1.bf16.msra.mxu0 %v1616
    %2186 = vmatprep.subr.bf16.mxu0 %v1621
    %2187 = vmatpush1.bf16.msra.mxu0 %v1620
    %2188 = vmatprep.subr.bf16.mxu0 %v1625
    %2189 = vmatpush1.bf16.msra.mxu0 %v1624
    %2190 = vmatprep.subr.bf16.mxu0 %v1629
    %2191 = vmatpush1.bf16.msra.mxu0 %v1628
    %2192 = vmatprep.subr.bf16.mxu0 %v1633
    %2193 = vmatpush1.bf16.msra.mxu0 %v1632
    %2194 = vmatprep.subr.bf16.mxu0 %v1637
    %2195 = vmatpush1.bf16.msra.mxu0 %v1636
    %2196 = vmatprep.subr.bf16.mxu0 %v1641
    %2197 = vmatpush1.bf16.msra.mxu0 %v1640
    %2198 = vmatprep.subr.bf16.mxu0 %v1645
    %2199 = vmatpush1.bf16.msra.mxu0 %v1644
    %2200 = vmatprep.subr.bf16.mxu0 %v1649
    %2201 = vmatpush1.bf16.msra.mxu0 %v1648
    %2202 = vmatprep.subr.bf16.mxu0 %v1653
    %2203 = vmatpush1.bf16.msra.mxu0 %v1652
    %2204 = vmatprep.subr.bf16.mxu0 %v1657
    %2205 = vmatpush1.bf16.msra.mxu0 %v1656
    %2206 = vmatprep.subr.bf16.mxu0 %v1661
    %2207 = vmatpush1.bf16.msra.mxu0 %v1660
    %2208 = vmatprep.subr.bf16.mxu0 %v1665
    %2209 = vmatpush1.bf16.msra.mxu0 %v1664
    %2210 = vmatprep.subr.bf16.mxu0 %v1669
    %2211 = vmatpush1.bf16.msra.mxu0 %v1668
    %2212 = vmatprep.subr.bf16.mxu0 %v1673
    %2213 = vmatpush1.bf16.msra.mxu0 %v1672
    %2214 = vmatprep.mubr.bf16.mxu0 %v755
    %2215 = vmatmul.mubr.bf16.gmra.mrb[0].mxu0 %v754
    %v2216 = vpop.f32.mrb[0].mxu0
    %v2217 = vadd.f32 %v2024, %v2216
    %v2218 = vpop.f32.mrb[0].mxu0
    %v2219 = vadd.f32 %v2026, %v2218
    %v2220 = vpop.f32.mrb[0].mxu0
    %v2221 = vadd.f32 %v2028, %v2220
    %v2222 = vpop.f32.mrb[0].mxu0
    %v2223 = vadd.f32 %v2030, %v2222
    %2224 = vmatprep.mubr.bf16.mxu0 %v762
    %2225 = vmatmul.mubr.bf16.gmra.mrb[0].mxu0 %v761
    %v2226 = vpop.f32.mrb[0].mxu0
    %v2227 = vadd.f32 %v2034, %v2226
    %v2228 = vpop.f32.mrb[0].mxu0
    %v2229 = vadd.f32 %v2036, %v2228
    %v2230 = vpop.f32.mrb[0].mxu0
    %v2231 = vadd.f32 %v2038, %v2230
    %v2232 = vpop.f32.mrb[0].mxu0
    %v2233 = vadd.f32 %v2040, %v2232
    %2234 = vmatprep.mubr.bf16.mxu0 %v769
    %2235 = vmatmul.mubr.bf16.gmra.mrb[0].mxu0 %v768
    %v2236 = vpop.f32.mrb[0].mxu0
    %v2237 = vadd.f32 %v2044, %v2236
    %v2238 = vpop.f32.mrb[0].mxu0
    %v2239 = vadd.f32 %v2046, %v2238
    %v2240 = vpop.f32.mrb[0].mxu0
    %v2241 = vadd.f32 %v2048, %v2240
    %v2242 = vpop.f32.mrb[0].mxu0
    %v2243 = vadd.f32 %v2050, %v2242
    %2244 = vmatprep.mubr.bf16.mxu0 %v776
    %2245 = vmatmul.mubr.bf16.gmra.mrb[0].mxu0 %v775
    %v2246 = vpop.f32.mrb[0].mxu0
    %v2247 = vadd.f32 %v2054, %v2246
    %v2248 = vpop.f32.mrb[0].mxu0
    %v2249 = vadd.f32 %v2056, %v2248
    %v2250 = vpop.f32.mrb[0].mxu0
    %v2251 = vadd.f32 %v2058, %v2250
    %v2252 = vpop.f32.mrb[0].mxu0
    %v2253 = vadd.f32 %v2060, %v2252
    %2254 = vmatprep.mubr.bf16.mxu0 %v783
    %2255 = vmatmul.mubr.bf16.gmra.mrb[0].mxu0 %v782
    %v2256 = vpop.f32.mrb[0].mxu0
    %v2257 = vadd.f32 %v2064, %v2256
    %v2258 = vpop.f32.mrb[0].mxu0
    %v2259 = vadd.f32 %v2066, %v2258
    %v2260 = vpop.f32.mrb[0].mxu0
    %v2261 = vadd.f32 %v2068, %v2260
    %v2262 = vpop.f32.mrb[0].mxu0
    %v2263 = vadd.f32 %v2070, %v2262
    %2264 = vmatprep.mubr.bf16.mxu0 %v790
    %2265 = vmatmul.mubr.bf16.gmra.mrb[0].mxu0 %v789
    %v2266 = vpop.f32.mrb[0].mxu0
    %v2267 = vadd.f32 %v2074, %v2266
    %v2268 = vpop.f32.mrb[0].mxu0
    %v2269 = vadd.f32 %v2076, %v2268
    %v2270 = vpop.f32.mrb[0].mxu0
    %v2271 = vadd.f32 %v2078, %v2270
    %v2272 = vpop.f32.mrb[0].mxu0
    %v2273 = vadd.f32 %v2080, %v2272
    %2274 = vmatprep.mubr.bf16.mxu0 %v797
    %2275 = vmatmul.mubr.bf16.gmra.mrb[0].mxu0 %v796
    %v2276 = vpop.f32.mrb[0].mxu0
    %v2277 = vadd.f32 %v2084, %v2276
    %v2278 = vpop.f32.mrb[0].mxu0
    %v2279 = vadd.f32 %v2086, %v2278
    %v2280 = vpop.f32.mrb[0].mxu0
    %v2281 = vadd.f32 %v2088, %v2280
    %v2282 = vpop.f32.mrb[0].mxu0
    %v2283 = vadd.f32 %v2090, %v2282
    %2284 = vmatprep.mubr.bf16.mxu0 %v804
    %2285 = vmatmul.mubr.bf16.gmra.mrb[0].mxu0 %v803
    %v2286 = vpop.f32.mrb[0].mxu0
    %v2287 = vadd.f32 %v2094, %v2286
    %v2288 = vpop.f32.mrb[0].mxu0
    %v2289 = vadd.f32 %v2096, %v2288
    %v2290 = vpop.f32.mrb[0].mxu0
    %v2291 = vadd.f32 %v2098, %v2290
    %v2292 = vpop.f32.mrb[0].mxu0
    %v2293 = vadd.f32 %v2100, %v2292
    %2294 = vmatprep.mubr.bf16.mxu0 %v811
    %2295 = vmatmul.mubr.bf16.gmra.mrb[0].mxu0 %v810
    %v2296 = vpop.f32.mrb[0].mxu0
    %v2297 = vadd.f32 %v2104, %v2296
    %v2298 = vpop.f32.mrb[0].mxu0
    %v2299 = vadd.f32 %v2106, %v2298
    %v2300 = vpop.f32.mrb[0].mxu0
    %v2301 = vadd.f32 %v2108, %v2300
    %v2302 = vpop.f32.mrb[0].mxu0
    %v2303 = vadd.f32 %v2110, %v2302
    %2304 = vmatprep.mubr.bf16.mxu0 %v818
    %2305 = vmatmul.mubr.bf16.gmra.mrb[0].mxu0 %v817
    %v2306 = vpop.f32.mrb[0].mxu0
    %v2307 = vadd.f32 %v2114, %v2306
    %v2308 = vpop.f32.mrb[0].mxu0
    %v2309 = vadd.f32 %v2116, %v2308
    %v2310 = vpop.f32.mrb[0].mxu0
    %v2311 = vadd.f32 %v2118, %v2310
    %v2312 = vpop.f32.mrb[0].mxu0
    %v2313 = vadd.f32 %v2120, %v2312
    %2314 = vmatprep.mubr.bf16.mxu0 %v825
    %2315 = vmatmul.mubr.bf16.gmra.mrb[0].mxu0 %v824
    %v2316 = vpop.f32.mrb[0].mxu0
    %v2317 = vadd.f32 %v2124, %v2316
    %v2318 = vpop.f32.mrb[0].mxu0
    %v2319 = vadd.f32 %v2126, %v2318
    %v2320 = vpop.f32.mrb[0].mxu0
    %v2321 = vadd.f32 %v2128, %v2320
    %v2322 = vpop.f32.mrb[0].mxu0
    %v2323 = vadd.f32 %v2130, %v2322
    %2324 = vmatprep.mubr.bf16.mxu0 %v832
    %2325 = vmatmul.mubr.bf16.gmra.mrb[0].mxu0 %v831
    %v2326 = vpop.f32.mrb[0].mxu0
    %v2327 = vadd.f32 %v2134, %v2326
    %v2328 = vpop.f32.mrb[0].mxu0
    %v2329 = vadd.f32 %v2136, %v2328
    %v2330 = vpop.f32.mrb[0].mxu0
    %v2331 = vadd.f32 %v2138, %v2330
    %v2332 = vpop.f32.mrb[0].mxu0
    %v2333 = vadd.f32 %v2140, %v2332
    %2334 = vmatprep.mubr.bf16.mxu0 %v839
    %2335 = vmatmul.mubr.bf16.gmra.mrb[0].mxu0 %v838
    %v2336 = vpop.f32.mrb[0].mxu0
    %v2337 = vadd.f32 %v2144, %v2336
    %v2338 = vpop.f32.mrb[0].mxu0
    %v2339 = vadd.f32 %v2146, %v2338
    %v2340 = vpop.f32.mrb[0].mxu0
    %v2341 = vadd.f32 %v2148, %v2340
    %v2342 = vpop.f32.mrb[0].mxu0
    %v2343 = vadd.f32 %v2150, %v2342
    %2344 = vmatprep.mubr.bf16.mxu0 %v846
    %2345 = vmatmul.mubr.bf16.gmra.mrb[0].mxu0 %v845
    %v2346 = vpop.f32.mrb[0].mxu0
    %v2347 = vadd.f32 %v2154, %v2346
    %v2348 = vpop.f32.mrb[0].mxu0
    %v2349 = vadd.f32 %v2156, %v2348
    %v2350 = vpop.f32.mrb[0].mxu0
    %v2351 = vadd.f32 %v2158, %v2350
    %v2352 = vpop.f32.mrb[0].mxu0
    %v2353 = vadd.f32 %v2160, %v2352
    %2354 = vmatprep.mubr.bf16.mxu0 %v853
    %2355 = vmatmul.mubr.bf16.gmra.mrb[0].mxu0 %v852
    %v2356 = vpop.f32.mrb[0].mxu0
    %v2357 = vadd.f32 %v2164, %v2356
    %v2358 = vpop.f32.mrb[0].mxu0
    %v2359 = vadd.f32 %v2166, %v2358
    %v2360 = vpop.f32.mrb[0].mxu0
    %v2361 = vadd.f32 %v2168, %v2360
    %v2362 = vpop.f32.mrb[0].mxu0
    %v2363 = vadd.f32 %v2170, %v2362
    %2364 = vmatprep.mubr.bf16.mxu0 %v860
    %2365 = vmatmul.mubr.bf16.gmra.mrb[0].mxu0 %v859
    %v2366 = vpop.f32.mrb[0].mxu0
    %v2367 = vadd.f32 %v2174, %v2366
    %v2368 = vpop.f32.mrb[0].mxu0
    %v2369 = vadd.f32 %v2176, %v2368
    %v2370 = vpop.f32.mrb[0].mxu0
    %v2371 = vadd.f32 %v2178, %v2370
    %v2372 = vpop.f32.mrb[0].mxu0
    %v2373 = vadd.f32 %v2180, %v2372
    %2374 = vdwg.mxu0
    %2375 = vmatprep.subr.bf16.mxu0 %v1677
    %2376 = vmatpush1.bf16.msra.mxu0 %v1676
    %2377 = vmatprep.subr.bf16.mxu0 %v1681
    %2378 = vmatpush1.bf16.msra.mxu0 %v1680
    %2379 = vmatprep.subr.bf16.mxu0 %v1685
    %2380 = vmatpush1.bf16.msra.mxu0 %v1684
    %2381 = vmatprep.subr.bf16.mxu0 %v1689
    %2382 = vmatpush1.bf16.msra.mxu0 %v1688
    %2383 = vmatprep.subr.bf16.mxu0 %v1693
    %2384 = vmatpush1.bf16.msra.mxu0 %v1692
    %2385 = vmatprep.subr.bf16.mxu0 %v1697
    %2386 = vmatpush1.bf16.msra.mxu0 %v1696
    %2387 = vmatprep.subr.bf16.mxu0 %v1701
    %2388 = vmatpush1.bf16.msra.mxu0 %v1700
    %2389 = vmatprep.subr.bf16.mxu0 %v1705
    %2390 = vmatpush1.bf16.msra.mxu0 %v1704
    %2391 = vmatprep.subr.bf16.mxu0 %v1709
    %2392 = vmatpush1.bf16.msra.mxu0 %v1708
    %2393 = vmatprep.subr.bf16.mxu0 %v1713
    %2394 = vmatpush1.bf16.msra.mxu0 %v1712
    %2395 = vmatprep.subr.bf16.mxu0 %v1717
    %2396 = vmatpush1.bf16.msra.mxu0 %v1716
    %2397 = vmatprep.subr.bf16.mxu0 %v1721
    %2398 = vmatpush1.bf16.msra.mxu0 %v1720
    %2399 = vmatprep.subr.bf16.mxu0 %v1725
    %2400 = vmatpush1.bf16.msra.mxu0 %v1724
    %2401 = vmatprep.subr.bf16.mxu0 %v1729
    %2402 = vmatpush1.bf16.msra.mxu0 %v1728
    %2403 = vmatprep.subr.bf16.mxu0 %v1733
    %2404 = vmatpush1.bf16.msra.mxu0 %v1732
    %2405 = vmatprep.subr.bf16.mxu0 %v1737
    %2406 = vmatpush1.bf16.msra.mxu0 %v1736
    %2407 = vmatprep.mubr.bf16.mxu0 %v757
    %2408 = vmatmul.mubr.bf16.gmra.mrb[0].mxu0 %v756
    %v2409 = vpop.f32.mrb[0].mxu0
    %v2410 = vadd.f32 %v2217, %v2409
    %v2411 = vpop.f32.mrb[0].mxu0
    %v2412 = vadd.f32 %v2219, %v2411
    %v2413 = vpop.f32.mrb[0].mxu0
    %v2414 = vadd.f32 %v2221, %v2413
    %v2415 = vpop.f32.mrb[0].mxu0
    %v2416 = vadd.f32 %v2223, %v2415
    %2417 = vmatprep.mubr.bf16.mxu0 %v764
    %2418 = vmatmul.mubr.bf16.gmra.mrb[0].mxu0 %v763
    %v2419 = vpop.f32.mrb[0].mxu0
    %v2420 = vadd.f32 %v2227, %v2419
    %v2421 = vpop.f32.mrb[0].mxu0
    %v2422 = vadd.f32 %v2229, %v2421
    %v2423 = vpop.f32.mrb[0].mxu0
    %v2424 = vadd.f32 %v2231, %v2423
    %v2425 = vpop.f32.mrb[0].mxu0
    %v2426 = vadd.f32 %v2233, %v2425
    %2427 = vmatprep.mubr.bf16.mxu0 %v771
    %2428 = vmatmul.mubr.bf16.gmra.mrb[0].mxu0 %v770
    %v2429 = vpop.f32.mrb[0].mxu0
    %v2430 = vadd.f32 %v2237, %v2429
    %v2431 = vpop.f32.mrb[0].mxu0
    %v2432 = vadd.f32 %v2239, %v2431
    %v2433 = vpop.f32.mrb[0].mxu0
    %v2434 = vadd.f32 %v2241, %v2433
    %v2435 = vpop.f32.mrb[0].mxu0
    %v2436 = vadd.f32 %v2243, %v2435
    %2437 = vmatprep.mubr.bf16.mxu0 %v778
    %2438 = vmatmul.mubr.bf16.gmra.mrb[0].mxu0 %v777
    %v2439 = vpop.f32.mrb[0].mxu0
    %v2440 = vadd.f32 %v2247, %v2439
    %v2441 = vpop.f32.mrb[0].mxu0
    %v2442 = vadd.f32 %v2249, %v2441
    %v2443 = vpop.f32.mrb[0].mxu0
    %v2444 = vadd.f32 %v2251, %v2443
    %v2445 = vpop.f32.mrb[0].mxu0
    %v2446 = vadd.f32 %v2253, %v2445
    %2447 = vmatprep.mubr.bf16.mxu0 %v785
    %2448 = vmatmul.mubr.bf16.gmra.mrb[0].mxu0 %v784
    %v2449 = vpop.f32.mrb[0].mxu0
    %v2450 = vadd.f32 %v2257, %v2449
    %v2451 = vpop.f32.mrb[0].mxu0
    %v2452 = vadd.f32 %v2259, %v2451
    %v2453 = vpop.f32.mrb[0].mxu0
    %v2454 = vadd.f32 %v2261, %v2453
    %v2455 = vpop.f32.mrb[0].mxu0
    %v2456 = vadd.f32 %v2263, %v2455
    %2457 = vmatprep.mubr.bf16.mxu0 %v792
    %2458 = vmatmul.mubr.bf16.gmra.mrb[0].mxu0 %v791
    %v2459 = vpop.f32.mrb[0].mxu0
    %v2460 = vadd.f32 %v2267, %v2459
    %v2461 = vpop.f32.mrb[0].mxu0
    %v2462 = vadd.f32 %v2269, %v2461
    %v2463 = vpop.f32.mrb[0].mxu0
    %v2464 = vadd.f32 %v2271, %v2463
    %v2465 = vpop.f32.mrb[0].mxu0
    %v2466 = vadd.f32 %v2273, %v2465
    %2467 = vmatprep.mubr.bf16.mxu0 %v799
    %2468 = vmatmul.mubr.bf16.gmra.mrb[0].mxu0 %v798
    %v2469 = vpop.f32.mrb[0].mxu0
    %v2470 = vadd.f32 %v2277, %v2469
    %v2471 = vpop.f32.mrb[0].mxu0
    %v2472 = vadd.f32 %v2279, %v2471
    %v2473 = vpop.f32.mrb[0].mxu0
    %v2474 = vadd.f32 %v2281, %v2473
    %v2475 = vpop.f32.mrb[0].mxu0
    %v2476 = vadd.f32 %v2283, %v2475
    %2477 = vmatprep.mubr.bf16.mxu0 %v806
    %2478 = vmatmul.mubr.bf16.gmra.mrb[0].mxu0 %v805
    %v2479 = vpop.f32.mrb[0].mxu0
    %v2480 = vadd.f32 %v2287, %v2479
    %v2481 = vpop.f32.mrb[0].mxu0
    %v2482 = vadd.f32 %v2289, %v2481
    %v2483 = vpop.f32.mrb[0].mxu0
    %v2484 = vadd.f32 %v2291, %v2483
    %v2485 = vpop.f32.mrb[0].mxu0
    %v2486 = vadd.f32 %v2293, %v2485
    %2487 = vmatprep.mubr.bf16.mxu0 %v813
    %2488 = vmatmul.mubr.bf16.gmra.mrb[0].mxu0 %v812
    %v2489 = vpop.f32.mrb[0].mxu0
    %v2490 = vadd.f32 %v2297, %v2489
    %v2491 = vpop.f32.mrb[0].mxu0
    %v2492 = vadd.f32 %v2299, %v2491
    %v2493 = vpop.f32.mrb[0].mxu0
    %v2494 = vadd.f32 %v2301, %v2493
    %v2495 = vpop.f32.mrb[0].mxu0
    %v2496 = vadd.f32 %v2303, %v2495
    %2497 = vmatprep.mubr.bf16.mxu0 %v820
    %2498 = vmatmul.mubr.bf16.gmra.mrb[0].mxu0 %v819
    %v2499 = vpop.f32.mrb[0].mxu0
    %v2500 = vadd.f32 %v2307, %v2499
    %v2501 = vpop.f32.mrb[0].mxu0
    %v2502 = vadd.f32 %v2309, %v2501
    %v2503 = vpop.f32.mrb[0].mxu0
    %v2504 = vadd.f32 %v2311, %v2503
    %v2505 = vpop.f32.mrb[0].mxu0
    %v2506 = vadd.f32 %v2313, %v2505
    %2507 = vmatprep.mubr.bf16.mxu0 %v827
    %2508 = vmatmul.mubr.bf16.gmra.mrb[0].mxu0 %v826
    %v2509 = vpop.f32.mrb[0].mxu0
    %v2510 = vadd.f32 %v2317, %v2509
    %v2511 = vpop.f32.mrb[0].mxu0
    %v2512 = vadd.f32 %v2319, %v2511
    %v2513 = vpop.f32.mrb[0].mxu0
    %v2514 = vadd.f32 %v2321, %v2513
    %v2515 = vpop.f32.mrb[0].mxu0
    %v2516 = vadd.f32 %v2323, %v2515
    %2517 = vmatprep.mubr.bf16.mxu0 %v834
    %2518 = vmatmul.mubr.bf16.gmra.mrb[0].mxu0 %v833
    %v2519 = vpop.f32.mrb[0].mxu0
    %v2520 = vadd.f32 %v2327, %v2519
    %v2521 = vpop.f32.mrb[0].mxu0
    %v2522 = vadd.f32 %v2329, %v2521
    %v2523 = vpop.f32.mrb[0].mxu0
    %v2524 = vadd.f32 %v2331, %v2523
    %v2525 = vpop.f32.mrb[0].mxu0
    %v2526 = vadd.f32 %v2333, %v2525
    %2527 = vmatprep.mubr.bf16.mxu0 %v841
    %2528 = vmatmul.mubr.bf16.gmra.mrb[0].mxu0 %v840
    %v2529 = vpop.f32.mrb[0].mxu0
    %v2530 = vadd.f32 %v2337, %v2529
    %v2531 = vpop.f32.mrb[0].mxu0
    %v2532 = vadd.f32 %v2339, %v2531
    %v2533 = vpop.f32.mrb[0].mxu0
    %v2534 = vadd.f32 %v2341, %v2533
    %v2535 = vpop.f32.mrb[0].mxu0
    %v2536 = vadd.f32 %v2343, %v2535
    %2537 = vmatprep.mubr.bf16.mxu0 %v848
    %2538 = vmatmul.mubr.bf16.gmra.mrb[0].mxu0 %v847
    %v2539 = vpop.f32.mrb[0].mxu0
    %v2540 = vadd.f32 %v2347, %v2539
    %v2541 = vpop.f32.mrb[0].mxu0
    %v2542 = vadd.f32 %v2349, %v2541
    %v2543 = vpop.f32.mrb[0].mxu0
    %v2544 = vadd.f32 %v2351, %v2543
    %v2545 = vpop.f32.mrb[0].mxu0
    %v2546 = vadd.f32 %v2353, %v2545
    %2547 = vmatprep.mubr.bf16.mxu0 %v855
    %2548 = vmatmul.mubr.bf16.gmra.mrb[0].mxu0 %v854
    %v2549 = vpop.f32.mrb[0].mxu0
    %v2550 = vadd.f32 %v2357, %v2549
    %v2551 = vpop.f32.mrb[0].mxu0
    %v2552 = vadd.f32 %v2359, %v2551
    %v2553 = vpop.f32.mrb[0].mxu0
    %v2554 = vadd.f32 %v2361, %v2553
    %v2555 = vpop.f32.mrb[0].mxu0
    %v2556 = vadd.f32 %v2363, %v2555
    %2557 = vmatprep.mubr.bf16.mxu0 %v862
    %2558 = vmatmul.mubr.bf16.gmra.mrb[0].mxu0 %v861
    %v2559 = vpop.f32.mrb[0].mxu0
    %v2560 = vadd.f32 %v2367, %v2559
    %v2561 = vpop.f32.mrb[0].mxu0
    %v2562 = vadd.f32 %v2369, %v2561
    %v2563 = vpop.f32.mrb[0].mxu0
    %v2564 = vadd.f32 %v2371, %v2563
    %v2565 = vpop.f32.mrb[0].mxu0
    %v2566 = vadd.f32 %v2373, %v2565
    %2567 = vdwg.mxu0
    %2568 = vmatprep.subr.bf16.mxu0 %v1741
    %2569 = vmatpush1.bf16.msra.mxu0 %v1740
    %2570 = vmatprep.subr.bf16.mxu0 0
    %2571 = vmatpush1.bf16.msra.mxu0 0
    %2572 = vmatprep.subr.bf16.mxu0 0
    %2573 = vmatpush1.bf16.msra.mxu0 0
    %2574 = vmatprep.subr.bf16.mxu0 0
    %2575 = vmatpush1.bf16.msra.mxu0 0
    %2576 = vmatprep.subr.bf16.mxu0 0
    %2577 = vmatpush1.bf16.msra.mxu0 0
    %2578 = vmatprep.subr.bf16.mxu0 0
    %2579 = vmatpush1.bf16.msra.mxu0 0
    %2580 = vmatprep.subr.bf16.mxu0 0
    %2581 = vmatpush1.bf16.msra.mxu0 0
    %2582 = vmatprep.subr.bf16.mxu0 0
    %2583 = vmatpush1.bf16.msra.mxu0 0
    %2584 = vmatprep.subr.bf16.mxu0 0
    %2585 = vmatpush1.bf16.msra.mxu0 0
    %2586 = vmatprep.subr.bf16.mxu0 0
    %2587 = vmatpush1.bf16.msra.mxu0 0
    %2588 = vmatprep.subr.bf16.mxu0 0
    %2589 = vmatpush1.bf16.msra.mxu0 0
    %2590 = vmatprep.subr.bf16.mxu0 0
    %2591 = vmatpush1.bf16.msra.mxu0 0
    %2592 = vmatprep.subr.bf16.mxu0 0
    %2593 = vmatpush1.bf16.msra.mxu0 0
    %2594 = vmatprep.subr.bf16.mxu0 0
    %2595 = vmatpush1.bf16.msra.mxu0 0
    %2596 = vmatprep.subr.bf16.mxu0 0
    %2597 = vmatpush1.bf16.msra.mxu0 0
    %2598 = vmatprep.subr.bf16.mxu0 0
    %2599 = vmatpush1.bf16.msra.mxu0 0
    %2600 = vmatprep.mubr.bf16.mxu0 0
    %2601 = vmatmul.mubr.bf16.gmra.mrb[0].mxu0 %v1942
    %v2602 = vpop.f32.mrb[0].mxu0
    %v2603 = vadd.f32 %v2410, %v2602
    %v2604 = vpop.f32.mrb[0].mxu0
    %v2605 = vadd.f32 %v2412, %v2604
    %v2606 = vpop.f32.mrb[0].mxu0
    %v2607 = vadd.f32 %v2414, %v2606
    %v2608 = vpop.f32.mrb[0].mxu0
    %v2609 = vadd.f32 %v2416, %v2608
    %2610 = vmatprep.mubr.bf16.mxu0 0
    %2611 = vmatmul.mubr.bf16.gmra.mrb[0].mxu0 %v1945
    %v2612 = vpop.f32.mrb[0].mxu0
    %v2613 = vadd.f32 %v2420, %v2612
    %v2614 = vpop.f32.mrb[0].mxu0
    %v2615 = vadd.f32 %v2422, %v2614
    %v2616 = vpop.f32.mrb[0].mxu0
    %v2617 = vadd.f32 %v2424, %v2616
    %v2618 = vpop.f32.mrb[0].mxu0
    %v2619 = vadd.f32 %v2426, %v2618
    %2620 = vmatprep.mubr.bf16.mxu0 0
    %2621 = vmatmul.mubr.bf16.gmra.mrb[0].mxu0 %v1948
    %v2622 = vpop.f32.mrb[0].mxu0
    %v2623 = vadd.f32 %v2430, %v2622
    %v2624 = vpop.f32.mrb[0].mxu0
    %v2625 = vadd.f32 %v2432, %v2624
    %v2626 = vpop.f32.mrb[0].mxu0
    %v2627 = vadd.f32 %v2434, %v2626
    %v2628 = vpop.f32.mrb[0].mxu0
    %v2629 = vadd.f32 %v2436, %v2628
    %2630 = vmatprep.mubr.bf16.mxu0 0
    %2631 = vmatmul.mubr.bf16.gmra.mrb[0].mxu0 %v1951
    %v2632 = vpop.f32.mrb[0].mxu0
    %v2633 = vadd.f32 %v2440, %v2632
    %v2634 = vpop.f32.mrb[0].mxu0
    %v2635 = vadd.f32 %v2442, %v2634
    %v2636 = vpop.f32.mrb[0].mxu0
    %v2637 = vadd.f32 %v2444, %v2636
    %v2638 = vpop.f32.mrb[0].mxu0
    %v2639 = vadd.f32 %v2446, %v2638
    %2640 = vmatprep.mubr.bf16.mxu0 0
    %2641 = vmatmul.mubr.bf16.gmra.mrb[0].mxu0 %v1954
    %v2642 = vpop.f32.mrb[0].mxu0
    %v2643 = vadd.f32 %v2450, %v2642
    %v2644 = vpop.f32.mrb[0].mxu0
    %v2645 = vadd.f32 %v2452, %v2644
    %v2646 = vpop.f32.mrb[0].mxu0
    %v2647 = vadd.f32 %v2454, %v2646
    %v2648 = vpop.f32.mrb[0].mxu0
    %v2649 = vadd.f32 %v2456, %v2648
    %2650 = vmatprep.mubr.bf16.mxu0 0
    %2651 = vmatmul.mubr.bf16.gmra.mrb[0].mxu0 %v1957
    %v2652 = vpop.f32.mrb[0].mxu0
    %v2653 = vadd.f32 %v2460, %v2652
    %v2654 = vpop.f32.mrb[0].mxu0
    %v2655 = vadd.f32 %v2462, %v2654
    %v2656 = vpop.f32.mrb[0].mxu0
    %v2657 = vadd.f32 %v2464, %v2656
    %v2658 = vpop.f32.mrb[0].mxu0
    %v2659 = vadd.f32 %v2466, %v2658
    %2660 = vmatprep.mubr.bf16.mxu0 0
    %2661 = vmatmul.mubr.bf16.gmra.mrb[0].mxu0 %v1960
    %v2662 = vpop.f32.mrb[0].mxu0
    %v2663 = vadd.f32 %v2470, %v2662
    %v2664 = vpop.f32.mrb[0].mxu0
    %v2665 = vadd.f32 %v2472, %v2664
    %v2666 = vpop.f32.mrb[0].mxu0
    %v2667 = vadd.f32 %v2474, %v2666
    %v2668 = vpop.f32.mrb[0].mxu0
    %v2669 = vadd.f32 %v2476, %v2668
    %2670 = vmatprep.mubr.bf16.mxu0 0
    %2671 = vmatmul.mubr.bf16.gmra.mrb[0].mxu0 %v1963
    %v2672 = vpop.f32.mrb[0].mxu0
    %v2673 = vadd.f32 %v2480, %v2672
    %v2674 = vpop.f32.mrb[0].mxu0
    %v2675 = vadd.f32 %v2482, %v2674
    %v2676 = vpop.f32.mrb[0].mxu0
    %v2677 = vadd.f32 %v2484, %v2676
    %v2678 = vpop.f32.mrb[0].mxu0
    %v2679 = vadd.f32 %v2486, %v2678
    %2680 = vmatprep.mubr.bf16.mxu0 0
    %2681 = vmatmul.mubr.bf16.gmra.mrb[0].mxu0 %v1966
    %v2682 = vpop.f32.mrb[0].mxu0
    %v2683 = vadd.f32 %v2490, %v2682
    %v2684 = vpop.f32.mrb[0].mxu0
    %v2685 = vadd.f32 %v2492, %v2684
    %v2686 = vpop.f32.mrb[0].mxu0
    %v2687 = vadd.f32 %v2494, %v2686
    %v2688 = vpop.f32.mrb[0].mxu0
    %v2689 = vadd.f32 %v2496, %v2688
    %2690 = vmatprep.mubr.bf16.mxu0 0
    %2691 = vmatmul.mubr.bf16.gmra.mrb[0].mxu0 %v1969
    %v2692 = vpop.f32.mrb[0].mxu0
    %v2693 = vadd.f32 %v2500, %v2692
    %v2694 = vpop.f32.mrb[0].mxu0
    %v2695 = vadd.f32 %v2502, %v2694
    %v2696 = vpop.f32.mrb[0].mxu0
    %v2697 = vadd.f32 %v2504, %v2696
    %v2698 = vpop.f32.mrb[0].mxu0
    %v2699 = vadd.f32 %v2506, %v2698
    %2700 = vmatprep.mubr.bf16.mxu0 0
    %2701 = vmatmul.mubr.bf16.gmra.mrb[0].mxu0 %v1972
    %v2702 = vpop.f32.mrb[0].mxu0
    %v2703 = vadd.f32 %v2510, %v2702
    %v2704 = vpop.f32.mrb[0].mxu0
    %v2705 = vadd.f32 %v2512, %v2704
    %v2706 = vpop.f32.mrb[0].mxu0
    %v2707 = vadd.f32 %v2514, %v2706
    %v2708 = vpop.f32.mrb[0].mxu0
    %v2709 = vadd.f32 %v2516, %v2708
    %2710 = vmatprep.mubr.bf16.mxu0 0
    %2711 = vmatmul.mubr.bf16.gmra.mrb[0].mxu0 %v1975
    %v2712 = vpop.f32.mrb[0].mxu0
    %v2713 = vadd.f32 %v2520, %v2712
    %v2714 = vpop.f32.mrb[0].mxu0
    %v2715 = vadd.f32 %v2522, %v2714
    %v2716 = vpop.f32.mrb[0].mxu0
    %v2717 = vadd.f32 %v2524, %v2716
    %v2718 = vpop.f32.mrb[0].mxu0
    %v2719 = vadd.f32 %v2526, %v2718
    %2720 = vmatprep.mubr.bf16.mxu0 0
    %2721 = vmatmul.mubr.bf16.gmra.mrb[0].mxu0 %v1978
    %v2722 = vpop.f32.mrb[0].mxu0
    %v2723 = vadd.f32 %v2530, %v2722
    %v2724 = vpop.f32.mrb[0].mxu0
    %v2725 = vadd.f32 %v2532, %v2724
    %v2726 = vpop.f32.mrb[0].mxu0
    %v2727 = vadd.f32 %v2534, %v2726
    %v2728 = vpop.f32.mrb[0].mxu0
    %v2729 = vadd.f32 %v2536, %v2728
    %2730 = vmatprep.mubr.bf16.mxu0 0
    %2731 = vmatmul.mubr.bf16.gmra.mrb[0].mxu0 %v1981
    %v2732 = vpop.f32.mrb[0].mxu0
    %v2733 = vadd.f32 %v2540, %v2732
    %v2734 = vpop.f32.mrb[0].mxu0
    %v2735 = vadd.f32 %v2542, %v2734
    %v2736 = vpop.f32.mrb[0].mxu0
    %v2737 = vadd.f32 %v2544, %v2736
    %v2738 = vpop.f32.mrb[0].mxu0
    %v2739 = vadd.f32 %v2546, %v2738
    %2740 = vmatprep.mubr.bf16.mxu0 0
    %2741 = vmatmul.mubr.bf16.gmra.mrb[0].mxu0 %v1984
    %v2742 = vpop.f32.mrb[0].mxu0
    %v2743 = vadd.f32 %v2550, %v2742
    %v2744 = vpop.f32.mrb[0].mxu0
    %v2745 = vadd.f32 %v2552, %v2744
    %v2746 = vpop.f32.mrb[0].mxu0
    %v2747 = vadd.f32 %v2554, %v2746
    %v2748 = vpop.f32.mrb[0].mxu0
    %v2749 = vadd.f32 %v2556, %v2748
    %2750 = vmatprep.mubr.bf16.mxu0 0
    %2751 = vmatmul.mubr.bf16.gmra.mrb[0].mxu0 %v1987
    %v2752 = vpop.f32.mrb[0].mxu0
    %v2753 = vadd.f32 %v2560, %v2752
    %v2754 = vpop.f32.mrb[0].mxu0
    %v2755 = vadd.f32 %v2562, %v2754
    %v2756 = vpop.f32.mrb[0].mxu0
    %v2757 = vadd.f32 %v2564, %v2756
    %v2758 = vpop.f32.mrb[0].mxu0
    %v2759 = vadd.f32 %v2566, %v2758
    %2760 = vdwg.mxu0
    %2761 = vmatprep.subr.bf16.mxu0 %v1551
    %2762 = vmatpush1.bf16.msra.mxu0 %v1550
    %2763 = vmatprep.subr.bf16.mxu0 %v1555
    %2764 = vmatpush1.bf16.msra.mxu0 %v1554
    %2765 = vmatprep.subr.bf16.mxu0 %v1559
    %2766 = vmatpush1.bf16.msra.mxu0 %v1558
    %2767 = vmatprep.subr.bf16.mxu0 %v1563
    %2768 = vmatpush1.bf16.msra.mxu0 %v1562
    %2769 = vmatprep.subr.bf16.mxu0 %v1567
    %2770 = vmatpush1.bf16.msra.mxu0 %v1566
    %2771 = vmatprep.subr.bf16.mxu0 %v1571
    %2772 = vmatpush1.bf16.msra.mxu0 %v1570
    %2773 = vmatprep.subr.bf16.mxu0 %v1575
    %2774 = vmatpush1.bf16.msra.mxu0 %v1574
    %2775 = vmatprep.subr.bf16.mxu0 %v1579
    %2776 = vmatpush1.bf16.msra.mxu0 %v1578
    %2777 = vmatprep.subr.bf16.mxu0 %v1583
    %2778 = vmatpush1.bf16.msra.mxu0 %v1582
    %2779 = vmatprep.subr.bf16.mxu0 %v1587
    %2780 = vmatpush1.bf16.msra.mxu0 %v1586
    %2781 = vmatprep.subr.bf16.mxu0 %v1591
    %2782 = vmatpush1.bf16.msra.mxu0 %v1590
    %2783 = vmatprep.subr.bf16.mxu0 %v1595
    %2784 = vmatpush1.bf16.msra.mxu0 %v1594
    %2785 = vmatprep.subr.bf16.mxu0 %v1599
    %2786 = vmatpush1.bf16.msra.mxu0 %v1598
    %2787 = vmatprep.subr.bf16.mxu0 %v1603
    %2788 = vmatpush1.bf16.msra.mxu0 %v1602
    %2789 = vmatprep.subr.bf16.mxu0 %v1607
    %2790 = vmatpush1.bf16.msra.mxu0 %v1606
    %2791 = vmatprep.subr.bf16.mxu0 %v1611
    %2792 = vmatpush1.bf16.msra.mxu0 %v1610
    %2793 = vmatprep.mubr.bf16.mxu0 %v753
    %2794 = vmatmul.mubr.bf16.gmra.mrb[0].mxu0 %v752
    %v2795 = vpop.f32.mrb[0].mxu0
    %v2796 = vadd.f32 %v391, %v2795
    %v2797 = vpop.f32.mrb[0].mxu0
    %v2798 = vadd.f32 %v395, %v2797
    %v2799 = vpop.f32.mrb[0].mxu0
    %v2800 = vadd.f32 %v391, %v2799
    %v2801 = vpop.f32.mrb[0].mxu0
    %v2802 = vadd.f32 %v395, %v2801
    %2803 = vmatprep.mubr.bf16.mxu0 %v760
    %2804 = vmatmul.mubr.bf16.gmra.mrb[0].mxu0 %v759
    %v2805 = vpop.f32.mrb[0].mxu0
    %v2806 = vadd.f32 %v391, %v2805
    %v2807 = vpop.f32.mrb[0].mxu0
    %v2808 = vadd.f32 %v395, %v2807
    %v2809 = vpop.f32.mrb[0].mxu0
    %v2810 = vadd.f32 %v391, %v2809
    %v2811 = vpop.f32.mrb[0].mxu0
    %v2812 = vadd.f32 %v395, %v2811
    %2813 = vmatprep.mubr.bf16.mxu0 %v767
    %2814 = vmatmul.mubr.bf16.gmra.mrb[0].mxu0 %v766
    %v2815 = vpop.f32.mrb[0].mxu0
    %v2816 = vadd.f32 %v391, %v2815
    %v2817 = vpop.f32.mrb[0].mxu0
    %v2818 = vadd.f32 %v395, %v2817
    %v2819 = vpop.f32.mrb[0].mxu0
    %v2820 = vadd.f32 %v391, %v2819
    %v2821 = vpop.f32.mrb[0].mxu0
    %v2822 = vadd.f32 %v395, %v2821
    %2823 = vmatprep.mubr.bf16.mxu0 %v774
    %2824 = vmatmul.mubr.bf16.gmra.mrb[0].mxu0 %v773
    %v2825 = vpop.f32.mrb[0].mxu0
    %v2826 = vadd.f32 %v391, %v2825
    %v2827 = vpop.f32.mrb[0].mxu0
    %v2828 = vadd.f32 %v395, %v2827
    %v2829 = vpop.f32.mrb[0].mxu0
    %v2830 = vadd.f32 %v391, %v2829
    %v2831 = vpop.f32.mrb[0].mxu0
    %v2832 = vadd.f32 %v395, %v2831
    %2833 = vmatprep.mubr.bf16.mxu0 %v781
    %2834 = vmatmul.mubr.bf16.gmra.mrb[0].mxu0 %v780
    %v2835 = vpop.f32.mrb[0].mxu0
    %v2836 = vadd.f32 %v391, %v2835
    %v2837 = vpop.f32.mrb[0].mxu0
    %v2838 = vadd.f32 %v395, %v2837
    %v2839 = vpop.f32.mrb[0].mxu0
    %v2840 = vadd.f32 %v391, %v2839
    %v2841 = vpop.f32.mrb[0].mxu0
    %v2842 = vadd.f32 %v395, %v2841
    %2843 = vmatprep.mubr.bf16.mxu0 %v788
    %2844 = vmatmul.mubr.bf16.gmra.mrb[0].mxu0 %v787
    %v2845 = vpop.f32.mrb[0].mxu0
    %v2846 = vadd.f32 %v391, %v2845
    %v2847 = vpop.f32.mrb[0].mxu0
    %v2848 = vadd.f32 %v395, %v2847
    %v2849 = vpop.f32.mrb[0].mxu0
    %v2850 = vadd.f32 %v391, %v2849
    %v2851 = vpop.f32.mrb[0].mxu0
    %v2852 = vadd.f32 %v395, %v2851
    %2853 = vmatprep.mubr.bf16.mxu0 %v795
    %2854 = vmatmul.mubr.bf16.gmra.mrb[0].mxu0 %v794
    %v2855 = vpop.f32.mrb[0].mxu0
    %v2856 = vadd.f32 %v391, %v2855
    %v2857 = vpop.f32.mrb[0].mxu0
    %v2858 = vadd.f32 %v395, %v2857
    %v2859 = vpop.f32.mrb[0].mxu0
    %v2860 = vadd.f32 %v391, %v2859
    %v2861 = vpop.f32.mrb[0].mxu0
    %v2862 = vadd.f32 %v395, %v2861
    %2863 = vmatprep.mubr.bf16.mxu0 %v802
    %2864 = vmatmul.mubr.bf16.gmra.mrb[0].mxu0 %v801
    %v2865 = vpop.f32.mrb[0].mxu0
    %v2866 = vadd.f32 %v391, %v2865
    %v2867 = vpop.f32.mrb[0].mxu0
    %v2868 = vadd.f32 %v395, %v2867
    %v2869 = vpop.f32.mrb[0].mxu0
    %v2870 = vadd.f32 %v391, %v2869
    %v2871 = vpop.f32.mrb[0].mxu0
    %v2872 = vadd.f32 %v395, %v2871
    %2873 = vmatprep.mubr.bf16.mxu0 %v809
    %2874 = vmatmul.mubr.bf16.gmra.mrb[0].mxu0 %v808
    %v2875 = vpop.f32.mrb[0].mxu0
    %v2876 = vadd.f32 %v391, %v2875
    %v2877 = vpop.f32.mrb[0].mxu0
    %v2878 = vadd.f32 %v395, %v2877
    %v2879 = vpop.f32.mrb[0].mxu0
    %v2880 = vadd.f32 %v391, %v2879
    %v2881 = vpop.f32.mrb[0].mxu0
    %v2882 = vadd.f32 %v395, %v2881
    %2883 = vmatprep.mubr.bf16.mxu0 %v816
    %2884 = vmatmul.mubr.bf16.gmra.mrb[0].mxu0 %v815
    %v2885 = vpop.f32.mrb[0].mxu0
    %v2886 = vadd.f32 %v391, %v2885
    %v2887 = vpop.f32.mrb[0].mxu0
    %v2888 = vadd.f32 %v395, %v2887
    %v2889 = vpop.f32.mrb[0].mxu0
    %v2890 = vadd.f32 %v391, %v2889
    %v2891 = vpop.f32.mrb[0].mxu0
    %v2892 = vadd.f32 %v395, %v2891
    %2893 = vmatprep.mubr.bf16.mxu0 %v823
    %2894 = vmatmul.mubr.bf16.gmra.mrb[0].mxu0 %v822
    %v2895 = vpop.f32.mrb[0].mxu0
    %v2896 = vadd.f32 %v391, %v2895
    %v2897 = vpop.f32.mrb[0].mxu0
    %v2898 = vadd.f32 %v395, %v2897
    %v2899 = vpop.f32.mrb[0].mxu0
    %v2900 = vadd.f32 %v391, %v2899
    %v2901 = vpop.f32.mrb[0].mxu0
    %v2902 = vadd.f32 %v395, %v2901
    %2903 = vmatprep.mubr.bf16.mxu0 %v830
    %2904 = vmatmul.mubr.bf16.gmra.mrb[0].mxu0 %v829
    %v2905 = vpop.f32.mrb[0].mxu0
    %v2906 = vadd.f32 %v391, %v2905
    %v2907 = vpop.f32.mrb[0].mxu0
    %v2908 = vadd.f32 %v395, %v2907
    %v2909 = vpop.f32.mrb[0].mxu0
    %v2910 = vadd.f32 %v391, %v2909
    %v2911 = vpop.f32.mrb[0].mxu0
    %v2912 = vadd.f32 %v395, %v2911
    %2913 = vmatprep.mubr.bf16.mxu0 %v837
    %2914 = vmatmul.mubr.bf16.gmra.mrb[0].mxu0 %v836
    %v2915 = vpop.f32.mrb[0].mxu0
    %v2916 = vadd.f32 %v391, %v2915
    %v2917 = vpop.f32.mrb[0].mxu0
    %v2918 = vadd.f32 %v395, %v2917
    %v2919 = vpop.f32.mrb[0].mxu0
    %v2920 = vadd.f32 %v391, %v2919
    %v2921 = vpop.f32.mrb[0].mxu0
    %v2922 = vadd.f32 %v395, %v2921
    %2923 = vmatprep.mubr.bf16.mxu0 %v844
    %2924 = vmatmul.mubr.bf16.gmra.mrb[0].mxu0 %v843
    %v2925 = vpop.f32.mrb[0].mxu0
    %v2926 = vadd.f32 %v391, %v2925
    %v2927 = vpop.f32.mrb[0].mxu0
    %v2928 = vadd.f32 %v395, %v2927
    %v2929 = vpop.f32.mrb[0].mxu0
    %v2930 = vadd.f32 %v391, %v2929
    %v2931 = vpop.f32.mrb[0].mxu0
    %v2932 = vadd.f32 %v395, %v2931
    %2933 = vmatprep.mubr.bf16.mxu0 %v851
    %2934 = vmatmul.mubr.bf16.gmra.mrb[0].mxu0 %v850
    %v2935 = vpop.f32.mrb[0].mxu0
    %v2936 = vadd.f32 %v391, %v2935
    %v2937 = vpop.f32.mrb[0].mxu0
    %v2938 = vadd.f32 %v395, %v2937
    %v2939 = vpop.f32.mrb[0].mxu0
    %v2940 = vadd.f32 %v391, %v2939
    %v2941 = vpop.f32.mrb[0].mxu0
    %v2942 = vadd.f32 %v395, %v2941
    %2943 = vmatprep.mubr.bf16.mxu0 %v858
    %2944 = vmatmul.mubr.bf16.gmra.mrb[0].mxu0 %v857
    %v2945 = vpop.f32.mrb[0].mxu0
    %v2946 = vadd.f32 %v391, %v2945
    %v2947 = vpop.f32.mrb[0].mxu0
    %v2948 = vadd.f32 %v395, %v2947
    %v2949 = vpop.f32.mrb[0].mxu0
    %v2950 = vadd.f32 %v391, %v2949
    %v2951 = vpop.f32.mrb[0].mxu0
    %v2952 = vadd.f32 %v395, %v2951
    %2953 = vdwg.mxu0
    %2954 = vmatprep.subr.bf16.mxu0 %v1615
    %2955 = vmatpush1.bf16.msra.mxu0 %v1614
    %2956 = vmatprep.subr.bf16.mxu0 %v1619
    %2957 = vmatpush1.bf16.msra.mxu0 %v1618
    %2958 = vmatprep.subr.bf16.mxu0 %v1623
    %2959 = vmatpush1.bf16.msra.mxu0 %v1622
    %2960 = vmatprep.subr.bf16.mxu0 %v1627
    %2961 = vmatpush1.bf16.msra.mxu0 %v1626
    %2962 = vmatprep.subr.bf16.mxu0 %v1631
    %2963 = vmatpush1.bf16.msra.mxu0 %v1630
    %2964 = vmatprep.subr.bf16.mxu0 %v1635
    %2965 = vmatpush1.bf16.msra.mxu0 %v1634
    %2966 = vmatprep.subr.bf16.mxu0 %v1639
    %2967 = vmatpush1.bf16.msra.mxu0 %v1638
    %2968 = vmatprep.subr.bf16.mxu0 %v1643
    %2969 = vmatpush1.bf16.msra.mxu0 %v1642
    %2970 = vmatprep.subr.bf16.mxu0 %v1647
    %2971 = vmatpush1.bf16.msra.mxu0 %v1646
    %2972 = vmatprep.subr.bf16.mxu0 %v1651
    %2973 = vmatpush1.bf16.msra.mxu0 %v1650
    %2974 = vmatprep.subr.bf16.mxu0 %v1655
    %2975 = vmatpush1.bf16.msra.mxu0 %v1654
    %2976 = vmatprep.subr.bf16.mxu0 %v1659
    %2977 = vmatpush1.bf16.msra.mxu0 %v1658
    %2978 = vmatprep.subr.bf16.mxu0 %v1663
    %2979 = vmatpush1.bf16.msra.mxu0 %v1662
    %2980 = vmatprep.subr.bf16.mxu0 %v1667
    %2981 = vmatpush1.bf16.msra.mxu0 %v1666
    %2982 = vmatprep.subr.bf16.mxu0 %v1671
    %2983 = vmatpush1.bf16.msra.mxu0 %v1670
    %2984 = vmatprep.subr.bf16.mxu0 %v1675
    %2985 = vmatpush1.bf16.msra.mxu0 %v1674
    %2986 = vmatprep.mubr.bf16.mxu0 %v755
    %2987 = vmatmul.mubr.bf16.gmra.mrb[0].mxu0 %v754
    %v2988 = vpop.f32.mrb[0].mxu0
    %v2989 = vadd.f32 %v2796, %v2988
    %v2990 = vpop.f32.mrb[0].mxu0
    %v2991 = vadd.f32 %v2798, %v2990
    %v2992 = vpop.f32.mrb[0].mxu0
    %v2993 = vadd.f32 %v2800, %v2992
    %v2994 = vpop.f32.mrb[0].mxu0
    %v2995 = vadd.f32 %v2802, %v2994
    %2996 = vmatprep.mubr.bf16.mxu0 %v762
    %2997 = vmatmul.mubr.bf16.gmra.mrb[0].mxu0 %v761
    %v2998 = vpop.f32.mrb[0].mxu0
    %v2999 = vadd.f32 %v2806, %v2998
    %v3000 = vpop.f32.mrb[0].mxu0
    %v3001 = vadd.f32 %v2808, %v3000
    %v3002 = vpop.f32.mrb[0].mxu0
    %v3003 = vadd.f32 %v2810, %v3002
    %v3004 = vpop.f32.mrb[0].mxu0
    %v3005 = vadd.f32 %v2812, %v3004
    %3006 = vmatprep.mubr.bf16.mxu0 %v769
    %3007 = vmatmul.mubr.bf16.gmra.mrb[0].mxu0 %v768
    %v3008 = vpop.f32.mrb[0].mxu0
    %v3009 = vadd.f32 %v2816, %v3008
    %v3010 = vpop.f32.mrb[0].mxu0
    %v3011 = vadd.f32 %v2818, %v3010
    %v3012 = vpop.f32.mrb[0].mxu0
    %v3013 = vadd.f32 %v2820, %v3012
    %v3014 = vpop.f32.mrb[0].mxu0
    %v3015 = vadd.f32 %v2822, %v3014
    %3016 = vmatprep.mubr.bf16.mxu0 %v776
    %3017 = vmatmul.mubr.bf16.gmra.mrb[0].mxu0 %v775
    %v3018 = vpop.f32.mrb[0].mxu0
    %v3019 = vadd.f32 %v2826, %v3018
    %v3020 = vpop.f32.mrb[0].mxu0
    %v3021 = vadd.f32 %v2828, %v3020
    %v3022 = vpop.f32.mrb[0].mxu0
    %v3023 = vadd.f32 %v2830, %v3022
    %v3024 = vpop.f32.mrb[0].mxu0
    %v3025 = vadd.f32 %v2832, %v3024
    %3026 = vmatprep.mubr.bf16.mxu0 %v783
    %3027 = vmatmul.mubr.bf16.gmra.mrb[0].mxu0 %v782
    %v3028 = vpop.f32.mrb[0].mxu0
    %v3029 = vadd.f32 %v2836, %v3028
    %v3030 = vpop.f32.mrb[0].mxu0
    %v3031 = vadd.f32 %v2838, %v3030
    %v3032 = vpop.f32.mrb[0].mxu0
    %v3033 = vadd.f32 %v2840, %v3032
    %v3034 = vpop.f32.mrb[0].mxu0
    %v3035 = vadd.f32 %v2842, %v3034
    %3036 = vmatprep.mubr.bf16.mxu0 %v790
    %3037 = vmatmul.mubr.bf16.gmra.mrb[0].mxu0 %v789
    %v3038 = vpop.f32.mrb[0].mxu0
    %v3039 = vadd.f32 %v2846, %v3038
    %v3040 = vpop.f32.mrb[0].mxu0
    %v3041 = vadd.f32 %v2848, %v3040
    %v3042 = vpop.f32.mrb[0].mxu0
    %v3043 = vadd.f32 %v2850, %v3042
    %v3044 = vpop.f32.mrb[0].mxu0
    %v3045 = vadd.f32 %v2852, %v3044
    %3046 = vmatprep.mubr.bf16.mxu0 %v797
    %3047 = vmatmul.mubr.bf16.gmra.mrb[0].mxu0 %v796
    %v3048 = vpop.f32.mrb[0].mxu0
    %v3049 = vadd.f32 %v2856, %v3048
    %v3050 = vpop.f32.mrb[0].mxu0
    %v3051 = vadd.f32 %v2858, %v3050
    %v3052 = vpop.f32.mrb[0].mxu0
    %v3053 = vadd.f32 %v2860, %v3052
    %v3054 = vpop.f32.mrb[0].mxu0
    %v3055 = vadd.f32 %v2862, %v3054
    %3056 = vmatprep.mubr.bf16.mxu0 %v804
    %3057 = vmatmul.mubr.bf16.gmra.mrb[0].mxu0 %v803
    %v3058 = vpop.f32.mrb[0].mxu0
    %v3059 = vadd.f32 %v2866, %v3058
    %v3060 = vpop.f32.mrb[0].mxu0
    %v3061 = vadd.f32 %v2868, %v3060
    %v3062 = vpop.f32.mrb[0].mxu0
    %v3063 = vadd.f32 %v2870, %v3062
    %v3064 = vpop.f32.mrb[0].mxu0
    %v3065 = vadd.f32 %v2872, %v3064
    %3066 = vmatprep.mubr.bf16.mxu0 %v811
    %3067 = vmatmul.mubr.bf16.gmra.mrb[0].mxu0 %v810
    %v3068 = vpop.f32.mrb[0].mxu0
    %v3069 = vadd.f32 %v2876, %v3068
    %v3070 = vpop.f32.mrb[0].mxu0
    %v3071 = vadd.f32 %v2878, %v3070
    %v3072 = vpop.f32.mrb[0].mxu0
    %v3073 = vadd.f32 %v2880, %v3072
    %v3074 = vpop.f32.mrb[0].mxu0
    %v3075 = vadd.f32 %v2882, %v3074
    %3076 = vmatprep.mubr.bf16.mxu0 %v818
    %3077 = vmatmul.mubr.bf16.gmra.mrb[0].mxu0 %v817
    %v3078 = vpop.f32.mrb[0].mxu0
    %v3079 = vadd.f32 %v2886, %v3078
    %v3080 = vpop.f32.mrb[0].mxu0
    %v3081 = vadd.f32 %v2888, %v3080
    %v3082 = vpop.f32.mrb[0].mxu0
    %v3083 = vadd.f32 %v2890, %v3082
    %v3084 = vpop.f32.mrb[0].mxu0
    %v3085 = vadd.f32 %v2892, %v3084
    %3086 = vmatprep.mubr.bf16.mxu0 %v825
    %3087 = vmatmul.mubr.bf16.gmra.mrb[0].mxu0 %v824
    %v3088 = vpop.f32.mrb[0].mxu0
    %v3089 = vadd.f32 %v2896, %v3088
    %v3090 = vpop.f32.mrb[0].mxu0
    %v3091 = vadd.f32 %v2898, %v3090
    %v3092 = vpop.f32.mrb[0].mxu0
    %v3093 = vadd.f32 %v2900, %v3092
    %v3094 = vpop.f32.mrb[0].mxu0
    %v3095 = vadd.f32 %v2902, %v3094
    %3096 = vmatprep.mubr.bf16.mxu0 %v832
    %3097 = vmatmul.mubr.bf16.gmra.mrb[0].mxu0 %v831
    %v3098 = vpop.f32.mrb[0].mxu0
    %v3099 = vadd.f32 %v2906, %v3098
    %v3100 = vpop.f32.mrb[0].mxu0
    %v3101 = vadd.f32 %v2908, %v3100
    %v3102 = vpop.f32.mrb[0].mxu0
    %v3103 = vadd.f32 %v2910, %v3102
    %v3104 = vpop.f32.mrb[0].mxu0
    %v3105 = vadd.f32 %v2912, %v3104
    %3106 = vmatprep.mubr.bf16.mxu0 %v839
    %3107 = vmatmul.mubr.bf16.gmra.mrb[0].mxu0 %v838
    %v3108 = vpop.f32.mrb[0].mxu0
    %v3109 = vadd.f32 %v2916, %v3108
    %v3110 = vpop.f32.mrb[0].mxu0
    %v3111 = vadd.f32 %v2918, %v3110
    %v3112 = vpop.f32.mrb[0].mxu0
    %v3113 = vadd.f32 %v2920, %v3112
    %v3114 = vpop.f32.mrb[0].mxu0
    %v3115 = vadd.f32 %v2922, %v3114
    %3116 = vmatprep.mubr.bf16.mxu0 %v846
    %3117 = vmatmul.mubr.bf16.gmra.mrb[0].mxu0 %v845
    %v3118 = vpop.f32.mrb[0].mxu0
    %v3119 = vadd.f32 %v2926, %v3118
    %v3120 = vpop.f32.mrb[0].mxu0
    %v3121 = vadd.f32 %v2928, %v3120
    %v3122 = vpop.f32.mrb[0].mxu0
    %v3123 = vadd.f32 %v2930, %v3122
    %v3124 = vpop.f32.mrb[0].mxu0
    %v3125 = vadd.f32 %v2932, %v3124
    %3126 = vmatprep.mubr.bf16.mxu0 %v853
    %3127 = vmatmul.mubr.bf16.gmra.mrb[0].mxu0 %v852
    %v3128 = vpop.f32.mrb[0].mxu0
    %v3129 = vadd.f32 %v2936, %v3128
    %v3130 = vpop.f32.mrb[0].mxu0
    %v3131 = vadd.f32 %v2938, %v3130
    %v3132 = vpop.f32.mrb[0].mxu0
    %v3133 = vadd.f32 %v2940, %v3132
    %v3134 = vpop.f32.mrb[0].mxu0
    %v3135 = vadd.f32 %v2942, %v3134
    %3136 = vmatprep.mubr.bf16.mxu0 %v860
    %3137 = vmatmul.mubr.bf16.gmra.mrb[0].mxu0 %v859
    %v3138 = vpop.f32.mrb[0].mxu0
    %v3139 = vadd.f32 %v2946, %v3138
    %v3140 = vpop.f32.mrb[0].mxu0
    %v3141 = vadd.f32 %v2948, %v3140
    %v3142 = vpop.f32.mrb[0].mxu0
    %v3143 = vadd.f32 %v2950, %v3142
    %v3144 = vpop.f32.mrb[0].mxu0
    %v3145 = vadd.f32 %v2952, %v3144
    %3146 = vdwg.mxu0
    %3147 = vmatprep.subr.bf16.mxu0 %v1679
    %3148 = vmatpush1.bf16.msra.mxu0 %v1678
    %3149 = vmatprep.subr.bf16.mxu0 %v1683
    %3150 = vmatpush1.bf16.msra.mxu0 %v1682
    %3151 = vmatprep.subr.bf16.mxu0 %v1687
    %3152 = vmatpush1.bf16.msra.mxu0 %v1686
    %3153 = vmatprep.subr.bf16.mxu0 %v1691
    %3154 = vmatpush1.bf16.msra.mxu0 %v1690
    %3155 = vmatprep.subr.bf16.mxu0 %v1695
    %3156 = vmatpush1.bf16.msra.mxu0 %v1694
    %3157 = vmatprep.subr.bf16.mxu0 %v1699
    %3158 = vmatpush1.bf16.msra.mxu0 %v1698
    %3159 = vmatprep.subr.bf16.mxu0 %v1703
    %3160 = vmatpush1.bf16.msra.mxu0 %v1702
    %3161 = vmatprep.subr.bf16.mxu0 %v1707
    %3162 = vmatpush1.bf16.msra.mxu0 %v1706
    %3163 = vmatprep.subr.bf16.mxu0 %v1711
    %3164 = vmatpush1.bf16.msra.mxu0 %v1710
    %3165 = vmatprep.subr.bf16.mxu0 %v1715
    %3166 = vmatpush1.bf16.msra.mxu0 %v1714
    %3167 = vmatprep.subr.bf16.mxu0 %v1719
    %3168 = vmatpush1.bf16.msra.mxu0 %v1718
    %3169 = vmatprep.subr.bf16.mxu0 %v1723
    %3170 = vmatpush1.bf16.msra.mxu0 %v1722
    %3171 = vmatprep.subr.bf16.mxu0 %v1727
    %3172 = vmatpush1.bf16.msra.mxu0 %v1726
    %3173 = vmatprep.subr.bf16.mxu0 %v1731
    %3174 = vmatpush1.bf16.msra.mxu0 %v1730
    %3175 = vmatprep.subr.bf16.mxu0 %v1735
    %3176 = vmatpush1.bf16.msra.mxu0 %v1734
    %3177 = vmatprep.subr.bf16.mxu0 %v1739
    %3178 = vmatpush1.bf16.msra.mxu0 %v1738
    %3179 = vmatprep.mubr.bf16.mxu0 %v757
    %3180 = vmatmul.mubr.bf16.gmra.mrb[0].mxu0 %v756
    %v3181 = vpop.f32.mrb[0].mxu0
    %v3182 = vadd.f32 %v2989, %v3181
    %v3183 = vpop.f32.mrb[0].mxu0
    %v3184 = vadd.f32 %v2991, %v3183
    %v3185 = vpop.f32.mrb[0].mxu0
    %v3186 = vadd.f32 %v2993, %v3185
    %v3187 = vpop.f32.mrb[0].mxu0
    %v3188 = vadd.f32 %v2995, %v3187
    %3189 = vmatprep.mubr.bf16.mxu0 %v764
    %3190 = vmatmul.mubr.bf16.gmra.mrb[0].mxu0 %v763
    %v3191 = vpop.f32.mrb[0].mxu0
    %v3192 = vadd.f32 %v2999, %v3191
    %v3193 = vpop.f32.mrb[0].mxu0
    %v3194 = vadd.f32 %v3001, %v3193
    %v3195 = vpop.f32.mrb[0].mxu0
    %v3196 = vadd.f32 %v3003, %v3195
    %v3197 = vpop.f32.mrb[0].mxu0
    %v3198 = vadd.f32 %v3005, %v3197
    %3199 = vmatprep.mubr.bf16.mxu0 %v771
    %3200 = vmatmul.mubr.bf16.gmra.mrb[0].mxu0 %v770
    %v3201 = vpop.f32.mrb[0].mxu0
    %v3202 = vadd.f32 %v3009, %v3201
    %v3203 = vpop.f32.mrb[0].mxu0
    %v3204 = vadd.f32 %v3011, %v3203
    %v3205 = vpop.f32.mrb[0].mxu0
    %v3206 = vadd.f32 %v3013, %v3205
    %v3207 = vpop.f32.mrb[0].mxu0
    %v3208 = vadd.f32 %v3015, %v3207
    %3209 = vmatprep.mubr.bf16.mxu0 %v778
    %3210 = vmatmul.mubr.bf16.gmra.mrb[0].mxu0 %v777
    %v3211 = vpop.f32.mrb[0].mxu0
    %v3212 = vadd.f32 %v3019, %v3211
    %v3213 = vpop.f32.mrb[0].mxu0
    %v3214 = vadd.f32 %v3021, %v3213
    %v3215 = vpop.f32.mrb[0].mxu0
    %v3216 = vadd.f32 %v3023, %v3215
    %v3217 = vpop.f32.mrb[0].mxu0
    %v3218 = vadd.f32 %v3025, %v3217
    %3219 = vmatprep.mubr.bf16.mxu0 %v785
    %3220 = vmatmul.mubr.bf16.gmra.mrb[0].mxu0 %v784
    %v3221 = vpop.f32.mrb[0].mxu0
    %v3222 = vadd.f32 %v3029, %v3221
    %v3223 = vpop.f32.mrb[0].mxu0
    %v3224 = vadd.f32 %v3031, %v3223
    %v3225 = vpop.f32.mrb[0].mxu0
    %v3226 = vadd.f32 %v3033, %v3225
    %v3227 = vpop.f32.mrb[0].mxu0
    %v3228 = vadd.f32 %v3035, %v3227
    %3229 = vmatprep.mubr.bf16.mxu0 %v792
    %3230 = vmatmul.mubr.bf16.gmra.mrb[0].mxu0 %v791
    %v3231 = vpop.f32.mrb[0].mxu0
    %v3232 = vadd.f32 %v3039, %v3231
    %v3233 = vpop.f32.mrb[0].mxu0
    %v3234 = vadd.f32 %v3041, %v3233
    %v3235 = vpop.f32.mrb[0].mxu0
    %v3236 = vadd.f32 %v3043, %v3235
    %v3237 = vpop.f32.mrb[0].mxu0
    %v3238 = vadd.f32 %v3045, %v3237
    %3239 = vmatprep.mubr.bf16.mxu0 %v799
    %3240 = vmatmul.mubr.bf16.gmra.mrb[0].mxu0 %v798
    %v3241 = vpop.f32.mrb[0].mxu0
    %v3242 = vadd.f32 %v3049, %v3241
    %v3243 = vpop.f32.mrb[0].mxu0
    %v3244 = vadd.f32 %v3051, %v3243
    %v3245 = vpop.f32.mrb[0].mxu0
    %v3246 = vadd.f32 %v3053, %v3245
    %v3247 = vpop.f32.mrb[0].mxu0
    %v3248 = vadd.f32 %v3055, %v3247
    %3249 = vmatprep.mubr.bf16.mxu0 %v806
    %3250 = vmatmul.mubr.bf16.gmra.mrb[0].mxu0 %v805
    %v3251 = vpop.f32.mrb[0].mxu0
    %v3252 = vadd.f32 %v3059, %v3251
    %v3253 = vpop.f32.mrb[0].mxu0
    %v3254 = vadd.f32 %v3061, %v3253
    %v3255 = vpop.f32.mrb[0].mxu0
    %v3256 = vadd.f32 %v3063, %v3255
    %v3257 = vpop.f32.mrb[0].mxu0
    %v3258 = vadd.f32 %v3065, %v3257
    %3259 = vmatprep.mubr.bf16.mxu0 %v813
    %3260 = vmatmul.mubr.bf16.gmra.mrb[0].mxu0 %v812
    %v3261 = vpop.f32.mrb[0].mxu0
    %v3262 = vadd.f32 %v3069, %v3261
    %v3263 = vpop.f32.mrb[0].mxu0
    %v3264 = vadd.f32 %v3071, %v3263
    %v3265 = vpop.f32.mrb[0].mxu0
    %v3266 = vadd.f32 %v3073, %v3265
    %v3267 = vpop.f32.mrb[0].mxu0
    %v3268 = vadd.f32 %v3075, %v3267
    %3269 = vmatprep.mubr.bf16.mxu0 %v820
    %3270 = vmatmul.mubr.bf16.gmra.mrb[0].mxu0 %v819
    %v3271 = vpop.f32.mrb[0].mxu0
    %v3272 = vadd.f32 %v3079, %v3271
    %v3273 = vpop.f32.mrb[0].mxu0
    %v3274 = vadd.f32 %v3081, %v3273
    %v3275 = vpop.f32.mrb[0].mxu0
    %v3276 = vadd.f32 %v3083, %v3275
    %v3277 = vpop.f32.mrb[0].mxu0
    %v3278 = vadd.f32 %v3085, %v3277
    %3279 = vmatprep.mubr.bf16.mxu0 %v827
    %3280 = vmatmul.mubr.bf16.gmra.mrb[0].mxu0 %v826
    %v3281 = vpop.f32.mrb[0].mxu0
    %v3282 = vadd.f32 %v3089, %v3281
    %v3283 = vpop.f32.mrb[0].mxu0
    %v3284 = vadd.f32 %v3091, %v3283
    %v3285 = vpop.f32.mrb[0].mxu0
    %v3286 = vadd.f32 %v3093, %v3285
    %v3287 = vpop.f32.mrb[0].mxu0
    %v3288 = vadd.f32 %v3095, %v3287
    %3289 = vmatprep.mubr.bf16.mxu0 %v834
    %3290 = vmatmul.mubr.bf16.gmra.mrb[0].mxu0 %v833
    %v3291 = vpop.f32.mrb[0].mxu0
    %v3292 = vadd.f32 %v3099, %v3291
    %v3293 = vpop.f32.mrb[0].mxu0
    %v3294 = vadd.f32 %v3101, %v3293
    %v3295 = vpop.f32.mrb[0].mxu0
    %v3296 = vadd.f32 %v3103, %v3295
    %v3297 = vpop.f32.mrb[0].mxu0
    %v3298 = vadd.f32 %v3105, %v3297
    %3299 = vmatprep.mubr.bf16.mxu0 %v841
    %3300 = vmatmul.mubr.bf16.gmra.mrb[0].mxu0 %v840
    %v3301 = vpop.f32.mrb[0].mxu0
    %v3302 = vadd.f32 %v3109, %v3301
    %v3303 = vpop.f32.mrb[0].mxu0
    %v3304 = vadd.f32 %v3111, %v3303
    %v3305 = vpop.f32.mrb[0].mxu0
    %v3306 = vadd.f32 %v3113, %v3305
    %v3307 = vpop.f32.mrb[0].mxu0
    %v3308 = vadd.f32 %v3115, %v3307
    %3309 = vmatprep.mubr.bf16.mxu0 %v848
    %3310 = vmatmul.mubr.bf16.gmra.mrb[0].mxu0 %v847
    %v3311 = vpop.f32.mrb[0].mxu0
    %v3312 = vadd.f32 %v3119, %v3311
    %v3313 = vpop.f32.mrb[0].mxu0
    %v3314 = vadd.f32 %v3121, %v3313
    %v3315 = vpop.f32.mrb[0].mxu0
    %v3316 = vadd.f32 %v3123, %v3315
    %v3317 = vpop.f32.mrb[0].mxu0
    %v3318 = vadd.f32 %v3125, %v3317
    %3319 = vmatprep.mubr.bf16.mxu0 %v855
    %3320 = vmatmul.mubr.bf16.gmra.mrb[0].mxu0 %v854
    %v3321 = vpop.f32.mrb[0].mxu0
    %v3322 = vadd.f32 %v3129, %v3321
    %v3323 = vpop.f32.mrb[0].mxu0
    %v3324 = vadd.f32 %v3131, %v3323
    %v3325 = vpop.f32.mrb[0].mxu0
    %v3326 = vadd.f32 %v3133, %v3325
    %v3327 = vpop.f32.mrb[0].mxu0
    %v3328 = vadd.f32 %v3135, %v3327
    %3329 = vmatprep.mubr.bf16.mxu0 %v862
    %3330 = vmatmul.mubr.bf16.gmra.mrb[0].mxu0 %v861
    %v3331 = vpop.f32.mrb[0].mxu0
    %v3332 = vadd.f32 %v3139, %v3331
    %v3333 = vpop.f32.mrb[0].mxu0
    %v3334 = vadd.f32 %v3141, %v3333
    %v3335 = vpop.f32.mrb[0].mxu0
    %v3336 = vadd.f32 %v3143, %v3335
    %v3337 = vpop.f32.mrb[0].mxu0
    %v3338 = vadd.f32 %v3145, %v3337
    %3339 = vdwg.mxu0
    %3340 = vmatprep.subr.bf16.mxu0 %v1743
    %3341 = vmatpush1.bf16.msra.mxu0 %v1742
    %3342 = vmatprep.subr.bf16.mxu0 0
    %3343 = vmatpush1.bf16.msra.mxu0 0
    %3344 = vmatprep.subr.bf16.mxu0 0
    %3345 = vmatpush1.bf16.msra.mxu0 0
    %3346 = vmatprep.subr.bf16.mxu0 0
    %3347 = vmatpush1.bf16.msra.mxu0 0
    %3348 = vmatprep.subr.bf16.mxu0 0
    %3349 = vmatpush1.bf16.msra.mxu0 0
    %3350 = vmatprep.subr.bf16.mxu0 0
    %3351 = vmatpush1.bf16.msra.mxu0 0
    %3352 = vmatprep.subr.bf16.mxu0 0
    %3353 = vmatpush1.bf16.msra.mxu0 0
    %3354 = vmatprep.subr.bf16.mxu0 0
    %3355 = vmatpush1.bf16.msra.mxu0 0
    %3356 = vmatprep.subr.bf16.mxu0 0
    %3357 = vmatpush1.bf16.msra.mxu0 0
    %3358 = vmatprep.subr.bf16.mxu0 0
    %3359 = vmatpush1.bf16.msra.mxu0 0
    %3360 = vmatprep.subr.bf16.mxu0 0
    %3361 = vmatpush1.bf16.msra.mxu0 0
    %3362 = vmatprep.subr.bf16.mxu0 0
    %3363 = vmatpush1.bf16.msra.mxu0 0
    %3364 = vmatprep.subr.bf16.mxu0 0
    %3365 = vmatpush1.bf16.msra.mxu0 0
    %3366 = vmatprep.subr.bf16.mxu0 0
    %3367 = vmatpush1.bf16.msra.mxu0 0
    %3368 = vmatprep.subr.bf16.mxu0 0
    %3369 = vmatpush1.bf16.msra.mxu0 0
    %3370 = vmatprep.subr.bf16.mxu0 0
    %3371 = vmatpush1.bf16.msra.mxu0 0
    %3372 = vmatprep.mubr.bf16.mxu0 0
    %3373 = vmatmul.mubr.bf16.gmra.mrb[0].mxu0 %v1942
    %v3374 = vpop.f32.mrb[0].mxu0
    %v3375 = vadd.f32 %v3182, %v3374
    %v3376 = vpop.f32.mrb[0].mxu0
    %v3377 = vadd.f32 %v3184, %v3376
    %v3378 = vpop.f32.mrb[0].mxu0
    %v3379 = vadd.f32 %v3186, %v3378
    %v3380 = vpop.f32.mrb[0].mxu0
    %v3381 = vadd.f32 %v3188, %v3380
    %3382 = vmatprep.mubr.bf16.mxu0 0
    %3383 = vmatmul.mubr.bf16.gmra.mrb[0].mxu0 %v1945
    %v3384 = vpop.f32.mrb[0].mxu0
    %v3385 = vadd.f32 %v3192, %v3384
    %v3386 = vpop.f32.mrb[0].mxu0
    %v3387 = vadd.f32 %v3194, %v3386
    %v3388 = vpop.f32.mrb[0].mxu0
    %v3389 = vadd.f32 %v3196, %v3388
    %v3390 = vpop.f32.mrb[0].mxu0
    %v3391 = vadd.f32 %v3198, %v3390
    %3392 = vmatprep.mubr.bf16.mxu0 0
    %3393 = vmatmul.mubr.bf16.gmra.mrb[0].mxu0 %v1948
    %v3394 = vpop.f32.mrb[0].mxu0
    %v3395 = vadd.f32 %v3202, %v3394
    %v3396 = vpop.f32.mrb[0].mxu0
    %v3397 = vadd.f32 %v3204, %v3396
    %v3398 = vpop.f32.mrb[0].mxu0
    %v3399 = vadd.f32 %v3206, %v3398
    %v3400 = vpop.f32.mrb[0].mxu0
    %v3401 = vadd.f32 %v3208, %v3400
    %3402 = vmatprep.mubr.bf16.mxu0 0
    %3403 = vmatmul.mubr.bf16.gmra.mrb[0].mxu0 %v1951
    %v3404 = vpop.f32.mrb[0].mxu0
    %v3405 = vadd.f32 %v3212, %v3404
    %v3406 = vpop.f32.mrb[0].mxu0
    %v3407 = vadd.f32 %v3214, %v3406
    %v3408 = vpop.f32.mrb[0].mxu0
    %v3409 = vadd.f32 %v3216, %v3408
    %v3410 = vpop.f32.mrb[0].mxu0
    %v3411 = vadd.f32 %v3218, %v3410
    %3412 = vmatprep.mubr.bf16.mxu0 0
    %3413 = vmatmul.mubr.bf16.gmra.mrb[0].mxu0 %v1954
    %v3414 = vpop.f32.mrb[0].mxu0
    %v3415 = vadd.f32 %v3222, %v3414
    %v3416 = vpop.f32.mrb[0].mxu0
    %v3417 = vadd.f32 %v3224, %v3416
    %v3418 = vpop.f32.mrb[0].mxu0
    %v3419 = vadd.f32 %v3226, %v3418
    %v3420 = vpop.f32.mrb[0].mxu0
    %v3421 = vadd.f32 %v3228, %v3420
    %3422 = vmatprep.mubr.bf16.mxu0 0
    %3423 = vmatmul.mubr.bf16.gmra.mrb[0].mxu0 %v1957
    %v3424 = vpop.f32.mrb[0].mxu0
    %v3425 = vadd.f32 %v3232, %v3424
    %v3426 = vpop.f32.mrb[0].mxu0
    %v3427 = vadd.f32 %v3234, %v3426
    %v3428 = vpop.f32.mrb[0].mxu0
    %v3429 = vadd.f32 %v3236, %v3428
    %v3430 = vpop.f32.mrb[0].mxu0
    %v3431 = vadd.f32 %v3238, %v3430
    %3432 = vmatprep.mubr.bf16.mxu0 0
    %3433 = vmatmul.mubr.bf16.gmra.mrb[0].mxu0 %v1960
    %v3434 = vpop.f32.mrb[0].mxu0
    %v3435 = vadd.f32 %v3242, %v3434
    %v3436 = vpop.f32.mrb[0].mxu0
    %v3437 = vadd.f32 %v3244, %v3436
    %v3438 = vpop.f32.mrb[0].mxu0
    %v3439 = vadd.f32 %v3246, %v3438
    %v3440 = vpop.f32.mrb[0].mxu0
    %v3441 = vadd.f32 %v3248, %v3440
    %3442 = vmatprep.mubr.bf16.mxu0 0
    %3443 = vmatmul.mubr.bf16.gmra.mrb[0].mxu0 %v1963
    %v3444 = vpop.f32.mrb[0].mxu0
    %v3445 = vadd.f32 %v3252, %v3444
    %v3446 = vpop.f32.mrb[0].mxu0
    %v3447 = vadd.f32 %v3254, %v3446
    %v3448 = vpop.f32.mrb[0].mxu0
    %v3449 = vadd.f32 %v3256, %v3448
    %v3450 = vpop.f32.mrb[0].mxu0
    %v3451 = vadd.f32 %v3258, %v3450
    %3452 = vmatprep.mubr.bf16.mxu0 0
    %3453 = vmatmul.mubr.bf16.gmra.mrb[0].mxu0 %v1966
    %v3454 = vpop.f32.mrb[0].mxu0
    %v3455 = vadd.f32 %v3262, %v3454
    %v3456 = vpop.f32.mrb[0].mxu0
    %v3457 = vadd.f32 %v3264, %v3456
    %v3458 = vpop.f32.mrb[0].mxu0
    %v3459 = vadd.f32 %v3266, %v3458
    %v3460 = vpop.f32.mrb[0].mxu0
    %v3461 = vadd.f32 %v3268, %v3460
    %3462 = vmatprep.mubr.bf16.mxu0 0
    %3463 = vmatmul.mubr.bf16.gmra.mrb[0].mxu0 %v1969
    %v3464 = vpop.f32.mrb[0].mxu0
    %v3465 = vadd.f32 %v3272, %v3464
    %v3466 = vpop.f32.mrb[0].mxu0
    %v3467 = vadd.f32 %v3274, %v3466
    %v3468 = vpop.f32.mrb[0].mxu0
    %v3469 = vadd.f32 %v3276, %v3468
    %v3470 = vpop.f32.mrb[0].mxu0
    %v3471 = vadd.f32 %v3278, %v3470
    %3472 = vmatprep.mubr.bf16.mxu0 0
    %3473 = vmatmul.mubr.bf16.gmra.mrb[0].mxu0 %v1972
    %v3474 = vpop.f32.mrb[0].mxu0
    %v3475 = vadd.f32 %v3282, %v3474
    %v3476 = vpop.f32.mrb[0].mxu0
    %v3477 = vadd.f32 %v3284, %v3476
    %v3478 = vpop.f32.mrb[0].mxu0
    %v3479 = vadd.f32 %v3286, %v3478
    %v3480 = vpop.f32.mrb[0].mxu0
    %v3481 = vadd.f32 %v3288, %v3480
    %3482 = vmatprep.mubr.bf16.mxu0 0
    %3483 = vmatmul.mubr.bf16.gmra.mrb[0].mxu0 %v1975
    %v3484 = vpop.f32.mrb[0].mxu0
    %v3485 = vadd.f32 %v3292, %v3484
    %v3486 = vpop.f32.mrb[0].mxu0
    %v3487 = vadd.f32 %v3294, %v3486
    %v3488 = vpop.f32.mrb[0].mxu0
    %v3489 = vadd.f32 %v3296, %v3488
    %v3490 = vpop.f32.mrb[0].mxu0
    %v3491 = vadd.f32 %v3298, %v3490
    %3492 = vmatprep.mubr.bf16.mxu0 0
    %3493 = vmatmul.mubr.bf16.gmra.mrb[0].mxu0 %v1978
    %v3494 = vpop.f32.mrb[0].mxu0
    %v3495 = vadd.f32 %v3302, %v3494
    %v3496 = vpop.f32.mrb[0].mxu0
    %v3497 = vadd.f32 %v3304, %v3496
    %v3498 = vpop.f32.mrb[0].mxu0
    %v3499 = vadd.f32 %v3306, %v3498
    %v3500 = vpop.f32.mrb[0].mxu0
    %v3501 = vadd.f32 %v3308, %v3500
    %3502 = vmatprep.mubr.bf16.mxu0 0
    %3503 = vmatmul.mubr.bf16.gmra.mrb[0].mxu0 %v1981
    %v3504 = vpop.f32.mrb[0].mxu0
    %v3505 = vadd.f32 %v3312, %v3504
    %v3506 = vpop.f32.mrb[0].mxu0
    %v3507 = vadd.f32 %v3314, %v3506
    %v3508 = vpop.f32.mrb[0].mxu0
    %v3509 = vadd.f32 %v3316, %v3508
    %v3510 = vpop.f32.mrb[0].mxu0
    %v3511 = vadd.f32 %v3318, %v3510
    %3512 = vmatprep.mubr.bf16.mxu0 0
    %3513 = vmatmul.mubr.bf16.gmra.mrb[0].mxu0 %v1984
    %v3514 = vpop.f32.mrb[0].mxu0
    %v3515 = vadd.f32 %v3322, %v3514
    %v3516 = vpop.f32.mrb[0].mxu0
    %v3517 = vadd.f32 %v3324, %v3516
    %v3518 = vpop.f32.mrb[0].mxu0
    %v3519 = vadd.f32 %v3326, %v3518
    %v3520 = vpop.f32.mrb[0].mxu0
    %v3521 = vadd.f32 %v3328, %v3520
    %3522 = vmatprep.mubr.bf16.mxu0 0
    %3523 = vmatmul.mubr.bf16.gmra.mrb[0].mxu0 %v1987
    %v3524 = vpop.f32.mrb[0].mxu0
    %v3525 = vadd.f32 %v3332, %v3524
    %v3526 = vpop.f32.mrb[0].mxu0
    %v3527 = vadd.f32 %v3334, %v3526
    %v3528 = vpop.f32.mrb[0].mxu0
    %v3529 = vadd.f32 %v3336, %v3528
    %v3530 = vpop.f32.mrb[0].mxu0
    %v3531 = vadd.f32 %v3338, %v3530
    %3532 = vdwg.mxu0
    %v3533 = vmax.f32 %v2603, 0.0
    %v3534 = vmax.f32 %v2605, 0.0
    %v3535 = vmax.f32 %v3375, 0.0
    %v3536 = vmax.f32 %v3377, 0.0
    %v3537 = vmax.f32 %v2607, 0.0
    %v3538 = vmax.f32 %v2609, 0.0
    %v3539 = vmax.f32 %v3379, 0.0
    %v3540 = vmax.f32 %v3381, 0.0
    %v3541 = vmax.f32 %v2613, 0.0
    %v3542 = vmax.f32 %v2615, 0.0
    %v3543 = vmax.f32 %v3385, 0.0
    %v3544 = vmax.f32 %v3387, 0.0
    %v3545 = vmax.f32 %v2617, 0.0
    %v3546 = vmax.f32 %v2619, 0.0
    %v3547 = vmax.f32 %v3389, 0.0
    %v3548 = vmax.f32 %v3391, 0.0
    %v3549 = vmax.f32 %v2623, 0.0
    %v3550 = vmax.f32 %v2625, 0.0
    %v3551 = vmax.f32 %v3395, 0.0
    %v3552 = vmax.f32 %v3397, 0.0
    %v3553 = vmax.f32 %v2627, 0.0
    %v3554 = vmax.f32 %v2629, 0.0
    %v3555 = vmax.f32 %v3399, 0.0
    %v3556 = vmax.f32 %v3401, 0.0
    %v3557 = vmax.f32 %v2633, 0.0
    %v3558 = vmax.f32 %v2635, 0.0
    %v3559 = vmax.f32 %v3405, 0.0
    %v3560 = vmax.f32 %v3407, 0.0
    %v3561 = vmax.f32 %v2637, 0.0
    %v3562 = vmax.f32 %v2639, 0.0
    %v3563 = vmax.f32 %v3409, 0.0
    %v3564 = vmax.f32 %v3411, 0.0
    %v3565 = vmax.f32 %v2643, 0.0
    %v3566 = vmax.f32 %v2645, 0.0
    %v3567 = vmax.f32 %v3415, 0.0
    %v3568 = vmax.f32 %v3417, 0.0
    %v3569 = vmax.f32 %v2647, 0.0
    %v3570 = vmax.f32 %v2649, 0.0
    %v3571 = vmax.f32 %v3419, 0.0
    %v3572 = vmax.f32 %v3421, 0.0
    %v3573 = vmax.f32 %v2653, 0.0
    %v3574 = vmax.f32 %v2655, 0.0
    %v3575 = vmax.f32 %v3425, 0.0
    %v3576 = vmax.f32 %v3427, 0.0
    %v3577 = vmax.f32 %v2657, 0.0
    %v3578 = vmax.f32 %v2659, 0.0
    %v3579 = vmax.f32 %v3429, 0.0
    %v3580 = vmax.f32 %v3431, 0.0
    %v3581 = vmax.f32 %v2663, 0.0
    %v3582 = vmax.f32 %v2665, 0.0
    %v3583 = vmax.f32 %v3435, 0.0
    %v3584 = vmax.f32 %v3437, 0.0
    %v3585 = vmax.f32 %v2667, 0.0
    %v3586 = vmax.f32 %v2669, 0.0
    %v3587 = vmax.f32 %v3439, 0.0
    %v3588 = vmax.f32 %v3441, 0.0
    %v3589 = vmax.f32 %v2673, 0.0
    %v3590 = vmax.f32 %v2675, 0.0
    %v3591 = vmax.f32 %v3445, 0.0
    %v3592 = vmax.f32 %v3447, 0.0
    %v3593 = vmax.f32 %v2677, 0.0
    %v3594 = vmax.f32 %v2679, 0.0
    %v3595 = vmax.f32 %v3449, 0.0
    %v3596 = vmax.f32 %v3451, 0.0
    %v3597 = vmax.f32 %v2683, 0.0
    %v3598 = vmax.f32 %v2685, 0.0
    %v3599 = vmax.f32 %v3455, 0.0
    %v3600 = vmax.f32 %v3457, 0.0
    %v3601 = vmax.f32 %v2687, 0.0
    %v3602 = vmax.f32 %v2689, 0.0
    %v3603 = vmax.f32 %v3459, 0.0
    %v3604 = vmax.f32 %v3461, 0.0
    %v3605 = vmax.f32 %v2693, 0.0
    %v3606 = vmax.f32 %v2695, 0.0
    %v3607 = vmax.f32 %v3465, 0.0
    %v3608 = vmax.f32 %v3467, 0.0
    %v3609 = vmax.f32 %v2697, 0.0
    %v3610 = vmax.f32 %v2699, 0.0
    %v3611 = vmax.f32 %v3469, 0.0
    %v3612 = vmax.f32 %v3471, 0.0
    %v3613 = vmax.f32 %v2703, 0.0
    %v3614 = vmax.f32 %v2705, 0.0
    %v3615 = vmax.f32 %v3475, 0.0
    %v3616 = vmax.f32 %v3477, 0.0
    %v3617 = vmax.f32 %v2707, 0.0
    %v3618 = vmax.f32 %v2709, 0.0
    %v3619 = vmax.f32 %v3479, 0.0
    %v3620 = vmax.f32 %v3481, 0.0
    %v3621 = vmax.f32 %v2713, 0.0
    %v3622 = vmax.f32 %v2715, 0.0
    %v3623 = vmax.f32 %v3485, 0.0
    %v3624 = vmax.f32 %v3487, 0.0
    %v3625 = vmax.f32 %v2717, 0.0
    %v3626 = vmax.f32 %v2719, 0.0
    %v3627 = vmax.f32 %v3489, 0.0
    %v3628 = vmax.f32 %v3491, 0.0
    %v3629 = vmax.f32 %v2723, 0.0
    %v3630 = vmax.f32 %v2725, 0.0
    %v3631 = vmax.f32 %v3495, 0.0
    %v3632 = vmax.f32 %v3497, 0.0
    %v3633 = vmax.f32 %v2727, 0.0
    %v3634 = vmax.f32 %v2729, 0.0
    %v3635 = vmax.f32 %v3499, 0.0
    %v3636 = vmax.f32 %v3501, 0.0
    %v3637 = vmax.f32 %v2733, 0.0
    %v3638 = vmax.f32 %v2735, 0.0
    %v3639 = vmax.f32 %v3505, 0.0
    %v3640 = vmax.f32 %v3507, 0.0
    %v3641 = vmax.f32 %v2737, 0.0
    %v3642 = vmax.f32 %v2739, 0.0
    %v3643 = vmax.f32 %v3509, 0.0
    %v3644 = vmax.f32 %v3511, 0.0
    %v3645 = vmax.f32 %v2743, 0.0
    %v3646 = vmax.f32 %v2745, 0.0
    %v3647 = vmax.f32 %v3515, 0.0
    %v3648 = vmax.f32 %v3517, 0.0
    %v3649 = vmax.f32 %v2747, 0.0
    %v3650 = vmax.f32 %v2749, 0.0
    %v3651 = vmax.f32 %v3519, 0.0
    %v3652 = vmax.f32 %v3521, 0.0
    %v3653 = vmax.f32 %v2753, 0.0
    %v3654 = vmax.f32 %v2755, 0.0
    %v3655 = vmax.f32 %v3525, 0.0
    %v3656 = vmax.f32 %v3527, 0.0
    %v3657 = vmax.f32 %v2757, 0.0
    %v3658 = vmax.f32 %v2759, 0.0
    %v3659 = vmax.f32 %v3529, 0.0
    %v3660 = vmax.f32 %v3531, 0.0
    %v3661 = vpack.c.bf16 %v3537, %v3533
    %v3662 = vpack.c.bf16 %v3538, %v3534
    %v3663 = vpack.c.bf16 %v3539, %v3535
    %v3664 = vpack.c.bf16 %v3540, %v3536
    %v3665 = vpack.c.bf16 %v3545, %v3541
    %v3666 = vpack.c.bf16 %v3546, %v3542
    %v3667 = vpack.c.bf16 %v3547, %v3543
    %v3668 = vpack.c.bf16 %v3548, %v3544
    %v3669 = vpack.c.bf16 %v3553, %v3549
    %v3670 = vpack.c.bf16 %v3554, %v3550
    %v3671 = vpack.c.bf16 %v3555, %v3551
    %v3672 = vpack.c.bf16 %v3556, %v3552
    %v3673 = vpack.c.bf16 %v3561, %v3557
    %v3674 = vpack.c.bf16 %v3562, %v3558
    %v3675 = vpack.c.bf16 %v3563, %v3559
    %v3676 = vpack.c.bf16 %v3564, %v3560
    %v3677 = vpack.c.bf16 %v3569, %v3565
    %v3678 = vpack.c.bf16 %v3570, %v3566
    %v3679 = vpack.c.bf16 %v3571, %v3567
    %v3680 = vpack.c.bf16 %v3572, %v3568
    %v3681 = vpack.c.bf16 %v3577, %v3573
    %v3682 = vpack.c.bf16 %v3578, %v3574
    %v3683 = vpack.c.bf16 %v3579, %v3575
    %v3684 = vpack.c.bf16 %v3580, %v3576
    %v3685 = vpack.c.bf16 %v3585, %v3581
    %v3686 = vpack.c.bf16 %v3586, %v3582
    %v3687 = vpack.c.bf16 %v3587, %v3583
    %v3688 = vpack.c.bf16 %v3588, %v3584
    %v3689 = vpack.c.bf16 %v3593, %v3589
    %v3690 = vpack.c.bf16 %v3594, %v3590
    %v3691 = vpack.c.bf16 %v3595, %v3591
    %v3692 = vpack.c.bf16 %v3596, %v3592
    %v3693 = vpack.c.bf16 %v3601, %v3597
    %v3694 = vpack.c.bf16 %v3602, %v3598
    %v3695 = vpack.c.bf16 %v3603, %v3599
    %v3696 = vpack.c.bf16 %v3604, %v3600
    %v3697 = vpack.c.bf16 %v3609, %v3605
    %v3698 = vpack.c.bf16 %v3610, %v3606
    %v3699 = vpack.c.bf16 %v3611, %v3607
    %v3700 = vpack.c.bf16 %v3612, %v3608
    %v3701 = vpack.c.bf16 %v3617, %v3613
    %v3702 = vpack.c.bf16 %v3618, %v3614
    %v3703 = vpack.c.bf16 %v3619, %v3615
    %v3704 = vpack.c.bf16 %v3620, %v3616
    %v3705 = vpack.c.bf16 %v3625, %v3621
    %v3706 = vpack.c.bf16 %v3626, %v3622
    %v3707 = vpack.c.bf16 %v3627, %v3623
    %v3708 = vpack.c.bf16 %v3628, %v3624
    %v3709 = vpack.c.bf16 %v3633, %v3629
    %v3710 = vpack.c.bf16 %v3634, %v3630
    %v3711 = vpack.c.bf16 %v3635, %v3631
    %v3712 = vpack.c.bf16 %v3636, %v3632
    %v3713 = vpack.c.bf16 %v3641, %v3637
    %v3714 = vpack.c.bf16 %v3642, %v3638
    %v3715 = vpack.c.bf16 %v3643, %v3639
    %v3716 = vpack.c.bf16 %v3644, %v3640
    %v3717 = vpack.c.bf16 %v3649, %v3645
    %v3718 = vpack.c.bf16 %v3650, %v3646
    %v3719 = vpack.c.bf16 %v3651, %v3647
    %v3720 = vpack.c.bf16 %v3652, %v3648
    %v3721 = vpack.c.bf16 %v3657, %v3653
    %v3722 = vpack.c.bf16 %v3658, %v3654
    %v3723 = vpack.c.bf16 %v3659, %v3655
    %v3724 = vpack.c.bf16 %v3660, %v3656
    %v3725 = vld [vmem:[#allocation2] sm:$0xff]
    %v3726 = vld [vmem:[#allocation2 + $0x8] sm:$0xff]
    %v3727 = vld [vmem:[#allocation2 + $0x10] sm:$0xff]
    %v3728 = vld [vmem:[#allocation2 + $0x18] sm:$0xff]
    %v3729 = vld [vmem:[#allocation2 + $0x20] sm:$0xff]
    %v3730 = vld [vmem:[#allocation2 + $0x28] sm:$0xff]
    %v3731 = vld [vmem:[#allocation2 + $0x30] sm:$0xff]
    %v3732 = vld [vmem:[#allocation2 + $0x38] sm:$0xff]
    %v3733 = vld [vmem:[#allocation2 + $0x40] sm:$0xff]
    %v3734 = vld [vmem:[#allocation2 + $0x48] sm:$0xff]
    %v3735 = vld [vmem:[#allocation2 + $0x50] sm:$0xff]
    %v3736 = vld [vmem:[#allocation2 + $0x58] sm:$0xff]
    %v3737 = vld [vmem:[#allocation2 + $0x60] sm:$0xff]
    %v3738 = vld [vmem:[#allocation2 + $0x68] sm:$0xff]
    %v3739 = vld [vmem:[#allocation2 + $0x70] sm:$0xff]
    %v3740 = vld [vmem:[#allocation2 + $0x78] sm:$0xff]
    %v3741 = vld [vmem:[#allocation2 + $0x80] sm:$0xff]
    %v3742 = vld [vmem:[#allocation2 + $0x88] sm:$0xff]
    %v3743 = vld [vmem:[#allocation2 + $0x90] sm:$0xff]
    %v3744 = vld [vmem:[#allocation2 + $0x98] sm:$0xff]
    %v3745 = vld [vmem:[#allocation2 + $0xa0] sm:$0xff]
    %v3746 = vld [vmem:[#allocation2 + $0xa8] sm:$0xff]
    %v3747 = vld [vmem:[#allocation2 + $0xb0] sm:$0xff]
    %v3748 = vld [vmem:[#allocation2 + $0xb8] sm:$0xff]
    %v3749 = vld [vmem:[#allocation2 + $0xc0] sm:$0xff]
    %v3750 = vld [vmem:[#allocation2 + $0xc8] sm:$0xff]
    %v3751 = vld [vmem:[#allocation2 + $0xd0] sm:$0xff]
    %v3752 = vld [vmem:[#allocation2 + $0xd8] sm:$0xff]
    %v3753 = vld [vmem:[#allocation2 + $0xe0] sm:$0xff]
    %v3754 = vld [vmem:[#allocation2 + $0xe8] sm:$0xff]
    %v3755 = vld [vmem:[#allocation2 + $0xf0] sm:$0xff]
    %v3756 = vld [vmem:[#allocation2 + $0xf8] sm:$0xff]
    %v3757 = vld [vmem:[#allocation2 + $0x100] sm:$0xff]
    %v3758 = vld [vmem:[#allocation2 + $0x108] sm:$0xff]
    %v3759 = vld [vmem:[#allocation2 + $0x110] sm:$0xff]
    %v3760 = vld [vmem:[#allocation2 + $0x118] sm:$0xff]
    %v3761 = vld [vmem:[#allocation2 + $0x120] sm:$0xff]
    %v3762 = vld [vmem:[#allocation2 + $0x128] sm:$0xff]
    %v3763 = vld [vmem:[#allocation2 + $0x130] sm:$0xff]
    %v3764 = vld [vmem:[#allocation2 + $0x138] sm:$0xff]
    %v3765 = vld [vmem:[#allocation2 + $0x140] sm:$0xff]
    %v3766 = vld [vmem:[#allocation2 + $0x148] sm:$0xff]
    %v3767 = vld [vmem:[#allocation2 + $0x150] sm:$0xff]
    %v3768 = vld [vmem:[#allocation2 + $0x158] sm:$0xff]
    %v3769 = vld [vmem:[#allocation2 + $0x160] sm:$0xff]
    %v3770 = vld [vmem:[#allocation2 + $0x168] sm:$0xff]
    %v3771 = vld [vmem:[#allocation2 + $0x170] sm:$0xff]
    %v3772 = vld [vmem:[#allocation2 + $0x178] sm:$0xff]
    %v3773 = vld [vmem:[#allocation2 + $0x180] sm:$0xff]
    %v3774 = vld [vmem:[#allocation2 + $0x188] sm:$0xff]
    %v3775 = vld [vmem:[#allocation2 + $0x190] sm:$0xff]
    %v3776 = vld [vmem:[#allocation2 + $0x198] sm:$0xff]
    %v3777 = vld [vmem:[#allocation2 + $0x1a0] sm:$0xff]
    %v3778 = vld [vmem:[#allocation2 + $0x1a8] sm:$0xff]
    %v3779 = vld [vmem:[#allocation2 + $0x1b0] sm:$0xff]
    %v3780 = vld [vmem:[#allocation2 + $0x1b8] sm:$0xff]
    %v3781 = vld [vmem:[#allocation2 + $0x1c0] sm:$0xff]
    %v3782 = vld [vmem:[#allocation2 + $0x1c8] sm:$0xff]
    %v3783 = vld [vmem:[#allocation2 + $0x1d0] sm:$0xff]
    %v3784 = vld [vmem:[#allocation2 + $0x1d8] sm:$0xff]
    %v3785 = vld [vmem:[#allocation2 + $0x1e0] sm:$0xff]
    %v3786 = vld [vmem:[#allocation2 + $0x1e8] sm:$0xff]
    %v3787 = vld [vmem:[#allocation2 + $0x1f0] sm:$0xff]
    %v3788 = vld [vmem:[#allocation2 + $0x1f8] sm:$0xff]
    %v3789 = vld [vmem:[%s4] sm:$0x3]
    %v3791 = vlaneseq
    %v3792 = vshrl.u32 %v3791, 7
    %v3793 = vsub.s32 0, %v3792
    %v3794 = vrot.slane %v3789, %v3793
    %v3795 = vlaneseq
    %v3796 = vshrl.u32 %v3795, 7
    %v3797 = vsub.s32 1, %v3796
    %v3798 = vrot.slane %v3789, %v3797
    %v3865 = vunpack.c.l.b16 %v3725
    %v3866 = vunpack.c.h.b16 %v3725
    %v3867 = vunpack.c.l.b16 %v3726
    %v3868 = vunpack.c.h.b16 %v3726
    %v3869 = vunpack.c.l.b16 %v3727
    %v3870 = vunpack.c.h.b16 %v3727
    %v3871 = vunpack.c.l.b16 %v3728
    %v3872 = vunpack.c.h.b16 %v3728
    %v3873 = vunpack.c.l.b16 %v3729
    %v3874 = vunpack.c.h.b16 %v3729
    %v3875 = vunpack.c.l.b16 %v3730
    %v3876 = vunpack.c.h.b16 %v3730
    %v3877 = vunpack.c.l.b16 %v3731
    %v3878 = vunpack.c.h.b16 %v3731
    %v3879 = vunpack.c.l.b16 %v3732
    %v3880 = vunpack.c.h.b16 %v3732
    %v3881 = vunpack.c.l.b16 %v3733
    %v3882 = vunpack.c.h.b16 %v3733
    %v3883 = vunpack.c.l.b16 %v3734
    %v3884 = vunpack.c.h.b16 %v3734
    %v3885 = vunpack.c.l.b16 %v3735
    %v3886 = vunpack.c.h.b16 %v3735
    %v3887 = vunpack.c.l.b16 %v3736
    %v3888 = vunpack.c.h.b16 %v3736
    %v3889 = vunpack.c.l.b16 %v3737
    %v3890 = vunpack.c.h.b16 %v3737
    %v3891 = vunpack.c.l.b16 %v3738
    %v3892 = vunpack.c.h.b16 %v3738
    %v3893 = vunpack.c.l.b16 %v3739
    %v3894 = vunpack.c.h.b16 %v3739
    %v3895 = vunpack.c.l.b16 %v3740
    %v3896 = vunpack.c.h.b16 %v3740
    %v3897 = vunpack.c.l.b16 %v3741
    %v3898 = vunpack.c.h.b16 %v3741
    %v3899 = vunpack.c.l.b16 %v3742
    %v3900 = vunpack.c.h.b16 %v3742
    %v3901 = vunpack.c.l.b16 %v3743
    %v3902 = vunpack.c.h.b16 %v3743
    %v3903 = vunpack.c.l.b16 %v3744
    %v3904 = vunpack.c.h.b16 %v3744
    %v3905 = vunpack.c.l.b16 %v3745
    %v3906 = vunpack.c.h.b16 %v3745
    %v3907 = vunpack.c.l.b16 %v3746
    %v3908 = vunpack.c.h.b16 %v3746
    %v3909 = vunpack.c.l.b16 %v3747
    %v3910 = vunpack.c.h.b16 %v3747
    %v3911 = vunpack.c.l.b16 %v3748
    %v3912 = vunpack.c.h.b16 %v3748
    %v3913 = vunpack.c.l.b16 %v3749
    %v3914 = vunpack.c.h.b16 %v3749
    %v3915 = vunpack.c.l.b16 %v3750
    %v3916 = vunpack.c.h.b16 %v3750
    %v3917 = vunpack.c.l.b16 %v3751
    %v3918 = vunpack.c.h.b16 %v3751
    %v3919 = vunpack.c.l.b16 %v3752
    %v3920 = vunpack.c.h.b16 %v3752
    %v3921 = vunpack.c.l.b16 %v3753
    %v3922 = vunpack.c.h.b16 %v3753
    %v3923 = vunpack.c.l.b16 %v3754
    %v3924 = vunpack.c.h.b16 %v3754
    %v3925 = vunpack.c.l.b16 %v3755
    %v3926 = vunpack.c.h.b16 %v3755
    %v3927 = vunpack.c.l.b16 %v3756
    %v3928 = vunpack.c.h.b16 %v3756
    %v3929 = vunpack.c.l.b16 %v3757
    %v3930 = vunpack.c.h.b16 %v3757
    %v3931 = vunpack.c.l.b16 %v3758
    %v3932 = vunpack.c.h.b16 %v3758
    %v3933 = vunpack.c.l.b16 %v3759
    %v3934 = vunpack.c.h.b16 %v3759
    %v3935 = vunpack.c.l.b16 %v3760
    %v3936 = vunpack.c.h.b16 %v3760
    %v3937 = vunpack.c.l.b16 %v3761
    %v3938 = vunpack.c.h.b16 %v3761
    %v3939 = vunpack.c.l.b16 %v3762
    %v3940 = vunpack.c.h.b16 %v3762
    %v3941 = vunpack.c.l.b16 %v3763
    %v3942 = vunpack.c.h.b16 %v3763
    %v3943 = vunpack.c.l.b16 %v3764
    %v3944 = vunpack.c.h.b16 %v3764
    %v3945 = vunpack.c.l.b16 %v3765
    %v3946 = vunpack.c.h.b16 %v3765
    %v3947 = vunpack.c.l.b16 %v3766
    %v3948 = vunpack.c.h.b16 %v3766
    %v3949 = vunpack.c.l.b16 %v3767
    %v3950 = vunpack.c.h.b16 %v3767
    %v3951 = vunpack.c.l.b16 %v3768
    %v3952 = vunpack.c.h.b16 %v3768
    %v3953 = vunpack.c.l.b16 %v3769
    %v3954 = vunpack.c.h.b16 %v3769
    %v3955 = vunpack.c.l.b16 %v3770
    %v3956 = vunpack.c.h.b16 %v3770
    %v3957 = vunpack.c.l.b16 %v3771
    %v3958 = vunpack.c.h.b16 %v3771
    %v3959 = vunpack.c.l.b16 %v3772
    %v3960 = vunpack.c.h.b16 %v3772
    %v3961 = vunpack.c.l.b16 %v3773
    %v3962 = vunpack.c.h.b16 %v3773
    %v3963 = vunpack.c.l.b16 %v3774
    %v3964 = vunpack.c.h.b16 %v3774
    %v3965 = vunpack.c.l.b16 %v3775
    %v3966 = vunpack.c.h.b16 %v3775
    %v3967 = vunpack.c.l.b16 %v3776
    %v3968 = vunpack.c.h.b16 %v3776
    %v3969 = vunpack.c.l.b16 %v3777
    %v3970 = vunpack.c.h.b16 %v3777
    %v3971 = vunpack.c.l.b16 %v3778
    %v3972 = vunpack.c.h.b16 %v3778
    %v3973 = vunpack.c.l.b16 %v3779
    %v3974 = vunpack.c.h.b16 %v3779
    %v3975 = vunpack.c.l.b16 %v3780
    %v3976 = vunpack.c.h.b16 %v3780
    %v3977 = vunpack.c.l.b16 %v3781
    %v3978 = vunpack.c.h.b16 %v3781
    %v3979 = vunpack.c.l.b16 %v3782
    %v3980 = vunpack.c.h.b16 %v3782
    %v3981 = vunpack.c.l.b16 %v3783
    %v3982 = vunpack.c.h.b16 %v3783
    %v3983 = vunpack.c.l.b16 %v3784
    %v3984 = vunpack.c.h.b16 %v3784
    %v3985 = vunpack.c.l.b16 %v3785
    %v3986 = vunpack.c.h.b16 %v3785
    %v3987 = vunpack.c.l.b16 %v3786
    %v3988 = vunpack.c.h.b16 %v3786
    %v3989 = vunpack.c.l.b16 %v3787
    %v3990 = vunpack.c.h.b16 %v3787
    %v3991 = vunpack.c.l.b16 %v3788
    %v3992 = vunpack.c.h.b16 %v3788
    %v3993 = vpack.c.b16 %v3867, %v3865
    %v3994 = vpack.c.b16 %v3868, %v3866
    %v3995 = vpack.c.b16 %v3871, %v3869
    %v3996 = vpack.c.b16 %v3872, %v3870
    %v3997 = vpack.c.b16 %v3875, %v3873
    %v3998 = vpack.c.b16 %v3876, %v3874
    %v3999 = vpack.c.b16 %v3879, %v3877
    %v4000 = vpack.c.b16 %v3880, %v3878
    %v4001 = vpack.c.b16 %v3883, %v3881
    %v4002 = vpack.c.b16 %v3884, %v3882
    %v4003 = vpack.c.b16 %v3887, %v3885
    %v4004 = vpack.c.b16 %v3888, %v3886
    %v4005 = vpack.c.b16 %v3891, %v3889
    %v4006 = vpack.c.b16 %v3892, %v3890
    %v4007 = vpack.c.b16 %v3895, %v3893
    %v4008 = vpack.c.b16 %v3896, %v3894
    %v4009 = vpack.c.b16 %v3899, %v3897
    %v4010 = vpack.c.b16 %v3900, %v3898
    %v4011 = vpack.c.b16 %v3903, %v3901
    %v4012 = vpack.c.b16 %v3904, %v3902
    %v4013 = vpack.c.b16 %v3907, %v3905
    %v4014 = vpack.c.b16 %v3908, %v3906
    %v4015 = vpack.c.b16 %v3911, %v3909
    %v4016 = vpack.c.b16 %v3912, %v3910
    %v4017 = vpack.c.b16 %v3915, %v3913
    %v4018 = vpack.c.b16 %v3916, %v3914
    %v4019 = vpack.c.b16 %v3919, %v3917
    %v4020 = vpack.c.b16 %v3920, %v3918
    %v4021 = vpack.c.b16 %v3923, %v3921
    %v4022 = vpack.c.b16 %v3924, %v3922
    %v4023 = vpack.c.b16 %v3927, %v3925
    %v4024 = vpack.c.b16 %v3928, %v3926
    %v4025 = vpack.c.b16 %v3931, %v3929
    %v4026 = vpack.c.b16 %v3932, %v3930
    %v4027 = vpack.c.b16 %v3935, %v3933
    %v4028 = vpack.c.b16 %v3936, %v3934
    %v4029 = vpack.c.b16 %v3939, %v3937
    %v4030 = vpack.c.b16 %v3940, %v3938
    %v4031 = vpack.c.b16 %v3943, %v3941
    %v4032 = vpack.c.b16 %v3944, %v3942
    %v4033 = vpack.c.b16 %v3947, %v3945
    %v4034 = vpack.c.b16 %v3948, %v3946
    %v4035 = vpack.c.b16 %v3951, %v3949
    %v4036 = vpack.c.b16 %v3952, %v3950
    %v4037 = vpack.c.b16 %v3955, %v3953
    %v4038 = vpack.c.b16 %v3956, %v3954
    %v4039 = vpack.c.b16 %v3959, %v3957
    %v4040 = vpack.c.b16 %v3960, %v3958
    %v4041 = vpack.c.b16 %v3963, %v3961
    %v4042 = vpack.c.b16 %v3964, %v3962
    %v4043 = vpack.c.b16 %v3967, %v3965
    %v4044 = vpack.c.b16 %v3968, %v3966
    %v4045 = vpack.c.b16 %v3971, %v3969
    %v4046 = vpack.c.b16 %v3972, %v3970
    %v4047 = vpack.c.b16 %v3975, %v3973
    %v4048 = vpack.c.b16 %v3976, %v3974
    %v4049 = vpack.c.b16 %v3979, %v3977
    %v4050 = vpack.c.b16 %v3980, %v3978
    %v4051 = vpack.c.b16 %v3983, %v3981
    %v4052 = vpack.c.b16 %v3984, %v3982
    %v4053 = vpack.c.b16 %v3987, %v3985
    %v4054 = vpack.c.b16 %v3988, %v3986
    %v4055 = vpack.c.b16 %v3991, %v3989
    %v4056 = vpack.c.b16 %v3992, %v3990
    %4121 = vmatprep.subr.bf16.mxu0 %v3994
    %4122 = vmatpush1.bf16.msra.mxu0 %v3993
    %4123 = vmatprep.subr.bf16.mxu0 %v3996
    %4124 = vmatpush1.bf16.msra.mxu0 %v3995
    %4125 = vmatprep.subr.bf16.mxu0 %v3998
    %4126 = vmatpush1.bf16.msra.mxu0 %v3997
    %4127 = vmatprep.subr.bf16.mxu0 %v4000
    %4128 = vmatpush1.bf16.msra.mxu0 %v3999
    %4129 = vmatprep.subr.bf16.mxu0 %v4002
    %4130 = vmatpush1.bf16.msra.mxu0 %v4001
    %4131 = vmatprep.subr.bf16.mxu0 %v4004
    %4132 = vmatpush1.bf16.msra.mxu0 %v4003
    %4133 = vmatprep.subr.bf16.mxu0 %v4006
    %4134 = vmatpush1.bf16.msra.mxu0 %v4005
    %4135 = vmatprep.subr.bf16.mxu0 %v4008
    %4136 = vmatpush1.bf16.msra.mxu0 %v4007
    %4137 = vmatprep.subr.bf16.mxu0 %v4010
    %4138 = vmatpush1.bf16.msra.mxu0 %v4009
    %4139 = vmatprep.subr.bf16.mxu0 %v4012
    %4140 = vmatpush1.bf16.msra.mxu0 %v4011
    %4141 = vmatprep.subr.bf16.mxu0 %v4014
    %4142 = vmatpush1.bf16.msra.mxu0 %v4013
    %4143 = vmatprep.subr.bf16.mxu0 %v4016
    %4144 = vmatpush1.bf16.msra.mxu0 %v4015
    %4145 = vmatprep.subr.bf16.mxu0 %v4018
    %4146 = vmatpush1.bf16.msra.mxu0 %v4017
    %4147 = vmatprep.subr.bf16.mxu0 %v4020
    %4148 = vmatpush1.bf16.msra.mxu0 %v4019
    %4149 = vmatprep.subr.bf16.mxu0 %v4022
    %4150 = vmatpush1.bf16.msra.mxu0 %v4021
    %4151 = vmatprep.subr.bf16.mxu0 %v4024
    %4152 = vmatpush1.bf16.msra.mxu0 %v4023
    %4153 = vmatprep.mubr.bf16.mxu0 %v3662
    %4154 = vmatmul.mubr.bf16.gmra.mrb[0].mxu0 %v3661
    %v4155 = vpop.f32.mrb[0].mxu0
    %v4156 = vadd.f32 %v3794, %v4155
    %v4157 = vpop.f32.mrb[0].mxu0
    %v4158 = vadd.f32 %v3798, %v4157
    %v4159 = vpop.f32.mrb[0].mxu0
    %v4160 = vadd.f32 %v3794, %v4159
    %v4161 = vpop.f32.mrb[0].mxu0
    %v4162 = vadd.f32 %v3798, %v4161
    %4163 = vmatprep.mubr.bf16.mxu0 %v3666
    %4164 = vmatmul.mubr.bf16.gmra.mrb[0].mxu0 %v3665
    %v4165 = vpop.f32.mrb[0].mxu0
    %v4166 = vadd.f32 %v3794, %v4165
    %v4167 = vpop.f32.mrb[0].mxu0
    %v4168 = vadd.f32 %v3798, %v4167
    %v4169 = vpop.f32.mrb[0].mxu0
    %v4170 = vadd.f32 %v3794, %v4169
    %v4171 = vpop.f32.mrb[0].mxu0
    %v4172 = vadd.f32 %v3798, %v4171
    %4173 = vmatprep.mubr.bf16.mxu0 %v3670
    %4174 = vmatmul.mubr.bf16.gmra.mrb[0].mxu0 %v3669
    %v4175 = vpop.f32.mrb[0].mxu0
    %v4176 = vadd.f32 %v3794, %v4175
    %v4177 = vpop.f32.mrb[0].mxu0
    %v4178 = vadd.f32 %v3798, %v4177
    %v4179 = vpop.f32.mrb[0].mxu0
    %v4180 = vadd.f32 %v3794, %v4179
    %v4181 = vpop.f32.mrb[0].mxu0
    %v4182 = vadd.f32 %v3798, %v4181
    %4183 = vmatprep.mubr.bf16.mxu0 %v3674
    %4184 = vmatmul.mubr.bf16.gmra.mrb[0].mxu0 %v3673
    %v4185 = vpop.f32.mrb[0].mxu0
    %v4186 = vadd.f32 %v3794, %v4185
    %v4187 = vpop.f32.mrb[0].mxu0
    %v4188 = vadd.f32 %v3798, %v4187
    %v4189 = vpop.f32.mrb[0].mxu0
    %v4190 = vadd.f32 %v3794, %v4189
    %v4191 = vpop.f32.mrb[0].mxu0
    %v4192 = vadd.f32 %v3798, %v4191
    %4193 = vmatprep.mubr.bf16.mxu0 %v3678
    %4194 = vmatmul.mubr.bf16.gmra.mrb[0].mxu0 %v3677
    %v4195 = vpop.f32.mrb[0].mxu0
    %v4196 = vadd.f32 %v3794, %v4195
    %v4197 = vpop.f32.mrb[0].mxu0
    %v4198 = vadd.f32 %v3798, %v4197
    %v4199 = vpop.f32.mrb[0].mxu0
    %v4200 = vadd.f32 %v3794, %v4199
    %v4201 = vpop.f32.mrb[0].mxu0
    %v4202 = vadd.f32 %v3798, %v4201
    %4203 = vmatprep.mubr.bf16.mxu0 %v3682
    %4204 = vmatmul.mubr.bf16.gmra.mrb[0].mxu0 %v3681
    %v4205 = vpop.f32.mrb[0].mxu0
    %v4206 = vadd.f32 %v3794, %v4205
    %v4207 = vpop.f32.mrb[0].mxu0
    %v4208 = vadd.f32 %v3798, %v4207
    %v4209 = vpop.f32.mrb[0].mxu0
    %v4210 = vadd.f32 %v3794, %v4209
    %v4211 = vpop.f32.mrb[0].mxu0
    %v4212 = vadd.f32 %v3798, %v4211
    %4213 = vmatprep.mubr.bf16.mxu0 %v3686
    %4214 = vmatmul.mubr.bf16.gmra.mrb[0].mxu0 %v3685
    %v4215 = vpop.f32.mrb[0].mxu0
    %v4216 = vadd.f32 %v3794, %v4215
    %v4217 = vpop.f32.mrb[0].mxu0
    %v4218 = vadd.f32 %v3798, %v4217
    %v4219 = vpop.f32.mrb[0].mxu0
    %v4220 = vadd.f32 %v3794, %v4219
    %v4221 = vpop.f32.mrb[0].mxu0
    %v4222 = vadd.f32 %v3798, %v4221
    %4223 = vmatprep.mubr.bf16.mxu0 %v3690
    %4224 = vmatmul.mubr.bf16.gmra.mrb[0].mxu0 %v3689
    %v4225 = vpop.f32.mrb[0].mxu0
    %v4226 = vadd.f32 %v3794, %v4225
    %v4227 = vpop.f32.mrb[0].mxu0
    %v4228 = vadd.f32 %v3798, %v4227
    %v4229 = vpop.f32.mrb[0].mxu0
    %v4230 = vadd.f32 %v3794, %v4229
    %v4231 = vpop.f32.mrb[0].mxu0
    %v4232 = vadd.f32 %v3798, %v4231
    %4233 = vmatprep.mubr.bf16.mxu0 %v3694
    %4234 = vmatmul.mubr.bf16.gmra.mrb[0].mxu0 %v3693
    %v4235 = vpop.f32.mrb[0].mxu0
    %v4236 = vadd.f32 %v3794, %v4235
    %v4237 = vpop.f32.mrb[0].mxu0
    %v4238 = vadd.f32 %v3798, %v4237
    %v4239 = vpop.f32.mrb[0].mxu0
    %v4240 = vadd.f32 %v3794, %v4239
    %v4241 = vpop.f32.mrb[0].mxu0
    %v4242 = vadd.f32 %v3798, %v4241
    %4243 = vmatprep.mubr.bf16.mxu0 %v3698
    %4244 = vmatmul.mubr.bf16.gmra.mrb[0].mxu0 %v3697
    %v4245 = vpop.f32.mrb[0].mxu0
    %v4246 = vadd.f32 %v3794, %v4245
    %v4247 = vpop.f32.mrb[0].mxu0
    %v4248 = vadd.f32 %v3798, %v4247
    %v4249 = vpop.f32.mrb[0].mxu0
    %v4250 = vadd.f32 %v3794, %v4249
    %v4251 = vpop.f32.mrb[0].mxu0
    %v4252 = vadd.f32 %v3798, %v4251
    %4253 = vmatprep.mubr.bf16.mxu0 %v3702
    %4254 = vmatmul.mubr.bf16.gmra.mrb[0].mxu0 %v3701
    %v4255 = vpop.f32.mrb[0].mxu0
    %v4256 = vadd.f32 %v3794, %v4255
    %v4257 = vpop.f32.mrb[0].mxu0
    %v4258 = vadd.f32 %v3798, %v4257
    %v4259 = vpop.f32.mrb[0].mxu0
    %v4260 = vadd.f32 %v3794, %v4259
    %v4261 = vpop.f32.mrb[0].mxu0
    %v4262 = vadd.f32 %v3798, %v4261
    %4263 = vmatprep.mubr.bf16.mxu0 %v3706
    %4264 = vmatmul.mubr.bf16.gmra.mrb[0].mxu0 %v3705
    %v4265 = vpop.f32.mrb[0].mxu0
    %v4266 = vadd.f32 %v3794, %v4265
    %v4267 = vpop.f32.mrb[0].mxu0
    %v4268 = vadd.f32 %v3798, %v4267
    %v4269 = vpop.f32.mrb[0].mxu0
    %v4270 = vadd.f32 %v3794, %v4269
    %v4271 = vpop.f32.mrb[0].mxu0
    %v4272 = vadd.f32 %v3798, %v4271
    %4273 = vmatprep.mubr.bf16.mxu0 %v3710
    %4274 = vmatmul.mubr.bf16.gmra.mrb[0].mxu0 %v3709
    %v4275 = vpop.f32.mrb[0].mxu0
    %v4276 = vadd.f32 %v3794, %v4275
    %v4277 = vpop.f32.mrb[0].mxu0
    %v4278 = vadd.f32 %v3798, %v4277
    %v4279 = vpop.f32.mrb[0].mxu0
    %v4280 = vadd.f32 %v3794, %v4279
    %v4281 = vpop.f32.mrb[0].mxu0
    %v4282 = vadd.f32 %v3798, %v4281
    %4283 = vmatprep.mubr.bf16.mxu0 %v3714
    %4284 = vmatmul.mubr.bf16.gmra.mrb[0].mxu0 %v3713
    %v4285 = vpop.f32.mrb[0].mxu0
    %v4286 = vadd.f32 %v3794, %v4285
    %v4287 = vpop.f32.mrb[0].mxu0
    %v4288 = vadd.f32 %v3798, %v4287
    %v4289 = vpop.f32.mrb[0].mxu0
    %v4290 = vadd.f32 %v3794, %v4289
    %v4291 = vpop.f32.mrb[0].mxu0
    %v4292 = vadd.f32 %v3798, %v4291
    %4293 = vmatprep.mubr.bf16.mxu0 %v3718
    %4294 = vmatmul.mubr.bf16.gmra.mrb[0].mxu0 %v3717
    %v4295 = vpop.f32.mrb[0].mxu0
    %v4296 = vadd.f32 %v3794, %v4295
    %v4297 = vpop.f32.mrb[0].mxu0
    %v4298 = vadd.f32 %v3798, %v4297
    %v4299 = vpop.f32.mrb[0].mxu0
    %v4300 = vadd.f32 %v3794, %v4299
    %v4301 = vpop.f32.mrb[0].mxu0
    %v4302 = vadd.f32 %v3798, %v4301
    %4303 = vmatprep.mubr.bf16.mxu0 %v3722
    %4304 = vmatmul.mubr.bf16.gmra.mrb[0].mxu0 %v3721
    %v4305 = vpop.f32.mrb[0].mxu0
    %v4306 = vadd.f32 %v3794, %v4305
    %v4307 = vpop.f32.mrb[0].mxu0
    %v4308 = vadd.f32 %v3798, %v4307
    %v4309 = vpop.f32.mrb[0].mxu0
    %v4310 = vadd.f32 %v3794, %v4309
    %v4311 = vpop.f32.mrb[0].mxu0
    %v4312 = vadd.f32 %v3798, %v4311
    %4313 = vdwg.mxu0
    %4314 = vmatprep.subr.bf16.mxu0 %v4026
    %4315 = vmatpush1.bf16.msra.mxu0 %v4025
    %4316 = vmatprep.subr.bf16.mxu0 %v4028
    %4317 = vmatpush1.bf16.msra.mxu0 %v4027
    %4318 = vmatprep.subr.bf16.mxu0 %v4030
    %4319 = vmatpush1.bf16.msra.mxu0 %v4029
    %4320 = vmatprep.subr.bf16.mxu0 %v4032
    %4321 = vmatpush1.bf16.msra.mxu0 %v4031
    %4322 = vmatprep.subr.bf16.mxu0 %v4034
    %4323 = vmatpush1.bf16.msra.mxu0 %v4033
    %4324 = vmatprep.subr.bf16.mxu0 %v4036
    %4325 = vmatpush1.bf16.msra.mxu0 %v4035
    %4326 = vmatprep.subr.bf16.mxu0 %v4038
    %4327 = vmatpush1.bf16.msra.mxu0 %v4037
    %4328 = vmatprep.subr.bf16.mxu0 %v4040
    %4329 = vmatpush1.bf16.msra.mxu0 %v4039
    %4330 = vmatprep.subr.bf16.mxu0 %v4042
    %4331 = vmatpush1.bf16.msra.mxu0 %v4041
    %4332 = vmatprep.subr.bf16.mxu0 %v4044
    %4333 = vmatpush1.bf16.msra.mxu0 %v4043
    %4334 = vmatprep.subr.bf16.mxu0 %v4046
    %4335 = vmatpush1.bf16.msra.mxu0 %v4045
    %4336 = vmatprep.subr.bf16.mxu0 %v4048
    %4337 = vmatpush1.bf16.msra.mxu0 %v4047
    %4338 = vmatprep.subr.bf16.mxu0 %v4050
    %4339 = vmatpush1.bf16.msra.mxu0 %v4049
    %4340 = vmatprep.subr.bf16.mxu0 %v4052
    %4341 = vmatpush1.bf16.msra.mxu0 %v4051
    %4342 = vmatprep.subr.bf16.mxu0 %v4054
    %4343 = vmatpush1.bf16.msra.mxu0 %v4053
    %4344 = vmatprep.subr.bf16.mxu0 %v4056
    %4345 = vmatpush1.bf16.msra.mxu0 %v4055
    %4346 = vmatprep.mubr.bf16.mxu0 %v3664
    %4347 = vmatmul.mubr.bf16.gmra.mrb[0].mxu0 %v3663
    %v4348 = vpop.f32.mrb[0].mxu0
    %v4349 = vadd.f32 %v4156, %v4348
    %v4350 = vpop.f32.mrb[0].mxu0
    %v4351 = vadd.f32 %v4158, %v4350
    %v4352 = vpop.f32.mrb[0].mxu0
    %v4353 = vadd.f32 %v4160, %v4352
    %v4354 = vpop.f32.mrb[0].mxu0
    %v4355 = vadd.f32 %v4162, %v4354
    %4356 = vmatprep.mubr.bf16.mxu0 %v3668
    %4357 = vmatmul.mubr.bf16.gmra.mrb[0].mxu0 %v3667
    %v4358 = vpop.f32.mrb[0].mxu0
    %v4359 = vadd.f32 %v4166, %v4358
    %v4360 = vpop.f32.mrb[0].mxu0
    %v4361 = vadd.f32 %v4168, %v4360
    %v4362 = vpop.f32.mrb[0].mxu0
    %v4363 = vadd.f32 %v4170, %v4362
    %v4364 = vpop.f32.mrb[0].mxu0
    %v4365 = vadd.f32 %v4172, %v4364
    %4366 = vmatprep.mubr.bf16.mxu0 %v3672
    %4367 = vmatmul.mubr.bf16.gmra.mrb[0].mxu0 %v3671
    %v4368 = vpop.f32.mrb[0].mxu0
    %v4369 = vadd.f32 %v4176, %v4368
    %v4370 = vpop.f32.mrb[0].mxu0
    %v4371 = vadd.f32 %v4178, %v4370
    %v4372 = vpop.f32.mrb[0].mxu0
    %v4373 = vadd.f32 %v4180, %v4372
    %v4374 = vpop.f32.mrb[0].mxu0
    %v4375 = vadd.f32 %v4182, %v4374
    %4376 = vmatprep.mubr.bf16.mxu0 %v3676
    %4377 = vmatmul.mubr.bf16.gmra.mrb[0].mxu0 %v3675
    %v4378 = vpop.f32.mrb[0].mxu0
    %v4379 = vadd.f32 %v4186, %v4378
    %v4380 = vpop.f32.mrb[0].mxu0
    %v4381 = vadd.f32 %v4188, %v4380
    %v4382 = vpop.f32.mrb[0].mxu0
    %v4383 = vadd.f32 %v4190, %v4382
    %v4384 = vpop.f32.mrb[0].mxu0
    %v4385 = vadd.f32 %v4192, %v4384
    %4386 = vmatprep.mubr.bf16.mxu0 %v3680
    %4387 = vmatmul.mubr.bf16.gmra.mrb[0].mxu0 %v3679
    %v4388 = vpop.f32.mrb[0].mxu0
    %v4389 = vadd.f32 %v4196, %v4388
    %v4390 = vpop.f32.mrb[0].mxu0
    %v4391 = vadd.f32 %v4198, %v4390
    %v4392 = vpop.f32.mrb[0].mxu0
    %v4393 = vadd.f32 %v4200, %v4392
    %v4394 = vpop.f32.mrb[0].mxu0
    %v4395 = vadd.f32 %v4202, %v4394
    %4396 = vmatprep.mubr.bf16.mxu0 %v3684
    %4397 = vmatmul.mubr.bf16.gmra.mrb[0].mxu0 %v3683
    %v4398 = vpop.f32.mrb[0].mxu0
    %v4399 = vadd.f32 %v4206, %v4398
    %v4400 = vpop.f32.mrb[0].mxu0
    %v4401 = vadd.f32 %v4208, %v4400
    %v4402 = vpop.f32.mrb[0].mxu0
    %v4403 = vadd.f32 %v4210, %v4402
    %v4404 = vpop.f32.mrb[0].mxu0
    %v4405 = vadd.f32 %v4212, %v4404
    %4406 = vmatprep.mubr.bf16.mxu0 %v3688
    %4407 = vmatmul.mubr.bf16.gmra.mrb[0].mxu0 %v3687
    %v4408 = vpop.f32.mrb[0].mxu0
    %v4409 = vadd.f32 %v4216, %v4408
    %v4410 = vpop.f32.mrb[0].mxu0
    %v4411 = vadd.f32 %v4218, %v4410
    %v4412 = vpop.f32.mrb[0].mxu0
    %v4413 = vadd.f32 %v4220, %v4412
    %v4414 = vpop.f32.mrb[0].mxu0
    %v4415 = vadd.f32 %v4222, %v4414
    %4416 = vmatprep.mubr.bf16.mxu0 %v3692
    %4417 = vmatmul.mubr.bf16.gmra.mrb[0].mxu0 %v3691
    %v4418 = vpop.f32.mrb[0].mxu0
    %v4419 = vadd.f32 %v4226, %v4418
    %v4420 = vpop.f32.mrb[0].mxu0
    %v4421 = vadd.f32 %v4228, %v4420
    %v4422 = vpop.f32.mrb[0].mxu0
    %v4423 = vadd.f32 %v4230, %v4422
    %v4424 = vpop.f32.mrb[0].mxu0
    %v4425 = vadd.f32 %v4232, %v4424
    %4426 = vmatprep.mubr.bf16.mxu0 %v3696
    %4427 = vmatmul.mubr.bf16.gmra.mrb[0].mxu0 %v3695
    %v4428 = vpop.f32.mrb[0].mxu0
    %v4429 = vadd.f32 %v4236, %v4428
    %v4430 = vpop.f32.mrb[0].mxu0
    %v4431 = vadd.f32 %v4238, %v4430
    %v4432 = vpop.f32.mrb[0].mxu0
    %v4433 = vadd.f32 %v4240, %v4432
    %v4434 = vpop.f32.mrb[0].mxu0
    %v4435 = vadd.f32 %v4242, %v4434
    %4436 = vmatprep.mubr.bf16.mxu0 %v3700
    %4437 = vmatmul.mubr.bf16.gmra.mrb[0].mxu0 %v3699
    %v4438 = vpop.f32.mrb[0].mxu0
    %v4439 = vadd.f32 %v4246, %v4438
    %v4440 = vpop.f32.mrb[0].mxu0
    %v4441 = vadd.f32 %v4248, %v4440
    %v4442 = vpop.f32.mrb[0].mxu0
    %v4443 = vadd.f32 %v4250, %v4442
    %v4444 = vpop.f32.mrb[0].mxu0
    %v4445 = vadd.f32 %v4252, %v4444
    %4446 = vmatprep.mubr.bf16.mxu0 %v3704
    %4447 = vmatmul.mubr.bf16.gmra.mrb[0].mxu0 %v3703
    %v4448 = vpop.f32.mrb[0].mxu0
    %v4449 = vadd.f32 %v4256, %v4448
    %v4450 = vpop.f32.mrb[0].mxu0
    %v4451 = vadd.f32 %v4258, %v4450
    %v4452 = vpop.f32.mrb[0].mxu0
    %v4453 = vadd.f32 %v4260, %v4452
    %v4454 = vpop.f32.mrb[0].mxu0
    %v4455 = vadd.f32 %v4262, %v4454
    %4456 = vmatprep.mubr.bf16.mxu0 %v3708
    %4457 = vmatmul.mubr.bf16.gmra.mrb[0].mxu0 %v3707
    %v4458 = vpop.f32.mrb[0].mxu0
    %v4459 = vadd.f32 %v4266, %v4458
    %v4460 = vpop.f32.mrb[0].mxu0
    %v4461 = vadd.f32 %v4268, %v4460
    %v4462 = vpop.f32.mrb[0].mxu0
    %v4463 = vadd.f32 %v4270, %v4462
    %v4464 = vpop.f32.mrb[0].mxu0
    %v4465 = vadd.f32 %v4272, %v4464
    %4466 = vmatprep.mubr.bf16.mxu0 %v3712
    %4467 = vmatmul.mubr.bf16.gmra.mrb[0].mxu0 %v3711
    %v4468 = vpop.f32.mrb[0].mxu0
    %v4469 = vadd.f32 %v4276, %v4468
    %v4470 = vpop.f32.mrb[0].mxu0
    %v4471 = vadd.f32 %v4278, %v4470
    %v4472 = vpop.f32.mrb[0].mxu0
    %v4473 = vadd.f32 %v4280, %v4472
    %v4474 = vpop.f32.mrb[0].mxu0
    %v4475 = vadd.f32 %v4282, %v4474
    %4476 = vmatprep.mubr.bf16.mxu0 %v3716
    %4477 = vmatmul.mubr.bf16.gmra.mrb[0].mxu0 %v3715
    %v4478 = vpop.f32.mrb[0].mxu0
    %v4479 = vadd.f32 %v4286, %v4478
    %v4480 = vpop.f32.mrb[0].mxu0
    %v4481 = vadd.f32 %v4288, %v4480
    %v4482 = vpop.f32.mrb[0].mxu0
    %v4483 = vadd.f32 %v4290, %v4482
    %v4484 = vpop.f32.mrb[0].mxu0
    %v4485 = vadd.f32 %v4292, %v4484
    %4486 = vmatprep.mubr.bf16.mxu0 %v3720
    %4487 = vmatmul.mubr.bf16.gmra.mrb[0].mxu0 %v3719
    %v4488 = vpop.f32.mrb[0].mxu0
    %v4489 = vadd.f32 %v4296, %v4488
    %v4490 = vpop.f32.mrb[0].mxu0
    %v4491 = vadd.f32 %v4298, %v4490
    %v4492 = vpop.f32.mrb[0].mxu0
    %v4493 = vadd.f32 %v4300, %v4492
    %v4494 = vpop.f32.mrb[0].mxu0
    %v4495 = vadd.f32 %v4302, %v4494
    %4496 = vmatprep.mubr.bf16.mxu0 %v3724
    %4497 = vmatmul.mubr.bf16.gmra.mrb[0].mxu0 %v3723
    %v4498 = vpop.f32.mrb[0].mxu0
    %v4499 = vadd.f32 %v4306, %v4498
    %v4500 = vpop.f32.mrb[0].mxu0
    %v4501 = vadd.f32 %v4308, %v4500
    %v4502 = vpop.f32.mrb[0].mxu0
    %v4503 = vadd.f32 %v4310, %v4502
    %v4504 = vpop.f32.mrb[0].mxu0
    %v4505 = vadd.f32 %v4312, %v4504
    %4506 = vdwg.mxu0
    %v4507 = vmax.f32 %v4349, 0.0
    %v4508 = vmax.f32 %v4351, 0.0
    %v4509 = vmax.f32 %v4353, 0.0
    %v4510 = vmax.f32 %v4355, 0.0
    %v4511 = vmax.f32 %v4359, 0.0
    %v4512 = vmax.f32 %v4361, 0.0
    %v4513 = vmax.f32 %v4363, 0.0
    %v4514 = vmax.f32 %v4365, 0.0
    %v4515 = vmax.f32 %v4369, 0.0
    %v4516 = vmax.f32 %v4371, 0.0
    %v4517 = vmax.f32 %v4373, 0.0
    %v4518 = vmax.f32 %v4375, 0.0
    %v4519 = vmax.f32 %v4379, 0.0
    %v4520 = vmax.f32 %v4381, 0.0
    %v4521 = vmax.f32 %v4383, 0.0
    %v4522 = vmax.f32 %v4385, 0.0
    %v4523 = vmax.f32 %v4389, 0.0
    %v4524 = vmax.f32 %v4391, 0.0
    %v4525 = vmax.f32 %v4393, 0.0
    %v4526 = vmax.f32 %v4395, 0.0
    %v4527 = vmax.f32 %v4399, 0.0
    %v4528 = vmax.f32 %v4401, 0.0
    %v4529 = vmax.f32 %v4403, 0.0
    %v4530 = vmax.f32 %v4405, 0.0
    %v4531 = vmax.f32 %v4409, 0.0
    %v4532 = vmax.f32 %v4411, 0.0
    %v4533 = vmax.f32 %v4413, 0.0
    %v4534 = vmax.f32 %v4415, 0.0
    %v4535 = vmax.f32 %v4419, 0.0
    %v4536 = vmax.f32 %v4421, 0.0
    %v4537 = vmax.f32 %v4423, 0.0
    %v4538 = vmax.f32 %v4425, 0.0
    %v4539 = vmax.f32 %v4429, 0.0
    %v4540 = vmax.f32 %v4431, 0.0
    %v4541 = vmax.f32 %v4433, 0.0
    %v4542 = vmax.f32 %v4435, 0.0
    %v4543 = vmax.f32 %v4439, 0.0
    %v4544 = vmax.f32 %v4441, 0.0
    %v4545 = vmax.f32 %v4443, 0.0
    %v4546 = vmax.f32 %v4445, 0.0
    %v4547 = vmax.f32 %v4449, 0.0
    %v4548 = vmax.f32 %v4451, 0.0
    %v4549 = vmax.f32 %v4453, 0.0
    %v4550 = vmax.f32 %v4455, 0.0
    %v4551 = vmax.f32 %v4459, 0.0
    %v4552 = vmax.f32 %v4461, 0.0
    %v4553 = vmax.f32 %v4463, 0.0
    %v4554 = vmax.f32 %v4465, 0.0
    %v4555 = vmax.f32 %v4469, 0.0
    %v4556 = vmax.f32 %v4471, 0.0
    %v4557 = vmax.f32 %v4473, 0.0
    %v4558 = vmax.f32 %v4475, 0.0
    %v4559 = vmax.f32 %v4479, 0.0
    %v4560 = vmax.f32 %v4481, 0.0
    %v4561 = vmax.f32 %v4483, 0.0
    %v4562 = vmax.f32 %v4485, 0.0
    %v4563 = vmax.f32 %v4489, 0.0
    %v4564 = vmax.f32 %v4491, 0.0
    %v4565 = vmax.f32 %v4493, 0.0
    %v4566 = vmax.f32 %v4495, 0.0
    %v4567 = vmax.f32 %v4499, 0.0
    %v4568 = vmax.f32 %v4501, 0.0
    %v4569 = vmax.f32 %v4503, 0.0
    %v4570 = vmax.f32 %v4505, 0.0
    %v4571 = vpack.c.bf16 %v4509, %v4507
    %v4572 = vpack.c.bf16 %v4510, %v4508
    %v4573 = vpack.c.bf16 %v4513, %v4511
    %v4574 = vpack.c.bf16 %v4514, %v4512
    %v4575 = vpack.c.bf16 %v4517, %v4515
    %v4576 = vpack.c.bf16 %v4518, %v4516
    %v4577 = vpack.c.bf16 %v4521, %v4519
    %v4578 = vpack.c.bf16 %v4522, %v4520
    %v4579 = vpack.c.bf16 %v4525, %v4523
    %v4580 = vpack.c.bf16 %v4526, %v4524
    %v4581 = vpack.c.bf16 %v4529, %v4527
    %v4582 = vpack.c.bf16 %v4530, %v4528
    %v4583 = vpack.c.bf16 %v4533, %v4531
    %v4584 = vpack.c.bf16 %v4534, %v4532
    %v4585 = vpack.c.bf16 %v4537, %v4535
    %v4586 = vpack.c.bf16 %v4538, %v4536
    %v4587 = vpack.c.bf16 %v4541, %v4539
    %v4588 = vpack.c.bf16 %v4542, %v4540
    %v4589 = vpack.c.bf16 %v4545, %v4543
    %v4590 = vpack.c.bf16 %v4546, %v4544
    %v4591 = vpack.c.bf16 %v4549, %v4547
    %v4592 = vpack.c.bf16 %v4550, %v4548
    %v4593 = vpack.c.bf16 %v4553, %v4551
    %v4594 = vpack.c.bf16 %v4554, %v4552
    %v4595 = vpack.c.bf16 %v4557, %v4555
    %v4596 = vpack.c.bf16 %v4558, %v4556
    %v4597 = vpack.c.bf16 %v4561, %v4559
    %v4598 = vpack.c.bf16 %v4562, %v4560
    %v4599 = vpack.c.bf16 %v4565, %v4563
    %v4600 = vpack.c.bf16 %v4566, %v4564
    %v4601 = vpack.c.bf16 %v4569, %v4567
    %v4602 = vpack.c.bf16 %v4570, %v4568
    %v4603 = vld [vmem:[%s5] sm:$0xf]
    %v4604 = vld [vmem:[%s5 + $0x4] sm:$0xf]
    %v4605 = vld [vmem:[%s5 + $0x8] sm:$0xf]
    %v4606 = vld [vmem:[%s5 + $0xc] sm:$0xf]
    %v4607 = vld [vmem:[%s5 + $0x10] sm:$0xf]
    %v4608 = vld [vmem:[%s5 + $0x14] sm:$0xf]
    %v4609 = vld [vmem:[%s5 + $0x18] sm:$0xf]
    %v4610 = vld [vmem:[%s5 + $0x1c] sm:$0xf]
    %v4611 = vld [vmem:[%s5 + $0x20] sm:$0xf]
    %v4612 = vld [vmem:[%s5 + $0x24] sm:$0xf]
    %v4613 = vld [vmem:[%s5 + $0x28] sm:$0xf]
    %v4614 = vld [vmem:[%s5 + $0x2c] sm:$0xf]
    %v4615 = vld [vmem:[%s5 + $0x30] sm:$0xf]
    %v4616 = vld [vmem:[%s5 + $0x34] sm:$0xf]
    %v4617 = vld [vmem:[%s5 + $0x38] sm:$0xf]
    %v4618 = vld [vmem:[%s5 + $0x3c] sm:$0xf]
    %v4619 = vld [vmem:[%s5 + $0x40] sm:$0xf]
    %v4620 = vld [vmem:[%s5 + $0x44] sm:$0xf]
    %v4621 = vld [vmem:[%s5 + $0x48] sm:$0xf]
    %v4622 = vld [vmem:[%s5 + $0x4c] sm:$0xf]
    %v4623 = vld [vmem:[%s5 + $0x50] sm:$0xf]
    %v4624 = vld [vmem:[%s5 + $0x54] sm:$0xf]
    %v4625 = vld [vmem:[%s5 + $0x58] sm:$0xf]
    %v4626 = vld [vmem:[%s5 + $0x5c] sm:$0xf]
    %v4627 = vld [vmem:[%s5 + $0x60] sm:$0xf]
    %v4628 = vld [vmem:[%s5 + $0x64] sm:$0xf]
    %v4629 = vld [vmem:[%s5 + $0x68] sm:$0xf]
    %v4630 = vld [vmem:[%s5 + $0x6c] sm:$0xf]
    %v4631 = vld [vmem:[%s5 + $0x70] sm:$0xf]
    %v4632 = vld [vmem:[%s5 + $0x74] sm:$0xf]
    %v4633 = vld [vmem:[%s5 + $0x78] sm:$0xf]
    %v4634 = vld [vmem:[%s5 + $0x7c] sm:$0xf]
    %v4635 = vld [vmem:[%s6] sm:$0x1]
    %v4637 = vlaneseq
    %v4638 = vshrl.u32 %v4637, 7
    %v4639 = vsub.s32 0, %v4638
    %v4640 = vrot.slane %v4635, %v4639
    %v4674 = vunpack.c.l.b16 %v4603
    %v4675 = vunpack.c.l.b16 %v4604
    %v4676 = vunpack.c.l.b16 %v4605
    %v4677 = vunpack.c.l.b16 %v4606
    %v4678 = vunpack.c.l.b16 %v4607
    %v4679 = vunpack.c.l.b16 %v4608
    %v4680 = vunpack.c.l.b16 %v4609
    %v4681 = vunpack.c.l.b16 %v4610
    %v4682 = vunpack.c.l.b16 %v4611
    %v4683 = vunpack.c.l.b16 %v4612
    %v4684 = vunpack.c.l.b16 %v4613
    %v4685 = vunpack.c.l.b16 %v4614
    %v4686 = vunpack.c.l.b16 %v4615
    %v4687 = vunpack.c.l.b16 %v4616
    %v4688 = vunpack.c.l.b16 %v4617
    %v4689 = vunpack.c.l.b16 %v4618
    %v4690 = vunpack.c.l.b16 %v4619
    %v4691 = vunpack.c.l.b16 %v4620
    %v4692 = vunpack.c.l.b16 %v4621
    %v4693 = vunpack.c.l.b16 %v4622
    %v4694 = vunpack.c.l.b16 %v4623
    %v4695 = vunpack.c.l.b16 %v4624
    %v4696 = vunpack.c.l.b16 %v4625
    %v4697 = vunpack.c.l.b16 %v4626
    %v4698 = vunpack.c.l.b16 %v4627
    %v4699 = vunpack.c.l.b16 %v4628
    %v4700 = vunpack.c.l.b16 %v4629
    %v4701 = vunpack.c.l.b16 %v4630
    %v4702 = vunpack.c.l.b16 %v4631
    %v4703 = vunpack.c.l.b16 %v4632
    %v4704 = vunpack.c.l.b16 %v4633
    %v4705 = vunpack.c.l.b16 %v4634
    %v4706 = vpack.c.b16 %v4675, %v4674
    %v4707 = vpack.c.b16 %v4677, %v4676
    %v4708 = vpack.c.b16 %v4679, %v4678
    %v4709 = vpack.c.b16 %v4681, %v4680
    %v4710 = vpack.c.b16 %v4683, %v4682
    %v4711 = vpack.c.b16 %v4685, %v4684
    %v4712 = vpack.c.b16 %v4687, %v4686
    %v4713 = vpack.c.b16 %v4689, %v4688
    %v4714 = vpack.c.b16 %v4691, %v4690
    %v4715 = vpack.c.b16 %v4693, %v4692
    %v4716 = vpack.c.b16 %v4695, %v4694
    %v4717 = vpack.c.b16 %v4697, %v4696
    %v4718 = vpack.c.b16 %v4699, %v4698
    %v4719 = vpack.c.b16 %v4701, %v4700
    %v4720 = vpack.c.b16 %v4703, %v4702
    %v4721 = vpack.c.b16 %v4705, %v4704
    %4738 = vmatprep.subr.bf16.mxu0 0
    %4739 = vmatpush1.bf16.msra.mxu0 %v4706
    %4740 = vmatprep.subr.bf16.mxu0 0
    %4741 = vmatpush1.bf16.msra.mxu0 %v4707
    %4742 = vmatprep.subr.bf16.mxu0 0
    %4743 = vmatpush1.bf16.msra.mxu0 %v4708
    %4744 = vmatprep.subr.bf16.mxu0 0
    %4745 = vmatpush1.bf16.msra.mxu0 %v4709
    %4746 = vmatprep.subr.bf16.mxu0 0
    %4747 = vmatpush1.bf16.msra.mxu0 %v4710
    %4748 = vmatprep.subr.bf16.mxu0 0
    %4749 = vmatpush1.bf16.msra.mxu0 %v4711
    %4750 = vmatprep.subr.bf16.mxu0 0
    %4751 = vmatpush1.bf16.msra.mxu0 %v4712
    %4752 = vmatprep.subr.bf16.mxu0 0
    %4753 = vmatpush1.bf16.msra.mxu0 %v4713
    %4754 = vmatprep.subr.bf16.mxu0 0
    %4755 = vmatpush1.bf16.msra.mxu0 %v4714
    %4756 = vmatprep.subr.bf16.mxu0 0
    %4757 = vmatpush1.bf16.msra.mxu0 %v4715
    %4758 = vmatprep.subr.bf16.mxu0 0
    %4759 = vmatpush1.bf16.msra.mxu0 %v4716
    %4760 = vmatprep.subr.bf16.mxu0 0
    %4761 = vmatpush1.bf16.msra.mxu0 %v4717
    %4762 = vmatprep.subr.bf16.mxu0 0
    %4763 = vmatpush1.bf16.msra.mxu0 %v4718
    %4764 = vmatprep.subr.bf16.mxu0 0
    %4765 = vmatpush1.bf16.msra.mxu0 %v4719
    %4766 = vmatprep.subr.bf16.mxu0 0
    %4767 = vmatpush1.bf16.msra.mxu0 %v4720
    %4768 = vmatprep.subr.bf16.mxu0 0
    %4769 = vmatpush1.bf16.msra.mxu0 %v4721
    %4770 = vmatprep.mubr.bf16.mxu0 %v4572
    %4771 = vmatmul.mubr.bf16.gmra.mrb[0].mxu0 %v4571
    %v4772 = vpop.f32.mrb[0].mxu0
    %v4773 = vadd.f32 %v4640, %v4772
    %v4774 = vpop.f32.mrb[0].mxu0
    %v4775 = vpop.f32.mrb[0].mxu0
    %v4776 = vadd.f32 %v4640, %v4775
    %v4777 = vpop.f32.mrb[0].mxu0
    %4778 = vmatprep.mubr.bf16.mxu0 %v4574
    %4779 = vmatmul.mubr.bf16.gmra.mrb[0].mxu0 %v4573
    %v4780 = vpop.f32.mrb[0].mxu0
    %v4781 = vadd.f32 %v4640, %v4780
    %v4782 = vpop.f32.mrb[0].mxu0
    %v4783 = vpop.f32.mrb[0].mxu0
    %v4784 = vadd.f32 %v4640, %v4783
    %v4785 = vpop.f32.mrb[0].mxu0
    %4786 = vmatprep.mubr.bf16.mxu0 %v4576
    %4787 = vmatmul.mubr.bf16.gmra.mrb[0].mxu0 %v4575
    %v4788 = vpop.f32.mrb[0].mxu0
    %v4789 = vadd.f32 %v4640, %v4788
    %v4790 = vpop.f32.mrb[0].mxu0
    %v4791 = vpop.f32.mrb[0].mxu0
    %v4792 = vadd.f32 %v4640, %v4791
    %v4793 = vpop.f32.mrb[0].mxu0
    %4794 = vmatprep.mubr.bf16.mxu0 %v4578
    %4795 = vmatmul.mubr.bf16.gmra.mrb[0].mxu0 %v4577
    %v4796 = vpop.f32.mrb[0].mxu0
    %v4797 = vadd.f32 %v4640, %v4796
    %v4798 = vpop.f32.mrb[0].mxu0
    %v4799 = vpop.f32.mrb[0].mxu0
    %v4800 = vadd.f32 %v4640, %v4799
    %v4801 = vpop.f32.mrb[0].mxu0
    %4802 = vmatprep.mubr.bf16.mxu0 %v4580
    %4803 = vmatmul.mubr.bf16.gmra.mrb[0].mxu0 %v4579
    %v4804 = vpop.f32.mrb[0].mxu0
    %v4805 = vadd.f32 %v4640, %v4804
    %v4806 = vpop.f32.mrb[0].mxu0
    %v4807 = vpop.f32.mrb[0].mxu0
    %v4808 = vadd.f32 %v4640, %v4807
    %v4809 = vpop.f32.mrb[0].mxu0
    %4810 = vmatprep.mubr.bf16.mxu0 %v4582
    %4811 = vmatmul.mubr.bf16.gmra.mrb[0].mxu0 %v4581
    %v4812 = vpop.f32.mrb[0].mxu0
    %v4813 = vadd.f32 %v4640, %v4812
    %v4814 = vpop.f32.mrb[0].mxu0
    %v4815 = vpop.f32.mrb[0].mxu0
    %v4816 = vadd.f32 %v4640, %v4815
    %v4817 = vpop.f32.mrb[0].mxu0
    %4818 = vmatprep.mubr.bf16.mxu0 %v4584
    %4819 = vmatmul.mubr.bf16.gmra.mrb[0].mxu0 %v4583
    %v4820 = vpop.f32.mrb[0].mxu0
    %v4821 = vadd.f32 %v4640, %v4820
    %v4822 = vpop.f32.mrb[0].mxu0
    %v4823 = vpop.f32.mrb[0].mxu0
    %v4824 = vadd.f32 %v4640, %v4823
    %v4825 = vpop.f32.mrb[0].mxu0
    %4826 = vmatprep.mubr.bf16.mxu0 %v4586
    %4827 = vmatmul.mubr.bf16.gmra.mrb[0].mxu0 %v4585
    %v4828 = vpop.f32.mrb[0].mxu0
    %v4829 = vadd.f32 %v4640, %v4828
    %v4830 = vpop.f32.mrb[0].mxu0
    %v4831 = vpop.f32.mrb[0].mxu0
    %v4832 = vadd.f32 %v4640, %v4831
    %v4833 = vpop.f32.mrb[0].mxu0
    %4834 = vmatprep.mubr.bf16.mxu0 %v4588
    %4835 = vmatmul.mubr.bf16.gmra.mrb[0].mxu0 %v4587
    %v4836 = vpop.f32.mrb[0].mxu0
    %v4837 = vadd.f32 %v4640, %v4836
    %v4838 = vpop.f32.mrb[0].mxu0
    %v4839 = vpop.f32.mrb[0].mxu0
    %v4840 = vadd.f32 %v4640, %v4839
    %v4841 = vpop.f32.mrb[0].mxu0
    %4842 = vmatprep.mubr.bf16.mxu0 %v4590
    %4843 = vmatmul.mubr.bf16.gmra.mrb[0].mxu0 %v4589
    %v4844 = vpop.f32.mrb[0].mxu0
    %v4845 = vadd.f32 %v4640, %v4844
    %v4846 = vpop.f32.mrb[0].mxu0
    %v4847 = vpop.f32.mrb[0].mxu0
    %v4848 = vadd.f32 %v4640, %v4847
    %v4849 = vpop.f32.mrb[0].mxu0
    %4850 = vmatprep.mubr.bf16.mxu0 %v4592
    %4851 = vmatmul.mubr.bf16.gmra.mrb[0].mxu0 %v4591
    %v4852 = vpop.f32.mrb[0].mxu0
    %v4853 = vadd.f32 %v4640, %v4852
    %v4854 = vpop.f32.mrb[0].mxu0
    %v4855 = vpop.f32.mrb[0].mxu0
    %v4856 = vadd.f32 %v4640, %v4855
    %v4857 = vpop.f32.mrb[0].mxu0
    %4858 = vmatprep.mubr.bf16.mxu0 %v4594
    %4859 = vmatmul.mubr.bf16.gmra.mrb[0].mxu0 %v4593
    %v4860 = vpop.f32.mrb[0].mxu0
    %v4861 = vadd.f32 %v4640, %v4860
    %v4862 = vpop.f32.mrb[0].mxu0
    %v4863 = vpop.f32.mrb[0].mxu0
    %v4864 = vadd.f32 %v4640, %v4863
    %v4865 = vpop.f32.mrb[0].mxu0
    %4866 = vmatprep.mubr.bf16.mxu0 %v4596
    %4867 = vmatmul.mubr.bf16.gmra.mrb[0].mxu0 %v4595
    %v4868 = vpop.f32.mrb[0].mxu0
    %v4869 = vadd.f32 %v4640, %v4868
    %v4870 = vpop.f32.mrb[0].mxu0
    %v4871 = vpop.f32.mrb[0].mxu0
    %v4872 = vadd.f32 %v4640, %v4871
    %v4873 = vpop.f32.mrb[0].mxu0
    %4874 = vmatprep.mubr.bf16.mxu0 %v4598
    %4875 = vmatmul.mubr.bf16.gmra.mrb[0].mxu0 %v4597
    %v4876 = vpop.f32.mrb[0].mxu0
    %v4877 = vadd.f32 %v4640, %v4876
    %v4878 = vpop.f32.mrb[0].mxu0
    %v4879 = vpop.f32.mrb[0].mxu0
    %v4880 = vadd.f32 %v4640, %v4879
    %v4881 = vpop.f32.mrb[0].mxu0
    %4882 = vmatprep.mubr.bf16.mxu0 %v4600
    %4883 = vmatmul.mubr.bf16.gmra.mrb[0].mxu0 %v4599
    %v4884 = vpop.f32.mrb[0].mxu0
    %v4885 = vadd.f32 %v4640, %v4884
    %v4886 = vpop.f32.mrb[0].mxu0
    %v4887 = vpop.f32.mrb[0].mxu0
    %v4888 = vadd.f32 %v4640, %v4887
    %v4889 = vpop.f32.mrb[0].mxu0
    %4890 = vmatprep.mubr.bf16.mxu0 %v4602
    %4891 = vmatmul.mubr.bf16.gmra.mrb[0].mxu0 %v4601
    %v4892 = vpop.f32.mrb[0].mxu0
    %v4893 = vadd.f32 %v4640, %v4892
    %v4894 = vpop.f32.mrb[0].mxu0
    %v4895 = vpop.f32.mrb[0].mxu0
    %v4896 = vadd.f32 %v4640, %v4895
    %v4897 = vpop.f32.mrb[0].mxu0
    %4898 = vdwg.mxu0
    %v4899 = vmax.f32 %v4773, 0.0
    %v4900 = vmax.f32 %v4776, 0.0
    %v4901 = vmax.f32 %v4781, 0.0
    %v4902 = vmax.f32 %v4784, 0.0
    %v4903 = vmax.f32 %v4789, 0.0
    %v4904 = vmax.f32 %v4792, 0.0
    %v4905 = vmax.f32 %v4797, 0.0
    %v4906 = vmax.f32 %v4800, 0.0
    %v4907 = vmax.f32 %v4805, 0.0
    %v4908 = vmax.f32 %v4808, 0.0
    %v4909 = vmax.f32 %v4813, 0.0
    %v4910 = vmax.f32 %v4816, 0.0
    %v4911 = vmax.f32 %v4821, 0.0
    %v4912 = vmax.f32 %v4824, 0.0
    %v4913 = vmax.f32 %v4829, 0.0
    %v4914 = vmax.f32 %v4832, 0.0
    %v4915 = vmax.f32 %v4837, 0.0
    %v4916 = vmax.f32 %v4840, 0.0
    %v4917 = vmax.f32 %v4845, 0.0
    %v4918 = vmax.f32 %v4848, 0.0
    %v4919 = vmax.f32 %v4853, 0.0
    %v4920 = vmax.f32 %v4856, 0.0
    %v4921 = vmax.f32 %v4861, 0.0
    %v4922 = vmax.f32 %v4864, 0.0
    %v4923 = vmax.f32 %v4869, 0.0
    %v4924 = vmax.f32 %v4872, 0.0
    %v4925 = vmax.f32 %v4877, 0.0
    %v4926 = vmax.f32 %v4880, 0.0
    %v4927 = vmax.f32 %v4885, 0.0
    %v4928 = vmax.f32 %v4888, 0.0
    %v4929 = vmax.f32 %v4893, 0.0
    %v4930 = vmax.f32 %v4896, 0.0
    %v4931 = vpack.c.bf16 %v4900, %v4899
    %v4932 = vpack.c.bf16 %v4902, %v4901
    %v4933 = vpack.c.bf16 %v4904, %v4903
    %v4934 = vpack.c.bf16 %v4906, %v4905
    %v4935 = vpack.c.bf16 %v4908, %v4907
    %v4936 = vpack.c.bf16 %v4910, %v4909
    %v4937 = vpack.c.bf16 %v4912, %v4911
    %v4938 = vpack.c.bf16 %v4914, %v4913
    %v4939 = vpack.c.bf16 %v4916, %v4915
    %v4940 = vpack.c.bf16 %v4918, %v4917
    %v4941 = vpack.c.bf16 %v4920, %v4919
    %v4942 = vpack.c.bf16 %v4922, %v4921
    %v4943 = vpack.c.bf16 %v4924, %v4923
    %v4944 = vpack.c.bf16 %v4926, %v4925
    %v4945 = vpack.c.bf16 %v4928, %v4927
    %v4946 = vpack.c.bf16 %v4930, %v4929
    %v4947 = vld [vmem:[%s7] sm:$0xf]
    %v4948 = vld [vmem:[%s7 + $0x4] sm:$0xf]
    %v4949 = vld [vmem:[%s7 + $0x8] sm:$0xf]
    %v4950 = vld [vmem:[%s7 + $0xc] sm:$0xf]
    %v4951 = vld [vmem:[%s7 + $0x10] sm:$0xf]
    %v4952 = vld [vmem:[%s7 + $0x14] sm:$0xf]
    %v4953 = vld [vmem:[%s7 + $0x18] sm:$0xf]
    %v4954 = vld [vmem:[%s7 + $0x1c] sm:$0xf]
    %v4955 = vld [vmem:[%s7 + $0x20] sm:$0xf]
    %v4956 = vld [vmem:[%s7 + $0x24] sm:$0xf]
    %v4957 = vld [vmem:[%s7 + $0x28] sm:$0xf]
    %v4958 = vld [vmem:[%s7 + $0x2c] sm:$0xf]
    %v4959 = vld [vmem:[%s7 + $0x30] sm:$0xf]
    %v4960 = vld [vmem:[%s7 + $0x34] sm:$0xf]
    %v4961 = vld [vmem:[%s7 + $0x38] sm:$0xf]
    %v4962 = vld [vmem:[%s7 + $0x3c] sm:$0xf]
    %v4963 = vld [vmem:[%s8] sm:$0x1]
    %v4965 = vlaneseq
    %v4966 = vshrl.u32 %v4965, 7
    %v4967 = vsub.s32 0, %v4966
    %v4968 = vrot.slane %v4963, %v4967
    %v4986 = vunpack.c.l.b16 %v4947
    %v4987 = vunpack.c.l.b16 %v4948
    %v4988 = vunpack.c.l.b16 %v4949
    %v4989 = vunpack.c.l.b16 %v4950
    %v4990 = vunpack.c.l.b16 %v4951
    %v4991 = vunpack.c.l.b16 %v4952
    %v4992 = vunpack.c.l.b16 %v4953
    %v4993 = vunpack.c.l.b16 %v4954
    %v4994 = vunpack.c.l.b16 %v4955
    %v4995 = vunpack.c.l.b16 %v4956
    %v4996 = vunpack.c.l.b16 %v4957
    %v4997 = vunpack.c.l.b16 %v4958
    %v4998 = vunpack.c.l.b16 %v4959
    %v4999 = vunpack.c.l.b16 %v4960
    %v5000 = vunpack.c.l.b16 %v4961
    %v5001 = vunpack.c.l.b16 %v4962
    %v5002 = vpack.c.b16 %v4987, %v4986
    %v5003 = vpack.c.b16 %v4989, %v4988
    %v5004 = vpack.c.b16 %v4991, %v4990
    %v5005 = vpack.c.b16 %v4993, %v4992
    %v5006 = vpack.c.b16 %v4995, %v4994
    %v5007 = vpack.c.b16 %v4997, %v4996
    %v5008 = vpack.c.b16 %v4999, %v4998
    %v5009 = vpack.c.b16 %v5001, %v5000
    %5018 = vmatprep.subr.bf16.mxu0 0
    %5019 = vmatpush1.bf16.msra.mxu0 %v5002
    %5020 = vmatprep.subr.bf16.mxu0 0
    %5021 = vmatpush1.bf16.msra.mxu0 %v5003
    %5022 = vmatprep.subr.bf16.mxu0 0
    %5023 = vmatpush1.bf16.msra.mxu0 %v5004
    %5024 = vmatprep.subr.bf16.mxu0 0
    %5025 = vmatpush1.bf16.msra.mxu0 %v5005
    %5026 = vmatprep.subr.bf16.mxu0 0
    %5027 = vmatpush1.bf16.msra.mxu0 %v5006
    %5028 = vmatprep.subr.bf16.mxu0 0
    %5029 = vmatpush1.bf16.msra.mxu0 %v5007
    %5030 = vmatprep.subr.bf16.mxu0 0
    %5031 = vmatpush1.bf16.msra.mxu0 %v5008
    %5032 = vmatprep.subr.bf16.mxu0 0
    %5033 = vmatpush1.bf16.msra.mxu0 %v5009
    %5034 = vmatprep.subr.bf16.mxu0 0
    %5035 = vmatpush1.bf16.msra.mxu0 0
    %5036 = vmatprep.subr.bf16.mxu0 0
    %5037 = vmatpush1.bf16.msra.mxu0 0
    %5038 = vmatprep.subr.bf16.mxu0 0
    %5039 = vmatpush1.bf16.msra.mxu0 0
    %5040 = vmatprep.subr.bf16.mxu0 0
    %5041 = vmatpush1.bf16.msra.mxu0 0
    %5042 = vmatprep.subr.bf16.mxu0 0
    %5043 = vmatpush1.bf16.msra.mxu0 0
    %5044 = vmatprep.subr.bf16.mxu0 0
    %5045 = vmatpush1.bf16.msra.mxu0 0
    %5046 = vmatprep.subr.bf16.mxu0 0
    %5047 = vmatpush1.bf16.msra.mxu0 0
    %5048 = vmatprep.subr.bf16.mxu0 0
    %5049 = vmatpush1.bf16.msra.mxu0 0
    %5050 = vmatprep.mubr.bf16.mxu0 0
    %5051 = vmatmul.mubr.bf16.gmra.mrb[0].mxu0 %v4931
    %v5052 = vpop.f32.mrb[0].mxu0
    %v5053 = vadd.f32 %v4968, %v5052
    %v5054 = vpop.f32.mrb[0].mxu0
    %v5055 = vpop.f32.mrb[0].mxu0
    %v5056 = vadd.f32 %v4968, %v5055
    %v5057 = vpop.f32.mrb[0].mxu0
    %5058 = vmatprep.mubr.bf16.mxu0 0
    %5059 = vmatmul.mubr.bf16.gmra.mrb[0].mxu0 %v4932
    %v5060 = vpop.f32.mrb[0].mxu0
    %v5061 = vadd.f32 %v4968, %v5060
    %v5062 = vpop.f32.mrb[0].mxu0
    %v5063 = vpop.f32.mrb[0].mxu0
    %v5064 = vadd.f32 %v4968, %v5063
    %v5065 = vpop.f32.mrb[0].mxu0
    %5066 = vmatprep.mubr.bf16.mxu0 0
    %5067 = vmatmul.mubr.bf16.gmra.mrb[0].mxu0 %v4933
    %v5068 = vpop.f32.mrb[0].mxu0
    %v5069 = vadd.f32 %v4968, %v5068
    %v5070 = vpop.f32.mrb[0].mxu0
    %v5071 = vpop.f32.mrb[0].mxu0
    %v5072 = vadd.f32 %v4968, %v5071
    %v5073 = vpop.f32.mrb[0].mxu0
    %5074 = vmatprep.mubr.bf16.mxu0 0
    %5075 = vmatmul.mubr.bf16.gmra.mrb[0].mxu0 %v4934
    %v5076 = vpop.f32.mrb[0].mxu0
    %v5077 = vadd.f32 %v4968, %v5076
    %v5078 = vpop.f32.mrb[0].mxu0
    %v5079 = vpop.f32.mrb[0].mxu0
    %v5080 = vadd.f32 %v4968, %v5079
    %v5081 = vpop.f32.mrb[0].mxu0
    %5082 = vmatprep.mubr.bf16.mxu0 0
    %5083 = vmatmul.mubr.bf16.gmra.mrb[0].mxu0 %v4935
    %v5084 = vpop.f32.mrb[0].mxu0
    %v5085 = vadd.f32 %v4968, %v5084
    %v5086 = vpop.f32.mrb[0].mxu0
    %v5087 = vpop.f32.mrb[0].mxu0
    %v5088 = vadd.f32 %v4968, %v5087
    %v5089 = vpop.f32.mrb[0].mxu0
    %5090 = vmatprep.mubr.bf16.mxu0 0
    %5091 = vmatmul.mubr.bf16.gmra.mrb[0].mxu0 %v4936
    %v5092 = vpop.f32.mrb[0].mxu0
    %v5093 = vadd.f32 %v4968, %v5092
    %v5094 = vpop.f32.mrb[0].mxu0
    %v5095 = vpop.f32.mrb[0].mxu0
    %v5096 = vadd.f32 %v4968, %v5095
    %v5097 = vpop.f32.mrb[0].mxu0
    %5098 = vmatprep.mubr.bf16.mxu0 0
    %5099 = vmatmul.mubr.bf16.gmra.mrb[0].mxu0 %v4937
    %v5100 = vpop.f32.mrb[0].mxu0
    %v5101 = vadd.f32 %v4968, %v5100
    %v5102 = vpop.f32.mrb[0].mxu0
    %v5103 = vpop.f32.mrb[0].mxu0
    %v5104 = vadd.f32 %v4968, %v5103
    %v5105 = vpop.f32.mrb[0].mxu0
    %5106 = vmatprep.mubr.bf16.mxu0 0
    %5107 = vmatmul.mubr.bf16.gmra.mrb[0].mxu0 %v4938
    %v5108 = vpop.f32.mrb[0].mxu0
    %v5109 = vadd.f32 %v4968, %v5108
    %v5110 = vpop.f32.mrb[0].mxu0
    %v5111 = vpop.f32.mrb[0].mxu0
    %v5112 = vadd.f32 %v4968, %v5111
    %v5113 = vpop.f32.mrb[0].mxu0
    %5114 = vmatprep.mubr.bf16.mxu0 0
    %5115 = vmatmul.mubr.bf16.gmra.mrb[0].mxu0 %v4939
    %v5116 = vpop.f32.mrb[0].mxu0
    %v5117 = vadd.f32 %v4968, %v5116
    %v5118 = vpop.f32.mrb[0].mxu0
    %v5119 = vpop.f32.mrb[0].mxu0
    %v5120 = vadd.f32 %v4968, %v5119
    %v5121 = vpop.f32.mrb[0].mxu0
    %5122 = vmatprep.mubr.bf16.mxu0 0
    %5123 = vmatmul.mubr.bf16.gmra.mrb[0].mxu0 %v4940
    %v5124 = vpop.f32.mrb[0].mxu0
    %v5125 = vadd.f32 %v4968, %v5124
    %v5126 = vpop.f32.mrb[0].mxu0
    %v5127 = vpop.f32.mrb[0].mxu0
    %v5128 = vadd.f32 %v4968, %v5127
    %v5129 = vpop.f32.mrb[0].mxu0
    %5130 = vmatprep.mubr.bf16.mxu0 0
    %5131 = vmatmul.mubr.bf16.gmra.mrb[0].mxu0 %v4941
    %v5132 = vpop.f32.mrb[0].mxu0
    %v5133 = vadd.f32 %v4968, %v5132
    %v5134 = vpop.f32.mrb[0].mxu0
    %v5135 = vpop.f32.mrb[0].mxu0
    %v5136 = vadd.f32 %v4968, %v5135
    %v5137 = vpop.f32.mrb[0].mxu0
    %5138 = vmatprep.mubr.bf16.mxu0 0
    %5139 = vmatmul.mubr.bf16.gmra.mrb[0].mxu0 %v4942
    %v5140 = vpop.f32.mrb[0].mxu0
    %v5141 = vadd.f32 %v4968, %v5140
    %v5142 = vpop.f32.mrb[0].mxu0
    %v5143 = vpop.f32.mrb[0].mxu0
    %v5144 = vadd.f32 %v4968, %v5143
    %v5145 = vpop.f32.mrb[0].mxu0
    %5146 = vmatprep.mubr.bf16.mxu0 0
    %5147 = vmatmul.mubr.bf16.gmra.mrb[0].mxu0 %v4943
    %v5148 = vpop.f32.mrb[0].mxu0
    %v5149 = vadd.f32 %v4968, %v5148
    %v5150 = vpop.f32.mrb[0].mxu0
    %v5151 = vpop.f32.mrb[0].mxu0
    %v5152 = vadd.f32 %v4968, %v5151
    %v5153 = vpop.f32.mrb[0].mxu0
    %5154 = vmatprep.mubr.bf16.mxu0 0
    %5155 = vmatmul.mubr.bf16.gmra.mrb[0].mxu0 %v4944
    %v5156 = vpop.f32.mrb[0].mxu0
    %v5157 = vadd.f32 %v4968, %v5156
    %v5158 = vpop.f32.mrb[0].mxu0
    %v5159 = vpop.f32.mrb[0].mxu0
    %v5160 = vadd.f32 %v4968, %v5159
    %v5161 = vpop.f32.mrb[0].mxu0
    %5162 = vmatprep.mubr.bf16.mxu0 0
    %5163 = vmatmul.mubr.bf16.gmra.mrb[0].mxu0 %v4945
    %v5164 = vpop.f32.mrb[0].mxu0
    %v5165 = vadd.f32 %v4968, %v5164
    %v5166 = vpop.f32.mrb[0].mxu0
    %v5167 = vpop.f32.mrb[0].mxu0
    %v5168 = vadd.f32 %v4968, %v5167
    %v5169 = vpop.f32.mrb[0].mxu0
    %5170 = vmatprep.mubr.bf16.mxu0 0
    %5171 = vmatmul.mubr.bf16.gmra.mrb[0].mxu0 %v4946
    %v5172 = vpop.f32.mrb[0].mxu0
    %v5173 = vadd.f32 %v4968, %v5172
    %v5174 = vpop.f32.mrb[0].mxu0
    %v5175 = vpop.f32.mrb[0].mxu0
    %v5176 = vadd.f32 %v4968, %v5175
    %v5177 = vpop.f32.mrb[0].mxu0
    %5178 = vdwg.mxu0
    %v5179 = vmax.f32 %v5053, 0.0
    %v5180 = vmax.f32 %v5056, 0.0
    %v5181 = vmax.f32 %v5061, 0.0
    %v5182 = vmax.f32 %v5064, 0.0
    %v5183 = vmax.f32 %v5069, 0.0
    %v5184 = vmax.f32 %v5072, 0.0
    %v5185 = vmax.f32 %v5077, 0.0
    %v5186 = vmax.f32 %v5080, 0.0
    %v5187 = vmax.f32 %v5085, 0.0
    %v5188 = vmax.f32 %v5088, 0.0
    %v5189 = vmax.f32 %v5093, 0.0
    %v5190 = vmax.f32 %v5096, 0.0
    %v5191 = vmax.f32 %v5101, 0.0
    %v5192 = vmax.f32 %v5104, 0.0
    %v5193 = vmax.f32 %v5109, 0.0
    %v5194 = vmax.f32 %v5112, 0.0
    %v5195 = vmax.f32 %v5117, 0.0
    %v5196 = vmax.f32 %v5120, 0.0
    %v5197 = vmax.f32 %v5125, 0.0
    %v5198 = vmax.f32 %v5128, 0.0
    %v5199 = vmax.f32 %v5133, 0.0
    %v5200 = vmax.f32 %v5136, 0.0
    %v5201 = vmax.f32 %v5141, 0.0
    %v5202 = vmax.f32 %v5144, 0.0
    %v5203 = vmax.f32 %v5149, 0.0
    %v5204 = vmax.f32 %v5152, 0.0
    %v5205 = vmax.f32 %v5157, 0.0
    %v5206 = vmax.f32 %v5160, 0.0
    %v5207 = vmax.f32 %v5165, 0.0
    %v5208 = vmax.f32 %v5168, 0.0
    %v5209 = vmax.f32 %v5173, 0.0
    %v5210 = vmax.f32 %v5176, 0.0
    %v5211 = vpack.c.bf16 %v5180, %v5179
    %v5212 = vpack.c.bf16 %v5182, %v5181
    %v5213 = vpack.c.bf16 %v5184, %v5183
    %v5214 = vpack.c.bf16 %v5186, %v5185
    %v5215 = vpack.c.bf16 %v5188, %v5187
    %v5216 = vpack.c.bf16 %v5190, %v5189
    %v5217 = vpack.c.bf16 %v5192, %v5191
    %v5218 = vpack.c.bf16 %v5194, %v5193
    %v5219 = vpack.c.bf16 %v5196, %v5195
    %v5220 = vpack.c.bf16 %v5198, %v5197
    %v5221 = vpack.c.bf16 %v5200, %v5199
    %v5222 = vpack.c.bf16 %v5202, %v5201
    %v5223 = vpack.c.bf16 %v5204, %v5203
    %v5224 = vpack.c.bf16 %v5206, %v5205
    %v5225 = vpack.c.bf16 %v5208, %v5207
    %v5226 = vpack.c.bf16 %v5210, %v5209
    %v5227 = vld [vmem:[%s9] sm:$0xf]
    %v5228 = vld [vmem:[%s9 + $0x4] sm:$0xf]
    %v5229 = vld [vmem:[%s9 + $0x8] sm:$0xf]
    %v5230 = vld [vmem:[%s9 + $0xc] sm:$0xf]
    %v5231 = vld [vmem:[%s9 + $0x10] sm:$0xf]
    %v5232 = vld [vmem:[%s9 + $0x14] sm:$0xf]
    %v5233 = vld [vmem:[%s9 + $0x18] sm:$0xf]
    %v5234 = vld [vmem:[%s9 + $0x1c] sm:$0xf]
    %v5235 = vld [vmem:[%s10] sm:$0x1]
    %v5237 = vlaneseq
    %v5238 = vshrl.u32 %v5237, 7
    %v5239 = vsub.s32 0, %v5238
    %v5240 = vrot.slane %v5235, %v5239
    %v5250 = vunpack.c.l.b16 %v5227
    %v5251 = vunpack.c.l.b16 %v5228
    %v5252 = vunpack.c.l.b16 %v5229
    %v5253 = vunpack.c.l.b16 %v5230
    %v5254 = vunpack.c.l.b16 %v5231
    %v5255 = vunpack.c.l.b16 %v5232
    %v5256 = vunpack.c.l.b16 %v5233
    %v5257 = vunpack.c.l.b16 %v5234
    %v5258 = vpack.c.b16 %v5251, %v5250
    %v5259 = vpack.c.b16 %v5253, %v5252
    %v5260 = vpack.c.b16 %v5255, %v5254
    %v5261 = vpack.c.b16 %v5257, %v5256
    %vm5266 = vcmask 523264
    %v5268 = vsel %vm5266, %v5211, 0
    %v5271 = vsel %vm5266, %v5212, 0
    %v5274 = vsel %vm5266, %v5213, 0
    %v5277 = vsel %vm5266, %v5214, 0
    %v5280 = vsel %vm5266, %v5215, 0
    %v5283 = vsel %vm5266, %v5216, 0
    %v5286 = vsel %vm5266, %v5217, 0
    %v5289 = vsel %vm5266, %v5218, 0
    %v5292 = vsel %vm5266, %v5219, 0
    %v5295 = vsel %vm5266, %v5220, 0
    %v5298 = vsel %vm5266, %v5221, 0
    %v5301 = vsel %vm5266, %v5222, 0
    %v5304 = vsel %vm5266, %v5223, 0
    %v5307 = vsel %vm5266, %v5224, 0
    %v5310 = vsel %vm5266, %v5225, 0
    %v5313 = vsel %vm5266, %v5226, 0
    %5315 = vmatprep.subr.bf16.mxu0 0
    %5316 = vmatpush1.bf16.msra.mxu0 %v5258
    %5317 = vmatprep.subr.bf16.mxu0 0
    %5318 = vmatpush1.bf16.msra.mxu0 %v5259
    %5319 = vmatprep.subr.bf16.mxu0 0
    %5320 = vmatpush1.bf16.msra.mxu0 %v5260
    %5321 = vmatprep.subr.bf16.mxu0 0
    %5322 = vmatpush1.bf16.msra.mxu0 %v5261
    %5323 = vmatprep.subr.bf16.mxu0 0
    %5324 = vmatpush1.bf16.msra.mxu0 0
    %5325 = vmatprep.subr.bf16.mxu0 0
    %5326 = vmatpush1.bf16.msra.mxu0 0
    %5327 = vmatprep.subr.bf16.mxu0 0
    %5328 = vmatpush1.bf16.msra.mxu0 0
    %5329 = vmatprep.subr.bf16.mxu0 0
    %5330 = vmatpush1.bf16.msra.mxu0 0
    %5331 = vmatprep.subr.bf16.mxu0 0
    %5332 = vmatpush1.bf16.msra.mxu0 0
    %5333 = vmatprep.subr.bf16.mxu0 0
    %5334 = vmatpush1.bf16.msra.mxu0 0
    %5335 = vmatprep.subr.bf16.mxu0 0
    %5336 = vmatpush1.bf16.msra.mxu0 0
    %5337 = vmatprep.subr.bf16.mxu0 0
    %5338 = vmatpush1.bf16.msra.mxu0 0
    %5339 = vmatprep.subr.bf16.mxu0 0
    %5340 = vmatpush1.bf16.msra.mxu0 0
    %5341 = vmatprep.subr.bf16.mxu0 0
    %5342 = vmatpush1.bf16.msra.mxu0 0
    %5343 = vmatprep.subr.bf16.mxu0 0
    %5344 = vmatpush1.bf16.msra.mxu0 0
    %5345 = vmatprep.subr.bf16.mxu0 0
    %5346 = vmatpush1.bf16.msra.mxu0 0
    %5347 = vmatprep.mubr.bf16.mxu0 0
    %5348 = vmatmul.mubr.bf16.gmra.mrb[0].mxu0 %v5268
    %v5349 = vpop.f32.mrb[0].mxu0
    %v5350 = vadd.f32 %v5240, %v5349
    %v5351 = vpop.f32.mrb[0].mxu0
    %v5352 = vpop.f32.mrb[0].mxu0
    %v5353 = vadd.f32 %v5240, %v5352
    %v5354 = vpop.f32.mrb[0].mxu0
    %5355 = vmatprep.mubr.bf16.mxu0 0
    %5356 = vmatmul.mubr.bf16.gmra.mrb[0].mxu0 %v5271
    %v5357 = vpop.f32.mrb[0].mxu0
    %v5358 = vadd.f32 %v5240, %v5357
    %v5359 = vpop.f32.mrb[0].mxu0
    %v5360 = vpop.f32.mrb[0].mxu0
    %v5361 = vadd.f32 %v5240, %v5360
    %v5362 = vpop.f32.mrb[0].mxu0
    %5363 = vmatprep.mubr.bf16.mxu0 0
    %5364 = vmatmul.mubr.bf16.gmra.mrb[0].mxu0 %v5274
    %v5365 = vpop.f32.mrb[0].mxu0
    %v5366 = vadd.f32 %v5240, %v5365
    %v5367 = vpop.f32.mrb[0].mxu0
    %v5368 = vpop.f32.mrb[0].mxu0
    %v5369 = vadd.f32 %v5240, %v5368
    %v5370 = vpop.f32.mrb[0].mxu0
    %5371 = vmatprep.mubr.bf16.mxu0 0
    %5372 = vmatmul.mubr.bf16.gmra.mrb[0].mxu0 %v5277
    %v5373 = vpop.f32.mrb[0].mxu0
    %v5374 = vadd.f32 %v5240, %v5373
    %v5375 = vpop.f32.mrb[0].mxu0
    %v5376 = vpop.f32.mrb[0].mxu0
    %v5377 = vadd.f32 %v5240, %v5376
    %v5378 = vpop.f32.mrb[0].mxu0
    %5379 = vmatprep.mubr.bf16.mxu0 0
    %5380 = vmatmul.mubr.bf16.gmra.mrb[0].mxu0 %v5280
    %v5381 = vpop.f32.mrb[0].mxu0
    %v5382 = vadd.f32 %v5240, %v5381
    %v5383 = vpop.f32.mrb[0].mxu0
    %v5384 = vpop.f32.mrb[0].mxu0
    %v5385 = vadd.f32 %v5240, %v5384
    %v5386 = vpop.f32.mrb[0].mxu0
    %5387 = vmatprep.mubr.bf16.mxu0 0
    %5388 = vmatmul.mubr.bf16.gmra.mrb[0].mxu0 %v5283
    %v5389 = vpop.f32.mrb[0].mxu0
    %v5390 = vadd.f32 %v5240, %v5389
    %v5391 = vpop.f32.mrb[0].mxu0
    %v5392 = vpop.f32.mrb[0].mxu0
    %v5393 = vadd.f32 %v5240, %v5392
    %v5394 = vpop.f32.mrb[0].mxu0
    %5395 = vmatprep.mubr.bf16.mxu0 0
    %5396 = vmatmul.mubr.bf16.gmra.mrb[0].mxu0 %v5286
    %v5397 = vpop.f32.mrb[0].mxu0
    %v5398 = vadd.f32 %v5240, %v5397
    %v5399 = vpop.f32.mrb[0].mxu0
    %v5400 = vpop.f32.mrb[0].mxu0
    %v5401 = vadd.f32 %v5240, %v5400
    %v5402 = vpop.f32.mrb[0].mxu0
    %5403 = vmatprep.mubr.bf16.mxu0 0
    %5404 = vmatmul.mubr.bf16.gmra.mrb[0].mxu0 %v5289
    %v5405 = vpop.f32.mrb[0].mxu0
    %v5406 = vadd.f32 %v5240, %v5405
    %v5407 = vpop.f32.mrb[0].mxu0
    %v5408 = vpop.f32.mrb[0].mxu0
    %v5409 = vadd.f32 %v5240, %v5408
    %v5410 = vpop.f32.mrb[0].mxu0
    %5411 = vmatprep.mubr.bf16.mxu0 0
    %5412 = vmatmul.mubr.bf16.gmra.mrb[0].mxu0 %v5292
    %v5413 = vpop.f32.mrb[0].mxu0
    %v5414 = vadd.f32 %v5240, %v5413
    %v5415 = vpop.f32.mrb[0].mxu0
    %v5416 = vpop.f32.mrb[0].mxu0
    %v5417 = vadd.f32 %v5240, %v5416
    %v5418 = vpop.f32.mrb[0].mxu0
    %5419 = vmatprep.mubr.bf16.mxu0 0
    %5420 = vmatmul.mubr.bf16.gmra.mrb[0].mxu0 %v5295
    %v5421 = vpop.f32.mrb[0].mxu0
    %v5422 = vadd.f32 %v5240, %v5421
    %v5423 = vpop.f32.mrb[0].mxu0
    %v5424 = vpop.f32.mrb[0].mxu0
    %v5425 = vadd.f32 %v5240, %v5424
    %v5426 = vpop.f32.mrb[0].mxu0
    %5427 = vmatprep.mubr.bf16.mxu0 0
    %5428 = vmatmul.mubr.bf16.gmra.mrb[0].mxu0 %v5298
    %v5429 = vpop.f32.mrb[0].mxu0
    %v5430 = vadd.f32 %v5240, %v5429
    %v5431 = vpop.f32.mrb[0].mxu0
    %v5432 = vpop.f32.mrb[0].mxu0
    %v5433 = vadd.f32 %v5240, %v5432
    %v5434 = vpop.f32.mrb[0].mxu0
    %5435 = vmatprep.mubr.bf16.mxu0 0
    %5436 = vmatmul.mubr.bf16.gmra.mrb[0].mxu0 %v5301
    %v5437 = vpop.f32.mrb[0].mxu0
    %v5438 = vadd.f32 %v5240, %v5437
    %v5439 = vpop.f32.mrb[0].mxu0
    %v5440 = vpop.f32.mrb[0].mxu0
    %v5441 = vadd.f32 %v5240, %v5440
    %v5442 = vpop.f32.mrb[0].mxu0
    %5443 = vmatprep.mubr.bf16.mxu0 0
    %5444 = vmatmul.mubr.bf16.gmra.mrb[0].mxu0 %v5304
    %v5445 = vpop.f32.mrb[0].mxu0
    %v5446 = vadd.f32 %v5240, %v5445
    %v5447 = vpop.f32.mrb[0].mxu0
    %v5448 = vpop.f32.mrb[0].mxu0
    %v5449 = vadd.f32 %v5240, %v5448
    %v5450 = vpop.f32.mrb[0].mxu0
    %5451 = vmatprep.mubr.bf16.mxu0 0
    %5452 = vmatmul.mubr.bf16.gmra.mrb[0].mxu0 %v5307
    %v5453 = vpop.f32.mrb[0].mxu0
    %v5454 = vadd.f32 %v5240, %v5453
    %v5455 = vpop.f32.mrb[0].mxu0
    %v5456 = vpop.f32.mrb[0].mxu0
    %v5457 = vadd.f32 %v5240, %v5456
    %v5458 = vpop.f32.mrb[0].mxu0
    %5459 = vmatprep.mubr.bf16.mxu0 0
    %5460 = vmatmul.mubr.bf16.gmra.mrb[0].mxu0 %v5310
    %v5461 = vpop.f32.mrb[0].mxu0
    %v5462 = vadd.f32 %v5240, %v5461
    %v5463 = vpop.f32.mrb[0].mxu0
    %v5464 = vpop.f32.mrb[0].mxu0
    %v5465 = vadd.f32 %v5240, %v5464
    %v5466 = vpop.f32.mrb[0].mxu0
    %5467 = vmatprep.mubr.bf16.mxu0 0
    %5468 = vmatmul.mubr.bf16.gmra.mrb[0].mxu0 %v5313
    %v5469 = vpop.f32.mrb[0].mxu0
    %v5470 = vadd.f32 %v5240, %v5469
    %v5471 = vpop.f32.mrb[0].mxu0
    %v5472 = vpop.f32.mrb[0].mxu0
    %v5473 = vadd.f32 %v5240, %v5472
    %v5474 = vpop.f32.mrb[0].mxu0
    %5475 = vdwg.mxu0
    %5476 = vst [vmem:[#allocation5] sm:$0xff] %v5350
    %5477 = vst [vmem:[#allocation5 + $0x8] sm:$0xff] %v5353
    %5478 = vst [vmem:[#allocation5 + $0x10] sm:$0xff] %v5358
    %5479 = vst [vmem:[#allocation5 + $0x18] sm:$0xff] %v5361
    %5480 = vst [vmem:[#allocation5 + $0x20] sm:$0xff] %v5366
    %5481 = vst [vmem:[#allocation5 + $0x28] sm:$0xff] %v5369
    %5482 = vst [vmem:[#allocation5 + $0x30] sm:$0xff] %v5374
    %5483 = vst [vmem:[#allocation5 + $0x38] sm:$0xff] %v5377
    %5484 = vst [vmem:[#allocation5 + $0x40] sm:$0xff] %v5382
    %5485 = vst [vmem:[#allocation5 + $0x48] sm:$0xff] %v5385
    %5486 = vst [vmem:[#allocation5 + $0x50] sm:$0xff] %v5390
    %5487 = vst [vmem:[#allocation5 + $0x58] sm:$0xff] %v5393
    %5488 = vst [vmem:[#allocation5 + $0x60] sm:$0xff] %v5398
    %5489 = vst [vmem:[#allocation5 + $0x68] sm:$0xff] %v5401
    %5490 = vst [vmem:[#allocation5 + $0x70] sm:$0xff] %v5406
    %5491 = vst [vmem:[#allocation5 + $0x78] sm:$0xff] %v5409
    %5492 = vst [vmem:[#allocation5 + $0x80] sm:$0xff] %v5414
    %5493 = vst [vmem:[#allocation5 + $0x88] sm:$0xff] %v5417
    %5494 = vst [vmem:[#allocation5 + $0x90] sm:$0xff] %v5422
    %5495 = vst [vmem:[#allocation5 + $0x98] sm:$0xff] %v5425
    %5496 = vst [vmem:[#allocation5 + $0xa0] sm:$0xff] %v5430
    %5497 = vst [vmem:[#allocation5 + $0xa8] sm:$0xff] %v5433
    %5498 = vst [vmem:[#allocation5 + $0xb0] sm:$0xff] %v5438
    %5499 = vst [vmem:[#allocation5 + $0xb8] sm:$0xff] %v5441
    %5500 = vst [vmem:[#allocation5 + $0xc0] sm:$0xff] %v5446
    %5501 = vst [vmem:[#allocation5 + $0xc8] sm:$0xff] %v5449
    %5502 = vst [vmem:[#allocation5 + $0xd0] sm:$0xff] %v5454
    %5503 = vst [vmem:[#allocation5 + $0xd8] sm:$0xff] %v5457
    %5504 = vst [vmem:[#allocation5 + $0xe0] sm:$0xff] %v5462
    %5505 = vst [vmem:[#allocation5 + $0xe8] sm:$0xff] %v5465
    %5506 = vst [vmem:[#allocation5 + $0xf0] sm:$0xff] %v5470
    %5507 = vst [vmem:[#allocation5 + $0xf8] sm:$0xff] %v5473
    // Predicated region
    $region50: #{tpu_custom_call.1} parent=1 // pred_check
      _
    $region51: #{tpu_custom_call.1} parent=1 // pred_check_branch
      %5509 = sbr.rel (0) target = $region53
    $region52: #{tpu_custom_call.1} parent=1 // pred_region
      %s5511 = ssub.s32 4096, 4096
      %5512 = vsyncadd [#allocation4], %s5511
      %s5513 = sshll.u32 [#allocation5], 4
      %s5514 = int_to_ptr.vmem [resolvable:$true] %s5513
      %5519 = dma.vmem_to_hbm [thread:$0]  %s5514, 4096, %s11, [#allocation4], 128, 128, 8
    $region53: #{tpu_custom_call.1} parent=1 // pred_fallthru
      _
    // Predicated region
    $region54: #{tpu_custom_call.1} parent=1 // pred_check
      _
    $region55: #{tpu_custom_call.1} parent=1 // pred_check_branch
      %5521 = sbr.rel (0) target = $region57
    $region56: #{tpu_custom_call.1} parent=1 // pred_region
      %5522 = dma.done [#allocation4], 4096
    $region57: #{tpu_custom_call.1} parent=1 // pred_fallthru
      _
    %5523 = vsyncpa [#allocation3], 1
    %5524 = vsyncpa [#allocation4], 1

</llo_original>
